<compile_context>
chip_gen: v7x
topology: tpu7x:2x2x1
jax: 0.10.0
libtpu: 0.0.40
codegen_flags: <defaults>
</compile_context>

<pallas_src>
import functools
import math

import jax
import jax.numpy as jnp
from jax.experimental import pallas as pl
from jax.experimental.pallas import tpu as pltpu

# ----- config (mirrors cfg.MODEL.SOR.*) -----
NUM_RANKS = 5
CONV_DIM = 8
NUM_CONV = 2
DENSE_DIM = 32
OBJ_DIM = 16            # == cfg.MODEL.SOR.TRANSFORMER.D_MODEL
D_MODEL = 16
N_HEAD = 4
N_LAYERS = 2            # cfg.MODEL.SOR.TRANSFORMER.LAYERS
IN_CHANNELS = 4         # input_shape.channels
IN_WIDTH = 16           # input_shape.width == input_shape.height
RESOLUTION = IN_WIDTH // 2
LN_EPS = 1e-5


# ----------------------------------------------------------------------------
# Pallas kernels
# ----------------------------------------------------------------------------
def _conv_gemm_kernel(p_ref, wt_ref, bt_ref, o_ref):
    # Lane-dense transposed conv GEMM:  out(Co, M) = relu(Wt(Co,K) @ P(K,M) + b(Co,1))
    # M = N*Ho*Wo sits on the 128-lane axis -> fully dense vector stores.
    y = jnp.dot(wt_ref[...], p_ref[...], preferred_element_type=jnp.float32)
    y = jnp.maximum(y + bt_ref[...], 0.0)
    o_ref[...] = y.astype(o_ref.dtype)


def _tail_kernel(f_ref,
                 wfc1_ref, bfc1_ref, wfc2_ref, bfc2_ref,
                 wqkv_ref, bqkv_ref, wo_ref, bo_ref,
                 ln1g_ref, ln1b_ref, w1_ref, b1_ref, w2_ref, b2_ref,
                 ln2g_ref, ln2b_ref,
                 wsor_ref, bsor_ref, o_ref, *, nlayers, nhead):
    # Fused: fc1 -> relu -> fc2 -> relu -> [TransformerEncoderLayer]*nlayers -> sor.
    # Everything lives in VMEM; the small (<=64 lane) intermediates never hit HBM.
    x = f_ref[...].astype(jnp.float32)                                   # (S, 512)

    x = jnp.dot(x, wfc1_ref[...], preferred_element_type=jnp.float32) + bfc1_ref[...]
    x = jnp.maximum(x, 0.0)                                              # (S, 32)
    x = jnp.dot(x, wfc2_ref[...], preferred_element_type=jnp.float32) + bfc2_ref[...]
    x = jnp.maximum(x, 0.0)                                              # (S, 16)

    S, D = x.shape
    dh = D // nhead
    scale = 1.0 / math.sqrt(dh)

    for l in range(nlayers):                       # static unroll over the 2 layers
        wqkv = wqkv_ref[l]                         # (D, 3D) packed q|k|v
        bqkv = bqkv_ref[l]                         # (1, 3D)
        wo = wo_ref[l]                             # (D, D)
        bo = bo_ref[l]                             # (1, D)

        # --- multi-head self-attention: single packed QKV matmul ---
        qkv = jnp.dot(x, wqkv, preferred_element_type=jnp.float32) + bqkv  # (S, 3D)
        q = qkv[:, 0:D]
        k = qkv[:, D:2 * D]
        v = qkv[:, 2 * D:3 * D]

        attn = jnp.zeros((S, D), jnp.float32)
        for hh in range(nhead):                    # value slices only (no ref slicing)
            lo, hi = hh * dh, (hh + 1) * dh
            qh, kh, vh = q[:, lo:hi], k[:, lo:hi], v[:, lo:hi]
            s = jax.lax.dot_general(qh, kh, (((1,), (1,)), ((), ())),
                                    preferred_element_type=jnp.float32) * scale  # (S,S)
            s = s - jnp.max(s, axis=-1, keepdims=True)
            p = jnp.exp(s)
            # softmax denominator on the EUP (otherwise-idle slot)
            p = p * pl.reciprocal(jnp.sum(p, axis=-1, keepdims=True), approx=True)
            head = jnp.dot(p, vh, preferred_element_type=jnp.float32)            # (S,dh)
            # out_proj folded per head: concat(heads) @ Wo == sum_h head_h @ Wo[rows_h]
            attn = attn + jnp.dot(head, wo[lo:hi, :], preferred_element_type=jnp.float32)
        attn = attn + bo

        # --- residual + LayerNorm 1 (post-norm) ---
        y = x + attn
        mu = jnp.mean(y, axis=-1, keepdims=True)
        var = jnp.mean((y - mu) ** 2, axis=-1, keepdims=True)
        y = (y - mu) * jax.lax.rsqrt(var + LN_EPS) * ln1g_ref[l] + ln1b_ref[l]

        # --- feed-forward (ReLU) ---
        h1 = jnp.dot(y, w1_ref[l], preferred_element_type=jnp.float32) + b1_ref[l]
        h1 = jnp.maximum(h1, 0.0)
        h2 = jnp.dot(h1, w2_ref[l], preferred_element_type=jnp.float32) + b2_ref[l]

        # --- residual + LayerNorm 2 ---
        z = y + h2
        mu2 = jnp.mean(z, axis=-1, keepdims=True)
        var2 = jnp.mean((z - mu2) ** 2, axis=-1, keepdims=True)
        x = (z - mu2) * jax.lax.rsqrt(var2 + LN_EPS) * ln2g_ref[l] + ln2b_ref[l]

    out = jnp.dot(x, wsor_ref[...], preferred_element_type=jnp.float32) + bsor_ref[...]
    o_ref[...] = out.astype(o_ref.dtype)


# ----------------------------------------------------------------------------
# Thin wrappers / plain-JAX glue
# ----------------------------------------------------------------------------
_VMEM = pl.BlockSpec(memory_space=pltpu.MemorySpace.VMEM)


def maxpool2x2(mask):
    # 2x2 / stride-2 max pool: tiny (~24 KB total) -> plain JAX, no pallas_call.
    N, H2, W2 = mask.shape
    return mask.reshape(N, H2 // 2, 2, W2 // 2, 2).max(axis=(2, 4))


def _im2col_T(x_nhwc, stride):
    # Transposed im2col: rows = (dy, dx, cin), cols = (n, oh, ow).
    # For stride=2 the strided patches are built directly (no wasted stride-1 work).
    N, H, W, C = x_nhwc.shape
    Ho = (H - 1) // stride + 1
    Wo = (W - 1) // stride + 1
    xp = jnp.pad(x_nhwc, ((0, 0), (1, 1), (1, 1), (0, 0)))
    rows = []
    for dy in range(3):
        for dx in range(3):
            t = xp[:, dy:dy + (Ho - 1) * stride + 1:stride,
                   dx:dx + (Wo - 1) * stride + 1:stride, :]          # (N, Ho, Wo, C)
            rows.append(jnp.transpose(t, (3, 0, 1, 2)).reshape(C, N * Ho * Wo))
    return jnp.concatenate(rows, axis=0)                             # (9C, N*Ho*Wo)


def conv3x3_relu(x_nhwc, wt, bt, stride=1):
    # Conv2d(k=3, pad=1) + ReLU as one grid-less lane-dense GEMM.
    # Returns channel-major output (Co, N, Ho, Wo).
    # NOTE: sized for the SOR head (M = N*H*W ~ 1.5K, ~300 KB LHS); a cdiv grid
    # over M would be needed if the spatial size / proposal count grew a lot.
    N, H, W, _ = x_nhwc.shape
    Ho = (H - 1) // stride + 1
    Wo = (W - 1) // stride + 1
    p = _im2col_T(x_nhwc, stride)                                    # (9*Cin, M)
    if p.shape[0] < wt.shape[1]:                                     # pad K to match
        p = jnp.pad(p, ((0, wt.shape[1] - p.shape[0]), (0, 0)))      # zeros -> no-op in dot
    Co = wt.shape[0]
    y = pl.pallas_call(
        _conv_gemm_kernel,
        out_shape=jax.ShapeDtypeStruct((Co, N * Ho * Wo), jnp.float32),
        in_specs=[_VMEM] * 3,
        out_specs=_VMEM,
    )(p, wt, bt)
    return y.reshape(Co, N, Ho, Wo)


def sor_tail(feats, params):
    # One fused pallas_call for fc1 -> fc2 -> encoder x N_LAYERS -> sor.
    N = feats.shape[0]
    enc = params["enc"]
    args = (feats,
            params["fc1_w"], params["fc1_b"], params["fc2_w"], params["fc2_b"],
            enc["wqkv"], enc["bqkv"], enc["wo"], enc["bo"],
            enc["ln1_g"], enc["ln1_b"], enc["w1"], enc["b1"], enc["w2"], enc["b2"],
            enc["ln2_g"], enc["ln2_b"],
            params["sor_w"], params["sor_b"])
    return pl.pallas_call(
        functools.partial(_tail_kernel, nlayers=N_LAYERS, nhead=N_HEAD),
        out_shape=jax.ShapeDtypeStruct((N, NUM_RANKS), jnp.float32),
        in_specs=[_VMEM] * len(args),
        out_specs=_VMEM,
    )(*args)


# ----------------------------------------------------------------------------
# Deterministic parameter construction (synthetic init, no checkpoint)
# ----------------------------------------------------------------------------
def make_params(key):
    keys = iter(jax.random.split(key, 64))

    def lin(k, fin, fout, std=None):
        if std is None:
            std = math.sqrt(2.0 / fout)        # kaiming_normal_, mode='fan_out'
        w = jax.random.normal(k, (fin, fout), jnp.float32) * std
        b = jnp.zeros((1, fout), jnp.float32)
        return w, b

    params = {}

    # Conv weights stored pre-transposed (Co, 9*Cin) and K-padded to a sublane
    # multiple for the lane-dense transposed GEMM; biases as (Co, 1) columns.
    conv_wt, conv_bt = [], []
    cin = IN_CHANNELS + 1
    for _ in range(NUM_CONV):
        co = CONV_DIM
        std = math.sqrt(2.0 / (9 * co))        # kaiming fan_out for 3x3 conv
        w = jax.random.normal(next(keys), (3, 3, cin, co), jnp.float32) * std
        wt = jnp.transpose(w.reshape(9 * cin, co))         # (Co, 9*Cin), rows=(dy,dx,ci)
        k_pad = (-wt.shape[1]) % 8
        if k_pad:
            wt = jnp.pad(wt, ((0, 0), (0, k_pad)))
        conv_wt.append(wt)
        conv_bt.append(jnp.zeros((co, 1), jnp.float32))
        cin = co
    params["conv_wt"] = conv_wt
    params["conv_bt"] = conv_bt

    params["fc1_w"], params["fc1_b"] = lin(next(keys), CONV_DIM * RESOLUTION ** 2, DENSE_DIM)
    params["fc2_w"], params["fc2_b"] = lin(next(keys), DENSE_DIM, OBJ_DIM)
    params["sor_w"], params["sor_b"] = lin(next(keys), OBJ_DIM, NUM_RANKS, std=0.01)

    # Encoder layers: QKV packed into one (D, 3D) weight, all params stacked over layers.
    per = {k: [] for k in ("wqkv", "bqkv", "wo", "bo", "w1", "b1", "w2", "b2",
                           "ln1_g", "ln1_b", "ln2_g", "ln2_b")}
    for _ in range(N_LAYERS):
        std_attn = math.sqrt(1.0 / D_MODEL)
        wq = jax.random.normal(next(keys), (D_MODEL, D_MODEL), jnp.float32) * std_attn
        wk = jax.random.normal(next(keys), (D_MODEL, D_MODEL), jnp.float32) * std_attn
        wv = jax.random.normal(next(keys), (D_MODEL, D_MODEL), jnp.float32) * std_attn
        wo = jax.random.normal(next(keys), (D_MODEL, D_MODEL), jnp.float32) * std_attn
        per["wqkv"].append(jnp.concatenate([wq, wk, wv], axis=1))      # (D, 3D)
        per["bqkv"].append(jnp.zeros((1, 3 * D_MODEL), jnp.float32))
        per["wo"].append(wo)
        per["bo"].append(jnp.zeros((1, D_MODEL), jnp.float32))
        w1, b1 = lin(next(keys), D_MODEL, 4 * D_MODEL)
        w2, b2 = lin(next(keys), 4 * D_MODEL, D_MODEL)
        per["w1"].append(w1); per["b1"].append(b1)
        per["w2"].append(w2); per["b2"].append(b2)
        per["ln1_g"].append(jnp.ones((1, D_MODEL), jnp.float32))
        per["ln1_b"].append(jnp.zeros((1, D_MODEL), jnp.float32))
        per["ln2_g"].append(jnp.ones((1, D_MODEL), jnp.float32))
        per["ln2_b"].append(jnp.zeros((1, D_MODEL), jnp.float32))
    params["enc"] = {k: jnp.stack(v, axis=0) for k, v in per.items()}
    return params


# ----------------------------------------------------------------------------
# Forward pass (mirrors SelfAttentionPredictor.forward with instances=None)
# ----------------------------------------------------------------------------
def self_attention_predictor_forward(x_nchw, mask_nchw, params):
    N = x_nchw.shape[0]

    # mask_pool = MaxPool2d(2,2)(mask); x = cat((x, mask_pool), dim=1) — NHWC internally
    mask_pool = maxpool2x2(mask_nchw[:, 0, :, :])                    # (N, H, W)
    x = jnp.concatenate([jnp.transpose(x_nchw, (0, 2, 3, 1)),
                         mask_pool[..., None]], axis=-1)             # (N, H, W, C+1)

    # conv_relus: 3x3 conv + ReLU, last layer stride 2 (lane-dense transposed GEMMs)
    y = x
    for k, (wt, bt) in enumerate(zip(params["conv_wt"], params["conv_bt"])):
        stride = 2 if k + 1 == NUM_CONV else 1
        y = conv3x3_relu(y, wt, bt, stride=stride)                   # (Co, N, Ho, Wo)
        if k + 1 < NUM_CONV:
            y = jnp.transpose(y, (1, 2, 3, 0))                       # NHWC for next conv

    # torch.flatten(x, 1) on NCHW ordering: (n, c, h, w)
    feats = jnp.transpose(y, (1, 0, 2, 3)).reshape(N, -1)            # (N, C*R*R)

    # fused fc1 -> fc2 -> transformer encoder (seq = all N proposals) -> sor
    return sor_tail(feats, params)                                   # (N, num_ranks)


if __name__ == "__main__":
    key = jax.random.PRNGKey(0)
    kx, km, kp = jax.random.split(key, 3)
    N = 6  # number of proposals
    x = jax.random.normal(kx, (N, IN_CHANNELS, IN_WIDTH, IN_WIDTH), jnp.float32)
    mask = jax.random.uniform(km, (N, 1, 2 * IN_WIDTH, 2 * IN_WIDTH), jnp.float32)
    params = make_params(kp)

    fwd = jax.jit(self_attention_predictor_forward)
    out = fwd(x, mask, params)
    out = jax.block_until_ready(out)
    assert out.shape == (N, NUM_RANKS), out.shape
    assert bool(jnp.all(jnp.isfinite(out)))
    print("KERNEL_OK")
</pallas_src>

<mosaic_0001>
module attributes {stable_mosaic.version = 11 : i64} {
  func.func @_conv_gemm_kernel(%arg0: memref<48x1536xf32, #tpu.memory_space<vmem>>, %arg1: memref<8x48xf32, #tpu.memory_space<vmem>>, %arg2: memref<8x1xf32, #tpu.memory_space<vmem>>, %arg3: memref<8x1536xf32, #tpu.memory_space<vmem>>) attributes {dimension_semantics = [], scalar_prefetch = 0 : i64, scratch_operands = 0 : i64, tpu.core_type = #tpu.core_type<tc>} {
    %c0 = arith.constant 0 : index
    %c0_0 = arith.constant 0 : index
    %0 = vector.load %arg1[%c0, %c0_0] : memref<8x48xf32, #tpu.memory_space<vmem>>, vector<8x48xf32>
    %c0_1 = arith.constant 0 : index
    %c0_2 = arith.constant 0 : index
    %1 = vector.load %arg0[%c0_1, %c0_2] : memref<48x1536xf32, #tpu.memory_space<vmem>>, vector<48x1536xf32>
    %cst = arith.constant dense<0.000000e+00> : vector<8x1536xf32>
    %2 = tpu.matmul %0, %1, %cst {dimension_numbers = #tpu.dot_dimension_numbers<[1], [0], [0], [1], [0, 0, 1, 1], [], []>} : vector<8x48xf32>, vector<48x1536xf32>, vector<8x1536xf32> -> vector<8x1536xf32>
    %c0_3 = arith.constant 0 : index
    %c0_4 = arith.constant 0 : index
    %3 = vector.load %arg2[%c0_3, %c0_4] : memref<8x1xf32, #tpu.memory_space<vmem>>, vector<8x1xf32>
    %4 = vector.broadcast %3 : vector<8x1xf32> to vector<8x1536xf32>
    %5 = arith.addf %2, %4 : vector<8x1536xf32>
    %cst_5 = arith.constant 0.000000e+00 : f32
    %6 = vector.broadcast %cst_5 : f32 to vector<8x1536xf32>
    %7 = arith.maximumf %5, %6 : vector<8x1536xf32>
    %c0_6 = arith.constant 0 : index
    %c0_7 = arith.constant 0 : index
    %8 = vector.load %arg3[%c0_6, %c0_7] : memref<8x1536xf32, #tpu.memory_space<vmem>>, vector<8x1536xf32>
    tpu.vector_store %arg3[%c0_6, %c0_7], %7 {strides = array<i32>} : memref<8x1536xf32, #tpu.memory_space<vmem>>, vector<8x1536xf32>,
    return
  }
}

module attributes {stable_mosaic.version = 11 : i64} {
  func.func @_conv_gemm_kernel(%arg0: memref<72x384xf32, #tpu.memory_space<vmem>>, %arg1: memref<8x72xf32, #tpu.memory_space<vmem>>, %arg2: memref<8x1xf32, #tpu.memory_space<vmem>>, %arg3: memref<8x384xf32, #tpu.memory_space<vmem>>) attributes {dimension_semantics = [], scalar_prefetch = 0 : i64, scratch_operands = 0 : i64, tpu.core_type = #tpu.core_type<tc>} {
    %c0 = arith.constant 0 : index
    %c0_0 = arith.constant 0 : index
    %0 = vector.load %arg1[%c0, %c0_0] : memref<8x72xf32, #tpu.memory_space<vmem>>, vector<8x72xf32>
    %c0_1 = arith.constant 0 : index
    %c0_2 = arith.constant 0 : index
    %1 = vector.load %arg0[%c0_1, %c0_2] : memref<72x384xf32, #tpu.memory_space<vmem>>, vector<72x384xf32>
    %cst = arith.constant dense<0.000000e+00> : vector<8x384xf32>
    %2 = tpu.matmul %0, %1, %cst {dimension_numbers = #tpu.dot_dimension_numbers<[1], [0], [0], [1], [0, 0, 1, 1], [], []>} : vector<8x72xf32>, vector<72x384xf32>, vector<8x384xf32> -> vector<8x384xf32>
    %c0_3 = arith.constant 0 : index
    %c0_4 = arith.constant 0 : index
    %3 = vector.load %arg2[%c0_3, %c0_4] : memref<8x1xf32, #tpu.memory_space<vmem>>, vector<8x1xf32>
    %4 = vector.broadcast %3 : vector<8x1xf32> to vector<8x384xf32>
    %5 = arith.addf %2, %4 : vector<8x384xf32>
    %cst_5 = arith.constant 0.000000e+00 : f32
    %6 = vector.broadcast %cst_5 : f32 to vector<8x384xf32>
    %7 = arith.maximumf %5, %6 : vector<8x384xf32>
    %c0_6 = arith.constant 0 : index
    %c0_7 = arith.constant 0 : index
    %8 = vector.load %arg3[%c0_6, %c0_7] : memref<8x384xf32, #tpu.memory_space<vmem>>, vector<8x384xf32>
    tpu.vector_store %arg3[%c0_6, %c0_7], %7 {strides = array<i32>} : memref<8x384xf32, #tpu.memory_space<vmem>>, vector<8x384xf32>,
    return
  }
}

module attributes {stable_mosaic.version = 11 : i64} {
  func.func @_tail_kernel(%arg0: memref<6x512xf32, #tpu.memory_space<vmem>>, %arg1: memref<512x32xf32, #tpu.memory_space<vmem>>, %arg2: memref<1x32xf32, #tpu.memory_space<vmem>>, %arg3: memref<32x16xf32, #tpu.memory_space<vmem>>, %arg4: memref<1x16xf32, #tpu.memory_space<vmem>>, %arg5: memref<2x16x48xf32, #tpu.memory_space<vmem>>, %arg6: memref<2x1x48xf32, #tpu.memory_space<vmem>>, %arg7: memref<2x16x16xf32, #tpu.memory_space<vmem>>, %arg8: memref<2x1x16xf32, #tpu.memory_space<vmem>>, %arg9: memref<2x1x16xf32, #tpu.memory_space<vmem>>, %arg10: memref<2x1x16xf32, #tpu.memory_space<vmem>>, %arg11: memref<2x16x64xf32, #tpu.memory_space<vmem>>, %arg12: memref<2x1x64xf32, #tpu.memory_space<vmem>>, %arg13: memref<2x64x16xf32, #tpu.memory_space<vmem>>, %arg14: memref<2x1x16xf32, #tpu.memory_space<vmem>>, %arg15: memref<2x1x16xf32, #tpu.memory_space<vmem>>, %arg16: memref<2x1x16xf32, #tpu.memory_space<vmem>>, %arg17: memref<16x5xf32, #tpu.memory_space<vmem>>, %arg18: memref<1x5xf32, #tpu.memory_space<vmem>>, %arg19: memref<6x5xf32, #tpu.memory_space<vmem>>) attributes {dimension_semantics = [], scalar_prefetch = 0 : i64, scratch_operands = 0 : i64, tpu.core_type = #tpu.core_type<tc>} {
    %c0 = arith.constant 0 : index
    %c0_0 = arith.constant 0 : index
    %0 = vector.load %arg0[%c0, %c0_0] : memref<6x512xf32, #tpu.memory_space<vmem>>, vector<6x512xf32>
    %c0_1 = arith.constant 0 : index
    %c0_2 = arith.constant 0 : index
    %1 = vector.load %arg1[%c0_1, %c0_2] : memref<512x32xf32, #tpu.memory_space<vmem>>, vector<512x32xf32>
    %cst = arith.constant dense<0.000000e+00> : vector<6x32xf32>
    %2 = tpu.matmul %0, %1, %cst {dimension_numbers = #tpu.dot_dimension_numbers<[1], [0], [0], [1], [0, 0, 1, 1], [], []>} : vector<6x512xf32>, vector<512x32xf32>, vector<6x32xf32> -> vector<6x32xf32>
    %c0_3 = arith.constant 0 : index
    %c0_4 = arith.constant 0 : index
    %3 = vector.load %arg2[%c0_3, %c0_4] : memref<1x32xf32, #tpu.memory_space<vmem>>, vector<1x32xf32>
    %4 = vector.broadcast %3 : vector<1x32xf32> to vector<6x32xf32>
    %5 = arith.addf %2, %4 : vector<6x32xf32>
    %cst_5 = arith.constant 0.000000e+00 : f32
    %6 = vector.broadcast %cst_5 : f32 to vector<6x32xf32>
    %7 = arith.maximumf %5, %6 : vector<6x32xf32>
    %c0_6 = arith.constant 0 : index
    %c0_7 = arith.constant 0 : index
    %8 = vector.load %arg3[%c0_6, %c0_7] : memref<32x16xf32, #tpu.memory_space<vmem>>, vector<32x16xf32>
    %cst_8 = arith.constant dense<0.000000e+00> : vector<6x16xf32>
    %9 = tpu.matmul %7, %8, %cst_8 {dimension_numbers = #tpu.dot_dimension_numbers<[1], [0], [0], [1], [0, 0, 1, 1], [], []>} : vector<6x32xf32>, vector<32x16xf32>, vector<6x16xf32> -> vector<6x16xf32>
    %c0_9 = arith.constant 0 : index
    %c0_10 = arith.constant 0 : index
    %10 = vector.load %arg4[%c0_9, %c0_10] : memref<1x16xf32, #tpu.memory_space<vmem>>, vector<1x16xf32>
    %11 = vector.broadcast %10 : vector<1x16xf32> to vector<6x16xf32>
    %12 = arith.addf %9, %11 : vector<6x16xf32>
    %cst_11 = arith.constant 0.000000e+00 : f32
    %13 = vector.broadcast %cst_11 : f32 to vector<6x16xf32>
    %14 = arith.maximumf %12, %13 : vector<6x16xf32>
    %c0_12 = arith.constant 0 : index
    %c0_13 = arith.constant 0 : index
    %c0_14 = arith.constant 0 : index
    %15 = vector.load %arg5[%c0_12, %c0_13, %c0_14] : memref<2x16x48xf32, #tpu.memory_space<vmem>>, vector<1x16x48xf32>
    %16 = vector.shape_cast %15 : vector<1x16x48xf32> to vector<16x48xf32>
    %c0_15 = arith.constant 0 : index
    %c0_16 = arith.constant 0 : index
    %c0_17 = arith.constant 0 : index
    %17 = vector.load %arg6[%c0_15, %c0_16, %c0_17] : memref<2x1x48xf32, #tpu.memory_space<vmem>>, vector<1x1x48xf32>
    %18 = vector.shape_cast %17 : vector<1x1x48xf32> to vector<1x48xf32>
    %c0_18 = arith.constant 0 : index
    %c0_19 = arith.constant 0 : index
    %c0_20 = arith.constant 0 : index
    %19 = vector.load %arg7[%c0_18, %c0_19, %c0_20] : memref<2x16x16xf32, #tpu.memory_space<vmem>>, vector<1x16x16xf32>
    %20 = vector.shape_cast %19 : vector<1x16x16xf32> to vector<16x16xf32>
    %c0_21 = arith.constant 0 : index
    %c0_22 = arith.constant 0 : index
    %c0_23 = arith.constant 0 : index
    %21 = vector.load %arg8[%c0_21, %c0_22, %c0_23] : memref<2x1x16xf32, #tpu.memory_space<vmem>>, vector<1x1x16xf32>
    %22 = vector.shape_cast %21 : vector<1x1x16xf32> to vector<1x16xf32>
    %cst_24 = arith.constant dense<0.000000e+00> : vector<6x48xf32>
    %23 = tpu.matmul %14, %16, %cst_24 {dimension_numbers = #tpu.dot_dimension_numbers<[1], [0], [0], [1], [0, 0, 1, 1], [], []>} : vector<6x16xf32>, vector<16x48xf32>, vector<6x48xf32> -> vector<6x48xf32>
    %24 = vector.broadcast %18 : vector<1x48xf32> to vector<6x48xf32>
    %25 = arith.addf %23, %24 : vector<6x48xf32>
    %26 = vector.extract_strided_slice %25 {offsets = [0, 0], sizes = [6, 16], strides = [1, 1]} : vector<6x48xf32> to vector<6x16xf32>
    %27 = vector.extract_strided_slice %25 {offsets = [0, 16], sizes = [6, 16], strides = [1, 1]} : vector<6x48xf32> to vector<6x16xf32>
    %28 = vector.extract_strided_slice %25 {offsets = [0, 32], sizes = [6, 16], strides = [1, 1]} : vector<6x48xf32> to vector<6x16xf32>
    %cst_25 = arith.constant 0.000000e+00 : f32
    %29 = vector.broadcast %cst_25 : f32 to vector<6x16xf32>
    %30 = vector.extract_strided_slice %26 {offsets = [0, 0], sizes = [6, 4], strides = [1, 1]} : vector<6x16xf32> to vector<6x4xf32>
    %31 = vector.extract_strided_slice %27 {offsets = [0, 0], sizes = [6, 4], strides = [1, 1]} : vector<6x16xf32> to vector<6x4xf32>
    %32 = vector.extract_strided_slice %28 {offsets = [0, 0], sizes = [6, 4], strides = [1, 1]} : vector<6x16xf32> to vector<6x4xf32>
    %cst_26 = arith.constant dense<0.000000e+00> : vector<6x6xf32>
    %33 = tpu.matmul %30, %31, %cst_26 {dimension_numbers = #tpu.dot_dimension_numbers<[1], [1], [0], [0], [0, 0, 1, 0], [], []>} : vector<6x4xf32>, vector<6x4xf32>, vector<6x6xf32> -> vector<6x6xf32>
    %cst_27 = arith.constant 5.000000e-01 : f32
    %34 = vector.broadcast %cst_27 : f32 to vector<6x6xf32>
    %35 = arith.mulf %33, %34 : vector<6x6xf32>
    %cst_28 = arith.constant dense<0xFF800000> : vector<6xf32>
    %36 = vector.multi_reduction <maximumf>, %35, %cst_28 [1] : vector<6x6xf32> to vector<6xf32>
    %37 = vector.shape_cast %36 : vector<6xf32> to vector<6x1xf32>
    %38 = vector.broadcast %37 : vector<6x1xf32> to vector<6x6xf32>
    %39 = arith.subf %35, %38 : vector<6x6xf32>
    %40 = math.exp %39 : vector<6x6xf32>
    %cst_29 = arith.constant dense<0.000000e+00> : vector<6xf32>
    %41 = vector.multi_reduction <add>, %40, %cst_29 [1] : vector<6x6xf32> to vector<6xf32>
    %42 = vector.shape_cast %41 : vector<6xf32> to vector<6x1xf32>
    %43 = tpu.reciprocal %42 {approx = true} : vector<6x1xf32> -> vector<6x1xf32>
    %44 = vector.broadcast %43 : vector<6x1xf32> to vector<6x6xf32>
    %45 = arith.mulf %40, %44 : vector<6x6xf32>
    %cst_30 = arith.constant dense<0.000000e+00> : vector<6x4xf32>
    %46 = tpu.matmul %45, %32, %cst_30 {dimension_numbers = #tpu.dot_dimension_numbers<[1], [0], [0], [1], [0, 0, 1, 1], [], []>} : vector<6x6xf32>, vector<6x4xf32>, vector<6x4xf32> -> vector<6x4xf32>
    %47 = vector.extract_strided_slice %20 {offsets = [0, 0], sizes = [4, 16], strides = [1, 1]} : vector<16x16xf32> to vector<4x16xf32>
    %cst_31 = arith.constant dense<0.000000e+00> : vector<6x16xf32>
    %48 = tpu.matmul %46, %47, %cst_31 {dimension_numbers = #tpu.dot_dimension_numbers<[1], [0], [0], [1], [0, 0, 1, 1], [], []>} : vector<6x4xf32>, vector<4x16xf32>, vector<6x16xf32> -> vector<6x16xf32>
    %49 = arith.addf %29, %48 : vector<6x16xf32>
    %50 = vector.extract_strided_slice %26 {offsets = [0, 4], sizes = [6, 4], strides = [1, 1]} : vector<6x16xf32> to vector<6x4xf32>
    %51 = vector.extract_strided_slice %27 {offsets = [0, 4], sizes = [6, 4], strides = [1, 1]} : vector<6x16xf32> to vector<6x4xf32>
    %52 = vector.extract_strided_slice %28 {offsets = [0, 4], sizes = [6, 4], strides = [1, 1]} : vector<6x16xf32> to vector<6x4xf32>
    %cst_32 = arith.constant dense<0.000000e+00> : vector<6x6xf32>
    %53 = tpu.matmul %50, %51, %cst_32 {dimension_numbers = #tpu.dot_dimension_numbers<[1], [1], [0], [0], [0, 0, 1, 0], [], []>} : vector<6x4xf32>, vector<6x4xf32>, vector<6x6xf32> -> vector<6x6xf32>
    %cst_33 = arith.constant 5.000000e-01 : f32
    %54 = vector.broadcast %cst_33 : f32 to vector<6x6xf32>
    %55 = arith.mulf %53, %54 : vector<6x6xf32>
    %cst_34 = arith.constant dense<0xFF800000> : vector<6xf32>
    %56 = vector.multi_reduction <maximumf>, %55, %cst_34 [1] : vector<6x6xf32> to vector<6xf32>
    %57 = vector.shape_cast %56 : vector<6xf32> to vector<6x1xf32>
    %58 = vector.broadcast %57 : vector<6x1xf32> to vector<6x6xf32>
    %59 = arith.subf %55, %58 : vector<6x6xf32>
    %60 = math.exp %59 : vector<6x6xf32>
    %cst_35 = arith.constant dense<0.000000e+00> : vector<6xf32>
    %61 = vector.multi_reduction <add>, %60, %cst_35 [1] : vector<6x6xf32> to vector<6xf32>
    %62 = vector.shape_cast %61 : vector<6xf32> to vector<6x1xf32>
    %63 = tpu.reciprocal %62 {approx = true} : vector<6x1xf32> -> vector<6x1xf32>
    %64 = vector.broadcast %63 : vector<6x1xf32> to vector<6x6xf32>
    %65 = arith.mulf %60, %64 : vector<6x6xf32>
    %cst_36 = arith.constant dense<0.000000e+00> : vector<6x4xf32>
    %66 = tpu.matmul %65, %52, %cst_36 {dimension_numbers = #tpu.dot_dimension_numbers<[1], [0], [0], [1], [0, 0, 1, 1], [], []>} : vector<6x6xf32>, vector<6x4xf32>, vector<6x4xf32> -> vector<6x4xf32>
    %67 = vector.extract_strided_slice %20 {offsets = [4, 0], sizes = [4, 16], strides = [1, 1]} : vector<16x16xf32> to vector<4x16xf32>
    %cst_37 = arith.constant dense<0.000000e+00> : vector<6x16xf32>
    %68 = tpu.matmul %66, %67, %cst_37 {dimension_numbers = #tpu.dot_dimension_numbers<[1], [0], [0], [1], [0, 0, 1, 1], [], []>} : vector<6x4xf32>, vector<4x16xf32>, vector<6x16xf32> -> vector<6x16xf32>
    %69 = arith.addf %49, %68 : vector<6x16xf32>
    %70 = vector.extract_strided_slice %26 {offsets = [0, 8], sizes = [6, 4], strides = [1, 1]} : vector<6x16xf32> to vector<6x4xf32>
    %71 = vector.extract_strided_slice %27 {offsets = [0, 8], sizes = [6, 4], strides = [1, 1]} : vector<6x16xf32> to vector<6x4xf32>
    %72 = vector.extract_strided_slice %28 {offsets = [0, 8], sizes = [6, 4], strides = [1, 1]} : vector<6x16xf32> to vector<6x4xf32>
    %cst_38 = arith.constant dense<0.000000e+00> : vector<6x6xf32>
    %73 = tpu.matmul %70, %71, %cst_38 {dimension_numbers = #tpu.dot_dimension_numbers<[1], [1], [0], [0], [0, 0, 1, 0], [], []>} : vector<6x4xf32>, vector<6x4xf32>, vector<6x6xf32> -> vector<6x6xf32>
    %cst_39 = arith.constant 5.000000e-01 : f32
    %74 = vector.broadcast %cst_39 : f32 to vector<6x6xf32>
    %75 = arith.mulf %73, %74 : vector<6x6xf32>
    %cst_40 = arith.constant dense<0xFF800000> : vector<6xf32>
    %76 = vector.multi_reduction <maximumf>, %75, %cst_40 [1] : vector<6x6xf32> to vector<6xf32>
    %77 = vector.shape_cast %76 : vector<6xf32> to vector<6x1xf32>
    %78 = vector.broadcast %77 : vector<6x1xf32> to vector<6x6xf32>
    %79 = arith.subf %75, %78 : vector<6x6xf32>
    %80 = math.exp %79 : vector<6x6xf32>
    %cst_41 = arith.constant dense<0.000000e+00> : vector<6xf32>
    %81 = vector.multi_reduction <add>, %80, %cst_41 [1] : vector<6x6xf32> to vector<6xf32>
    %82 = vector.shape_cast %81 : vector<6xf32> to vector<6x1xf32>
    %83 = tpu.reciprocal %82 {approx = true} : vector<6x1xf32> -> vector<6x1xf32>
    %84 = vector.broadcast %83 : vector<6x1xf32> to vector<6x6xf32>
    %85 = arith.mulf %80, %84 : vector<6x6xf32>
    %cst_42 = arith.constant dense<0.000000e+00> : vector<6x4xf32>
    %86 = tpu.matmul %85, %72, %cst_42 {dimension_numbers = #tpu.dot_dimension_numbers<[1], [0], [0], [1], [0, 0, 1, 1], [], []>} : vector<6x6xf32>, vector<6x4xf32>, vector<6x4xf32> -> vector<6x4xf32>
    %87 = vector.extract_strided_slice %20 {offsets = [8, 0], sizes = [4, 16], strides = [1, 1]} : vector<16x16xf32> to vector<4x16xf32>
    %cst_43 = arith.constant dense<0.000000e+00> : vector<6x16xf32>
    %88 = tpu.matmul %86, %87, %cst_43 {dimension_numbers = #tpu.dot_dimension_numbers<[1], [0], [0], [1], [0, 0, 1, 1], [], []>} : vector<6x4xf32>, vector<4x16xf32>, vector<6x16xf32> -> vector<6x16xf32>
    %89 = arith.addf %69, %88 : vector<6x16xf32>
    %90 = vector.extract_strided_slice %26 {offsets = [0, 12], sizes = [6, 4], strides = [1, 1]} : vector<6x16xf32> to vector<6x4xf32>
    %91 = vector.extract_strided_slice %27 {offsets = [0, 12], sizes = [6, 4], strides = [1, 1]} : vector<6x16xf32> to vector<6x4xf32>
    %92 = vector.extract_strided_slice %28 {offsets = [0, 12], sizes = [6, 4], strides = [1, 1]} : vector<6x16xf32> to vector<6x4xf32>
    %cst_44 = arith.constant dense<0.000000e+00> : vector<6x6xf32>
    %93 = tpu.matmul %90, %91, %cst_44 {dimension_numbers = #tpu.dot_dimension_numbers<[1], [1], [0], [0], [0, 0, 1, 0], [], []>} : vector<6x4xf32>, vector<6x4xf32>, vector<6x6xf32> -> vector<6x6xf32>
    %cst_45 = arith.constant 5.000000e-01 : f32
    %94 = vector.broadcast %cst_45 : f32 to vector<6x6xf32>
    %95 = arith.mulf %93, %94 : vector<6x6xf32>
    %cst_46 = arith.constant dense<0xFF800000> : vector<6xf32>
    %96 = vector.multi_reduction <maximumf>, %95, %cst_46 [1] : vector<6x6xf32> to vector<6xf32>
    %97 = vector.shape_cast %96 : vector<6xf32> to vector<6x1xf32>
    %98 = vector.broadcast %97 : vector<6x1xf32> to vector<6x6xf32>
    %99 = arith.subf %95, %98 : vector<6x6xf32>
    %100 = math.exp %99 : vector<6x6xf32>
    %cst_47 = arith.constant dense<0.000000e+00> : vector<6xf32>
    %101 = vector.multi_reduction <add>, %100, %cst_47 [1] : vector<6x6xf32> to vector<6xf32>
    %102 = vector.shape_cast %101 : vector<6xf32> to vector<6x1xf32>
    %103 = tpu.reciprocal %102 {approx = true} : vector<6x1xf32> -> vector<6x1xf32>
    %104 = vector.broadcast %103 : vector<6x1xf32> to vector<6x6xf32>
    %105 = arith.mulf %100, %104 : vector<6x6xf32>
    %cst_48 = arith.constant dense<0.000000e+00> : vector<6x4xf32>
    %106 = tpu.matmul %105, %92, %cst_48 {dimension_numbers = #tpu.dot_dimension_numbers<[1], [0], [0], [1], [0, 0, 1, 1], [], []>} : vector<6x6xf32>, vector<6x4xf32>, vector<6x4xf32> -> vector<6x4xf32>
    %107 = vector.extract_strided_slice %20 {offsets = [12, 0], sizes = [4, 16], strides = [1, 1]} : vector<16x16xf32> to vector<4x16xf32>
    %cst_49 = arith.constant dense<0.000000e+00> : vector<6x16xf32>
    %108 = tpu.matmul %106, %107, %cst_49 {dimension_numbers = #tpu.dot_dimension_numbers<[1], [0], [0], [1], [0, 0, 1, 1], [], []>} : vector<6x4xf32>, vector<4x16xf32>, vector<6x16xf32> -> vector<6x16xf32>
    %109 = arith.addf %89, %108 : vector<6x16xf32>
    %110 = vector.broadcast %22 : vector<1x16xf32> to vector<6x16xf32>
    %111 = arith.addf %109, %110 : vector<6x16xf32>
    %112 = arith.addf %14, %111 : vector<6x16xf32>
    %cst_50 = arith.constant dense<0.000000e+00> : vector<6xf32>
    %113 = vector.multi_reduction <add>, %112, %cst_50 [1] : vector<6x16xf32> to vector<6xf32>
    %114 = vector.shape_cast %113 : vector<6xf32> to vector<6x1xf32>
    %cst_51 = arith.constant 1.600000e+01 : f32
    %115 = vector.broadcast %cst_51 : f32 to vector<6x1xf32>
    %116 = arith.divf %114, %115 : vector<6x1xf32>
    %117 = vector.broadcast %116 : vector<6x1xf32> to vector<6x16xf32>
    %118 = arith.subf %112, %117 : vector<6x16xf32>
    %119 = arith.mulf %118, %118 : vector<6x16xf32>
    %cst_52 = arith.constant dense<0.000000e+00> : vector<6xf32>
    %120 = vector.multi_reduction <add>, %119, %cst_52 [1] : vector<6x16xf32> to vector<6xf32>
    %121 = vector.shape_cast %120 : vector<6xf32> to vector<6x1xf32>
    %cst_53 = arith.constant 1.600000e+01 : f32
    %122 = vector.broadcast %cst_53 : f32 to vector<6x1xf32>
    %123 = arith.divf %121, %122 : vector<6x1xf32>
    %124 = vector.broadcast %116 : vector<6x1xf32> to vector<6x16xf32>
    %125 = arith.subf %112, %124 : vector<6x16xf32>
    %cst_54 = arith.constant 9.99999974E-6 : f32
    %126 = vector.broadcast %cst_54 : f32 to vector<6x1xf32>
    %127 = arith.addf %123, %126 : vector<6x1xf32>
    %128 = math.rsqrt %127 : vector<6x1xf32>
    %129 = vector.broadcast %128 : vector<6x1xf32> to vector<6x16xf32>
    %130 = arith.mulf %125, %129 : vector<6x16xf32>
    %c0_55 = arith.constant 0 : index
    %c0_56 = arith.constant 0 : index
    %c0_57 = arith.constant 0 : index
    %131 = vector.load %arg9[%c0_55, %c0_56, %c0_57] : memref<2x1x16xf32, #tpu.memory_space<vmem>>, vector<1x1x16xf32>
    %132 = vector.shape_cast %131 : vector<1x1x16xf32> to vector<1x16xf32>
    %133 = vector.broadcast %132 : vector<1x16xf32> to vector<6x16xf32>
    %134 = arith.mulf %130, %133 : vector<6x16xf32>
    %c0_58 = arith.constant 0 : index
    %c0_59 = arith.constant 0 : index
    %c0_60 = arith.constant 0 : index
    %135 = vector.load %arg10[%c0_58, %c0_59, %c0_60] : memref<2x1x16xf32, #tpu.memory_space<vmem>>, vector<1x1x16xf32>
    %136 = vector.shape_cast %135 : vector<1x1x16xf32> to vector<1x16xf32>
    %137 = vector.broadcast %136 : vector<1x16xf32> to vector<6x16xf32>
    %138 = arith.addf %134, %137 : vector<6x16xf32>
    %c0_61 = arith.constant 0 : index
    %c0_62 = arith.constant 0 : index
    %c0_63 = arith.constant 0 : index
    %139 = vector.load %arg11[%c0_61, %c0_62, %c0_63] : memref<2x16x64xf32, #tpu.memory_space<vmem>>, vector<1x16x64xf32>
    %140 = vector.shape_cast %139 : vector<1x16x64xf32> to vector<16x64xf32>
    %cst_64 = arith.constant dense<0.000000e+00> : vector<6x64xf32>
    %141 = tpu.matmul %138, %140, %cst_64 {dimension_numbers = #tpu.dot_dimension_numbers<[1], [0], [0], [1], [0, 0, 1, 1], [], []>} : vector<6x16xf32>, vector<16x64xf32>, vector<6x64xf32> -> vector<6x64xf32>
    %c0_65 = arith.constant 0 : index
    %c0_66 = arith.constant 0 : index
    %c0_67 = arith.constant 0 : index
    %142 = vector.load %arg12[%c0_65, %c0_66, %c0_67] : memref<2x1x64xf32, #tpu.memory_space<vmem>>, vector<1x1x64xf32>
    %143 = vector.shape_cast %142 : vector<1x1x64xf32> to vector<1x64xf32>
    %144 = vector.broadcast %143 : vector<1x64xf32> to vector<6x64xf32>
    %145 = arith.addf %141, %144 : vector<6x64xf32>
    %cst_68 = arith.constant 0.000000e+00 : f32
    %146 = vector.broadcast %cst_68 : f32 to vector<6x64xf32>
    %147 = arith.maximumf %145, %146 : vector<6x64xf32>
    %c0_69 = arith.constant 0 : index
    %c0_70 = arith.constant 0 : index
    %c0_71 = arith.constant 0 : index
    %148 = vector.load %arg13[%c0_69, %c0_70, %c0_71] : memref<2x64x16xf32, #tpu.memory_space<vmem>>, vector<1x64x16xf32>
    %149 = vector.shape_cast %148 : vector<1x64x16xf32> to vector<64x16xf32>
    %cst_72 = arith.constant dense<0.000000e+00> : vector<6x16xf32>
    %150 = tpu.matmul %147, %149, %cst_72 {dimension_numbers = #tpu.dot_dimension_numbers<[1], [0], [0], [1], [0, 0, 1, 1], [], []>} : vector<6x64xf32>, vector<64x16xf32>, vector<6x16xf32> -> vector<6x16xf32>
    %c0_73 = arith.constant 0 : index
    %c0_74 = arith.constant 0 : index
    %c0_75 = arith.constant 0 : index
    %151 = vector.load %arg14[%c0_73, %c0_74, %c0_75] : memref<2x1x16xf32, #tpu.memory_space<vmem>>, vector<1x1x16xf32>
    %152 = vector.shape_cast %151 : vector<1x1x16xf32> to vector<1x16xf32>
    %153 = vector.broadcast %152 : vector<1x16xf32> to vector<6x16xf32>
    %154 = arith.addf %150, %153 : vector<6x16xf32>
    %155 = arith.addf %138, %154 : vector<6x16xf32>
    %cst_76 = arith.constant dense<0.000000e+00> : vector<6xf32>
    %156 = vector.multi_reduction <add>, %155, %cst_76 [1] : vector<6x16xf32> to vector<6xf32>
    %157 = vector.shape_cast %156 : vector<6xf32> to vector<6x1xf32>
    %cst_77 = arith.constant 1.600000e+01 : f32
    %158 = vector.broadcast %cst_77 : f32 to vector<6x1xf32>
    %159 = arith.divf %157, %158 : vector<6x1xf32>
    %160 = vector.broadcast %159 : vector<6x1xf32> to vector<6x16xf32>
    %161 = arith.subf %155, %160 : vector<6x16xf32>
    %162 = arith.mulf %161, %161 : vector<6x16xf32>
    %cst_78 = arith.constant dense<0.000000e+00> : vector<6xf32>
    %163 = vector.multi_reduction <add>, %162, %cst_78 [1] : vector<6x16xf32> to vector<6xf32>
    %164 = vector.shape_cast %163 : vector<6xf32> to vector<6x1xf32>
    %cst_79 = arith.constant 1.600000e+01 : f32
    %165 = vector.broadcast %cst_79 : f32 to vector<6x1xf32>
    %166 = arith.divf %164, %165 : vector<6x1xf32>
    %167 = vector.broadcast %159 : vector<6x1xf32> to vector<6x16xf32>
    %168 = arith.subf %155, %167 : vector<6x16xf32>
    %cst_80 = arith.constant 9.99999974E-6 : f32
    %169 = vector.broadcast %cst_80 : f32 to vector<6x1xf32>
    %170 = arith.addf %166, %169 : vector<6x1xf32>
    %171 = math.rsqrt %170 : vector<6x1xf32>
    %172 = vector.broadcast %171 : vector<6x1xf32> to vector<6x16xf32>
    %173 = arith.mulf %168, %172 : vector<6x16xf32>
    %c0_81 = arith.constant 0 : index
    %c0_82 = arith.constant 0 : index
    %c0_83 = arith.constant 0 : index
    %174 = vector.load %arg15[%c0_81, %c0_82, %c0_83] : memref<2x1x16xf32, #tpu.memory_space<vmem>>, vector<1x1x16xf32>
    %175 = vector.shape_cast %174 : vector<1x1x16xf32> to vector<1x16xf32>
    %176 = vector.broadcast %175 : vector<1x16xf32> to vector<6x16xf32>
    %177 = arith.mulf %173, %176 : vector<6x16xf32>
    %c0_84 = arith.constant 0 : index
    %c0_85 = arith.constant 0 : index
    %c0_86 = arith.constant 0 : index
    %178 = vector.load %arg16[%c0_84, %c0_85, %c0_86] : memref<2x1x16xf32, #tpu.memory_space<vmem>>, vector<1x1x16xf32>
    %179 = vector.shape_cast %178 : vector<1x1x16xf32> to vector<1x16xf32>
    %180 = vector.broadcast %179 : vector<1x16xf32> to vector<6x16xf32>
    %181 = arith.addf %177, %180 : vector<6x16xf32>
    %c1 = arith.constant 1 : index
    %c0_87 = arith.constant 0 : index
    %c0_88 = arith.constant 0 : index
    %182 = vector.load %arg5[%c1, %c0_87, %c0_88] : memref<2x16x48xf32, #tpu.memory_space<vmem>>, vector<1x16x48xf32>
    %183 = vector.shape_cast %182 : vector<1x16x48xf32> to vector<16x48xf32>
    %c1_89 = arith.constant 1 : index
    %c0_90 = arith.constant 0 : index
    %c0_91 = arith.constant 0 : index
    %184 = vector.load %arg6[%c1_89, %c0_90, %c0_91] : memref<2x1x48xf32, #tpu.memory_space<vmem>>, vector<1x1x48xf32>
    %185 = vector.shape_cast %184 : vector<1x1x48xf32> to vector<1x48xf32>
    %c1_92 = arith.constant 1 : index
    %c0_93 = arith.constant 0 : index
    %c0_94 = arith.constant 0 : index
    %186 = vector.load %arg7[%c1_92, %c0_93, %c0_94] : memref<2x16x16xf32, #tpu.memory_space<vmem>>, vector<1x16x16xf32>
    %187 = vector.shape_cast %186 : vector<1x16x16xf32> to vector<16x16xf32>
    %c1_95 = arith.constant 1 : index
    %c0_96 = arith.constant 0 : index
    %c0_97 = arith.constant 0 : index
    %188 = vector.load %arg8[%c1_95, %c0_96, %c0_97] : memref<2x1x16xf32, #tpu.memory_space<vmem>>, vector<1x1x16xf32>
    %189 = vector.shape_cast %188 : vector<1x1x16xf32> to vector<1x16xf32>
    %cst_98 = arith.constant dense<0.000000e+00> : vector<6x48xf32>
    %190 = tpu.matmul %181, %183, %cst_98 {dimension_numbers = #tpu.dot_dimension_numbers<[1], [0], [0], [1], [0, 0, 1, 1], [], []>} : vector<6x16xf32>, vector<16x48xf32>, vector<6x48xf32> -> vector<6x48xf32>
    %191 = vector.broadcast %185 : vector<1x48xf32> to vector<6x48xf32>
    %192 = arith.addf %190, %191 : vector<6x48xf32>
    %193 = vector.extract_strided_slice %192 {offsets = [0, 0], sizes = [6, 16], strides = [1, 1]} : vector<6x48xf32> to vector<6x16xf32>
    %194 = vector.extract_strided_slice %192 {offsets = [0, 16], sizes = [6, 16], strides = [1, 1]} : vector<6x48xf32> to vector<6x16xf32>
    %195 = vector.extract_strided_slice %192 {offsets = [0, 32], sizes = [6, 16], strides = [1, 1]} : vector<6x48xf32> to vector<6x16xf32>
    %cst_99 = arith.constant 0.000000e+00 : f32
    %196 = vector.broadcast %cst_99 : f32 to vector<6x16xf32>
    %197 = vector.extract_strided_slice %193 {offsets = [0, 0], sizes = [6, 4], strides = [1, 1]} : vector<6x16xf32> to vector<6x4xf32>
    %198 = vector.extract_strided_slice %194 {offsets = [0, 0], sizes = [6, 4], strides = [1, 1]} : vector<6x16xf32> to vector<6x4xf32>
    %199 = vector.extract_strided_slice %195 {offsets = [0, 0], sizes = [6, 4], strides = [1, 1]} : vector<6x16xf32> to vector<6x4xf32>
    %cst_100 = arith.constant dense<0.000000e+00> : vector<6x6xf32>
    %200 = tpu.matmul %197, %198, %cst_100 {dimension_numbers = #tpu.dot_dimension_numbers<[1], [1], [0], [0], [0, 0, 1, 0], [], []>} : vector<6x4xf32>, vector<6x4xf32>, vector<6x6xf32> -> vector<6x6xf32>
    %cst_101 = arith.constant 5.000000e-01 : f32
    %201 = vector.broadcast %cst_101 : f32 to vector<6x6xf32>
    %202 = arith.mulf %200, %201 : vector<6x6xf32>
    %cst_102 = arith.constant dense<0xFF800000> : vector<6xf32>
    %203 = vector.multi_reduction <maximumf>, %202, %cst_102 [1] : vector<6x6xf32> to vector<6xf32>
    %204 = vector.shape_cast %203 : vector<6xf32> to vector<6x1xf32>
    %205 = vector.broadcast %204 : vector<6x1xf32> to vector<6x6xf32>
    %206 = arith.subf %202, %205 : vector<6x6xf32>
    %207 = math.exp %206 : vector<6x6xf32>
    %cst_103 = arith.constant dense<0.000000e+00> : vector<6xf32>
    %208 = vector.multi_reduction <add>, %207, %cst_103 [1] : vector<6x6xf32> to vector<6xf32>
    %209 = vector.shape_cast %208 : vector<6xf32> to vector<6x1xf32>
    %210 = tpu.reciprocal %209 {approx = true} : vector<6x1xf32> -> vector<6x1xf32>
    %211 = vector.broadcast %210 : vector<6x1xf32> to vector<6x6xf32>
    %212 = arith.mulf %207, %211 : vector<6x6xf32>
    %cst_104 = arith.constant dense<0.000000e+00> : vector<6x4xf32>
    %213 = tpu.matmul %212, %199, %cst_104 {dimension_numbers = #tpu.dot_dimension_numbers<[1], [0], [0], [1], [0, 0, 1, 1], [], []>} : vector<6x6xf32>, vector<6x4xf32>, vector<6x4xf32> -> vector<6x4xf32>
    %214 = vector.extract_strided_slice %187 {offsets = [0, 0], sizes = [4, 16], strides = [1, 1]} : vector<16x16xf32> to vector<4x16xf32>
    %cst_105 = arith.constant dense<0.000000e+00> : vector<6x16xf32>
    %215 = tpu.matmul %213, %214, %cst_105 {dimension_numbers = #tpu.dot_dimension_numbers<[1], [0], [0], [1], [0, 0, 1, 1], [], []>} : vector<6x4xf32>, vector<4x16xf32>, vector<6x16xf32> -> vector<6x16xf32>
    %216 = arith.addf %196, %215 : vector<6x16xf32>
    %217 = vector.extract_strided_slice %193 {offsets = [0, 4], sizes = [6, 4], strides = [1, 1]} : vector<6x16xf32> to vector<6x4xf32>
    %218 = vector.extract_strided_slice %194 {offsets = [0, 4], sizes = [6, 4], strides = [1, 1]} : vector<6x16xf32> to vector<6x4xf32>
    %219 = vector.extract_strided_slice %195 {offsets = [0, 4], sizes = [6, 4], strides = [1, 1]} : vector<6x16xf32> to vector<6x4xf32>
    %cst_106 = arith.constant dense<0.000000e+00> : vector<6x6xf32>
    %220 = tpu.matmul %217, %218, %cst_106 {dimension_numbers = #tpu.dot_dimension_numbers<[1], [1], [0], [0], [0, 0, 1, 0], [], []>} : vector<6x4xf32>, vector<6x4xf32>, vector<6x6xf32> -> vector<6x6xf32>
    %cst_107 = arith.constant 5.000000e-01 : f32
    %221 = vector.broadcast %cst_107 : f32 to vector<6x6xf32>
    %222 = arith.mulf %220, %221 : vector<6x6xf32>
    %cst_108 = arith.constant dense<0xFF800000> : vector<6xf32>
    %223 = vector.multi_reduction <maximumf>, %222, %cst_108 [1] : vector<6x6xf32> to vector<6xf32>
    %224 = vector.shape_cast %223 : vector<6xf32> to vector<6x1xf32>
    %225 = vector.broadcast %224 : vector<6x1xf32> to vector<6x6xf32>
    %226 = arith.subf %222, %225 : vector<6x6xf32>
    %227 = math.exp %226 : vector<6x6xf32>
    %cst_109 = arith.constant dense<0.000000e+00> : vector<6xf32>
    %228 = vector.multi_reduction <add>, %227, %cst_109 [1] : vector<6x6xf32> to vector<6xf32>
    %229 = vector.shape_cast %228 : vector<6xf32> to vector<6x1xf32>
    %230 = tpu.reciprocal %229 {approx = true} : vector<6x1xf32> -> vector<6x1xf32>
    %231 = vector.broadcast %230 : vector<6x1xf32> to vector<6x6xf32>
    %232 = arith.mulf %227, %231 : vector<6x6xf32>
    %cst_110 = arith.constant dense<0.000000e+00> : vector<6x4xf32>
    %233 = tpu.matmul %232, %219, %cst_110 {dimension_numbers = #tpu.dot_dimension_numbers<[1], [0], [0], [1], [0, 0, 1, 1], [], []>} : vector<6x6xf32>, vector<6x4xf32>, vector<6x4xf32> -> vector<6x4xf32>
    %234 = vector.extract_strided_slice %187 {offsets = [4, 0], sizes = [4, 16], strides = [1, 1]} : vector<16x16xf32> to vector<4x16xf32>
    %cst_111 = arith.constant dense<0.000000e+00> : vector<6x16xf32>
    %235 = tpu.matmul %233, %234, %cst_111 {dimension_numbers = #tpu.dot_dimension_numbers<[1], [0], [0], [1], [0, 0, 1, 1], [], []>} : vector<6x4xf32>, vector<4x16xf32>, vector<6x16xf32> -> vector<6x16xf32>
    %236 = arith.addf %216, %235 : vector<6x16xf32>
    %237 = vector.extract_strided_slice %193 {offsets = [0, 8], sizes = [6, 4], strides = [1, 1]} : vector<6x16xf32> to vector<6x4xf32>
    %238 = vector.extract_strided_slice %194 {offsets = [0, 8], sizes = [6, 4], strides = [1, 1]} : vector<6x16xf32> to vector<6x4xf32>
    %239 = vector.extract_strided_slice %195 {offsets = [0, 8], sizes = [6, 4], strides = [1, 1]} : vector<6x16xf32> to vector<6x4xf32>
    %cst_112 = arith.constant dense<0.000000e+00> : vector<6x6xf32>
    %240 = tpu.matmul %237, %238, %cst_112 {dimension_numbers = #tpu.dot_dimension_numbers<[1], [1], [0], [0], [0, 0, 1, 0], [], []>} : vector<6x4xf32>, vector<6x4xf32>, vector<6x6xf32> -> vector<6x6xf32>
    %cst_113 = arith.constant 5.000000e-01 : f32
    %241 = vector.broadcast %cst_113 : f32 to vector<6x6xf32>
    %242 = arith.mulf %240, %241 : vector<6x6xf32>
    %cst_114 = arith.constant dense<0xFF800000> : vector<6xf32>
    %243 = vector.multi_reduction <maximumf>, %242, %cst_114 [1] : vector<6x6xf32> to vector<6xf32>
    %244 = vector.shape_cast %243 : vector<6xf32> to vector<6x1xf32>
    %245 = vector.broadcast %244 : vector<6x1xf32> to vector<6x6xf32>
    %246 = arith.subf %242, %245 : vector<6x6xf32>
    %247 = math.exp %246 : vector<6x6xf32>
    %cst_115 = arith.constant dense<0.000000e+00> : vector<6xf32>
    %248 = vector.multi_reduction <add>, %247, %cst_115 [1] : vector<6x6xf32> to vector<6xf32>
    %249 = vector.shape_cast %248 : vector<6xf32> to vector<6x1xf32>
    %250 = tpu.reciprocal %249 {approx = true} : vector<6x1xf32> -> vector<6x1xf32>
    %251 = vector.broadcast %250 : vector<6x1xf32> to vector<6x6xf32>
    %252 = arith.mulf %247, %251 : vector<6x6xf32>
    %cst_116 = arith.constant dense<0.000000e+00> : vector<6x4xf32>
    %253 = tpu.matmul %252, %239, %cst_116 {dimension_numbers = #tpu.dot_dimension_numbers<[1], [0], [0], [1], [0, 0, 1, 1], [], []>} : vector<6x6xf32>, vector<6x4xf32>, vector<6x4xf32> -> vector<6x4xf32>
    %254 = vector.extract_strided_slice %187 {offsets = [8, 0], sizes = [4, 16], strides = [1, 1]} : vector<16x16xf32> to vector<4x16xf32>
    %cst_117 = arith.constant dense<0.000000e+00> : vector<6x16xf32>
    %255 = tpu.matmul %253, %254, %cst_117 {dimension_numbers = #tpu.dot_dimension_numbers<[1], [0], [0], [1], [0, 0, 1, 1], [], []>} : vector<6x4xf32>, vector<4x16xf32>, vector<6x16xf32> -> vector<6x16xf32>
    %256 = arith.addf %236, %255 : vector<6x16xf32>
    %257 = vector.extract_strided_slice %193 {offsets = [0, 12], sizes = [6, 4], strides = [1, 1]} : vector<6x16xf32> to vector<6x4xf32>
    %258 = vector.extract_strided_slice %194 {offsets = [0, 12], sizes = [6, 4], strides = [1, 1]} : vector<6x16xf32> to vector<6x4xf32>
    %259 = vector.extract_strided_slice %195 {offsets = [0, 12], sizes = [6, 4], strides = [1, 1]} : vector<6x16xf32> to vector<6x4xf32>
    %cst_118 = arith.constant dense<0.000000e+00> : vector<6x6xf32>
    %260 = tpu.matmul %257, %258, %cst_118 {dimension_numbers = #tpu.dot_dimension_numbers<[1], [1], [0], [0], [0, 0, 1, 0], [], []>} : vector<6x4xf32>, vector<6x4xf32>, vector<6x6xf32> -> vector<6x6xf32>
    %cst_119 = arith.constant 5.000000e-01 : f32
    %261 = vector.broadcast %cst_119 : f32 to vector<6x6xf32>
    %262 = arith.mulf %260, %261 : vector<6x6xf32>
    %cst_120 = arith.constant dense<0xFF800000> : vector<6xf32>
    %263 = vector.multi_reduction <maximumf>, %262, %cst_120 [1] : vector<6x6xf32> to vector<6xf32>
    %264 = vector.shape_cast %263 : vector<6xf32> to vector<6x1xf32>
    %265 = vector.broadcast %264 : vector<6x1xf32> to vector<6x6xf32>
    %266 = arith.subf %262, %265 : vector<6x6xf32>
    %267 = math.exp %266 : vector<6x6xf32>
    %cst_121 = arith.constant dense<0.000000e+00> : vector<6xf32>
    %268 = vector.multi_reduction <add>, %267, %cst_121 [1] : vector<6x6xf32> to vector<6xf32>
    %269 = vector.shape_cast %268 : vector<6xf32> to vector<6x1xf32>
    %270 = tpu.reciprocal %269 {approx = true} : vector<6x1xf32> -> vector<6x1xf32>
    %271 = vector.broadcast %270 : vector<6x1xf32> to vector<6x6xf32>
    %272 = arith.mulf %267, %271 : vector<6x6xf32>
    %cst_122 = arith.constant dense<0.000000e+00> : vector<6x4xf32>
    %273 = tpu.matmul %272, %259, %cst_122 {dimension_numbers = #tpu.dot_dimension_numbers<[1], [0], [0], [1], [0, 0, 1, 1], [], []>} : vector<6x6xf32>, vector<6x4xf32>, vector<6x4xf32> -> vector<6x4xf32>
    %274 = vector.extract_strided_slice %187 {offsets = [12, 0], sizes = [4, 16], strides = [1, 1]} : vector<16x16xf32> to vector<4x16xf32>
    %cst_123 = arith.constant dense<0.000000e+00> : vector<6x16xf32>
    %275 = tpu.matmul %273, %274, %cst_123 {dimension_numbers = #tpu.dot_dimension_numbers<[1], [0], [0], [1], [0, 0, 1, 1], [], []>} : vector<6x4xf32>, vector<4x16xf32>, vector<6x16xf32> -> vector<6x16xf32>
    %276 = arith.addf %256, %275 : vector<6x16xf32>
    %277 = vector.broadcast %189 : vector<1x16xf32> to vector<6x16xf32>
    %278 = arith.addf %276, %277 : vector<6x16xf32>
    %279 = arith.addf %181, %278 : vector<6x16xf32>
    %cst_124 = arith.constant dense<0.000000e+00> : vector<6xf32>
    %280 = vector.multi_reduction <add>, %279, %cst_124 [1] : vector<6x16xf32> to vector<6xf32>
    %281 = vector.shape_cast %280 : vector<6xf32> to vector<6x1xf32>
    %cst_125 = arith.constant 1.600000e+01 : f32
    %282 = vector.broadcast %cst_125 : f32 to vector<6x1xf32>
    %283 = arith.divf %281, %282 : vector<6x1xf32>
    %284 = vector.broadcast %283 : vector<6x1xf32> to vector<6x16xf32>
    %285 = arith.subf %279, %284 : vector<6x16xf32>
    %286 = arith.mulf %285, %285 : vector<6x16xf32>
    %cst_126 = arith.constant dense<0.000000e+00> : vector<6xf32>
    %287 = vector.multi_reduction <add>, %286, %cst_126 [1] : vector<6x16xf32> to vector<6xf32>
    %288 = vector.shape_cast %287 : vector<6xf32> to vector<6x1xf32>
    %cst_127 = arith.constant 1.600000e+01 : f32
    %289 = vector.broadcast %cst_127 : f32 to vector<6x1xf32>
    %290 = arith.divf %288, %289 : vector<6x1xf32>
    %291 = vector.broadcast %283 : vector<6x1xf32> to vector<6x16xf32>
    %292 = arith.subf %279, %291 : vector<6x16xf32>
    %cst_128 = arith.constant 9.99999974E-6 : f32
    %293 = vector.broadcast %cst_128 : f32 to vector<6x1xf32>
    %294 = arith.addf %290, %293 : vector<6x1xf32>
    %295 = math.rsqrt %294 : vector<6x1xf32>
    %296 = vector.broadcast %295 : vector<6x1xf32> to vector<6x16xf32>
    %297 = arith.mulf %292, %296 : vector<6x16xf32>
    %c1_129 = arith.constant 1 : index
    %c0_130 = arith.constant 0 : index
    %c0_131 = arith.constant 0 : index
    %298 = vector.load %arg9[%c1_129, %c0_130, %c0_131] : memref<2x1x16xf32, #tpu.memory_space<vmem>>, vector<1x1x16xf32>
    %299 = vector.shape_cast %298 : vector<1x1x16xf32> to vector<1x16xf32>
    %300 = vector.broadcast %299 : vector<1x16xf32> to vector<6x16xf32>
    %301 = arith.mulf %297, %300 : vector<6x16xf32>
    %c1_132 = arith.constant 1 : index
    %c0_133 = arith.constant 0 : index
    %c0_134 = arith.constant 0 : index
    %302 = vector.load %arg10[%c1_132, %c0_133, %c0_134] : memref<2x1x16xf32, #tpu.memory_space<vmem>>, vector<1x1x16xf32>
    %303 = vector.shape_cast %302 : vector<1x1x16xf32> to vector<1x16xf32>
    %304 = vector.broadcast %303 : vector<1x16xf32> to vector<6x16xf32>
    %305 = arith.addf %301, %304 : vector<6x16xf32>
    %c1_135 = arith.constant 1 : index
    %c0_136 = arith.constant 0 : index
    %c0_137 = arith.constant 0 : index
    %306 = vector.load %arg11[%c1_135, %c0_136, %c0_137] : memref<2x16x64xf32, #tpu.memory_space<vmem>>, vector<1x16x64xf32>
    %307 = vector.shape_cast %306 : vector<1x16x64xf32> to vector<16x64xf32>
    %cst_138 = arith.constant dense<0.000000e+00> : vector<6x64xf32>
    %308 = tpu.matmul %305, %307, %cst_138 {dimension_numbers = #tpu.dot_dimension_numbers<[1], [0], [0], [1], [0, 0, 1, 1], [], []>} : vector<6x16xf32>, vector<16x64xf32>, vector<6x64xf32> -> vector<6x64xf32>
    %c1_139 = arith.constant 1 : index
    %c0_140 = arith.constant 0 : index
    %c0_141 = arith.constant 0 : index
    %309 = vector.load %arg12[%c1_139, %c0_140, %c0_141] : memref<2x1x64xf32, #tpu.memory_space<vmem>>, vector<1x1x64xf32>
    %310 = vector.shape_cast %309 : vector<1x1x64xf32> to vector<1x64xf32>
    %311 = vector.broadcast %310 : vector<1x64xf32> to vector<6x64xf32>
    %312 = arith.addf %308, %311 : vector<6x64xf32>
    %cst_142 = arith.constant 0.000000e+00 : f32
    %313 = vector.broadcast %cst_142 : f32 to vector<6x64xf32>
    %314 = arith.maximumf %312, %313 : vector<6x64xf32>
    %c1_143 = arith.constant 1 : index
    %c0_144 = arith.constant 0 : index
    %c0_145 = arith.constant 0 : index
    %315 = vector.load %arg13[%c1_143, %c0_144, %c0_145] : memref<2x64x16xf32, #tpu.memory_space<vmem>>, vector<1x64x16xf32>
    %316 = vector.shape_cast %315 : vector<1x64x16xf32> to vector<64x16xf32>
    %cst_146 = arith.constant dense<0.000000e+00> : vector<6x16xf32>
    %317 = tpu.matmul %314, %316, %cst_146 {dimension_numbers = #tpu.dot_dimension_numbers<[1], [0], [0], [1], [0, 0, 1, 1], [], []>} : vector<6x64xf32>, vector<64x16xf32>, vector<6x16xf32> -> vector<6x16xf32>
    %c1_147 = arith.constant 1 : index
    %c0_148 = arith.constant 0 : index
    %c0_149 = arith.constant 0 : index
    %318 = vector.load %arg14[%c1_147, %c0_148, %c0_149] : memref<2x1x16xf32, #tpu.memory_space<vmem>>, vector<1x1x16xf32>
    %319 = vector.shape_cast %318 : vector<1x1x16xf32> to vector<1x16xf32>
    %320 = vector.broadcast %319 : vector<1x16xf32> to vector<6x16xf32>
    %321 = arith.addf %317, %320 : vector<6x16xf32>
    %322 = arith.addf %305, %321 : vector<6x16xf32>
    %cst_150 = arith.constant dense<0.000000e+00> : vector<6xf32>
    %323 = vector.multi_reduction <add>, %322, %cst_150 [1] : vector<6x16xf32> to vector<6xf32>
    %324 = vector.shape_cast %323 : vector<6xf32> to vector<6x1xf32>
    %cst_151 = arith.constant 1.600000e+01 : f32
    %325 = vector.broadcast %cst_151 : f32 to vector<6x1xf32>
    %326 = arith.divf %324, %325 : vector<6x1xf32>
    %327 = vector.broadcast %326 : vector<6x1xf32> to vector<6x16xf32>
    %328 = arith.subf %322, %327 : vector<6x16xf32>
    %329 = arith.mulf %328, %328 : vector<6x16xf32>
    %cst_152 = arith.constant dense<0.000000e+00> : vector<6xf32>
    %330 = vector.multi_reduction <add>, %329, %cst_152 [1] : vector<6x16xf32> to vector<6xf32>
    %331 = vector.shape_cast %330 : vector<6xf32> to vector<6x1xf32>
    %cst_153 = arith.constant 1.600000e+01 : f32
    %332 = vector.broadcast %cst_153 : f32 to vector<6x1xf32>
    %333 = arith.divf %331, %332 : vector<6x1xf32>
    %334 = vector.broadcast %326 : vector<6x1xf32> to vector<6x16xf32>
    %335 = arith.subf %322, %334 : vector<6x16xf32>
    %cst_154 = arith.constant 9.99999974E-6 : f32
    %336 = vector.broadcast %cst_154 : f32 to vector<6x1xf32>
    %337 = arith.addf %333, %336 : vector<6x1xf32>
    %338 = math.rsqrt %337 : vector<6x1xf32>
    %339 = vector.broadcast %338 : vector<6x1xf32> to vector<6x16xf32>
    %340 = arith.mulf %335, %339 : vector<6x16xf32>
    %c1_155 = arith.constant 1 : index
    %c0_156 = arith.constant 0 : index
    %c0_157 = arith.constant 0 : index
    %341 = vector.load %arg15[%c1_155, %c0_156, %c0_157] : memref<2x1x16xf32, #tpu.memory_space<vmem>>, vector<1x1x16xf32>
    %342 = vector.shape_cast %341 : vector<1x1x16xf32> to vector<1x16xf32>
    %343 = vector.broadcast %342 : vector<1x16xf32> to vector<6x16xf32>
    %344 = arith.mulf %340, %343 : vector<6x16xf32>
    %c1_158 = arith.constant 1 : index
    %c0_159 = arith.constant 0 : index
    %c0_160 = arith.constant 0 : index
    %345 = vector.load %arg16[%c1_158, %c0_159, %c0_160] : memref<2x1x16xf32, #tpu.memory_space<vmem>>, vector<1x1x16xf32>
    %346 = vector.shape_cast %345 : vector<1x1x16xf32> to vector<1x16xf32>
    %347 = vector.broadcast %346 : vector<1x16xf32> to vector<6x16xf32>
    %348 = arith.addf %344, %347 : vector<6x16xf32>
    %c0_161 = arith.constant 0 : index
    %c0_162 = arith.constant 0 : index
    %349 = vector.load %arg17[%c0_161, %c0_162] : memref<16x5xf32, #tpu.memory_space<vmem>>, vector<16x5xf32>
    %cst_163 = arith.constant dense<0.000000e+00> : vector<6x5xf32>
    %350 = tpu.matmul %348, %349, %cst_163 {dimension_numbers = #tpu.dot_dimension_numbers<[1], [0], [0], [1], [0, 0, 1, 1], [], []>} : vector<6x16xf32>, vector<16x5xf32>, vector<6x5xf32> -> vector<6x5xf32>
    %c0_164 = arith.constant 0 : index
    %c0_165 = arith.constant 0 : index
    %351 = vector.load %arg18[%c0_164, %c0_165] : memref<1x5xf32, #tpu.memory_space<vmem>>, vector<1x5xf32>
    %352 = vector.broadcast %351 : vector<1x5xf32> to vector<6x5xf32>
    %353 = arith.addf %350, %352 : vector<6x5xf32>
    %c0_166 = arith.constant 0 : index
    %c0_167 = arith.constant 0 : index
    %354 = vector.load %arg19[%c0_166, %c0_167] : memref<6x5xf32, #tpu.memory_space<vmem>>, vector<6x5xf32>
    tpu.vector_store %arg19[%c0_166, %c0_167], %353 {strides = array<i32>} : memref<6x5xf32, #tpu.memory_space<vmem>>, vector<6x5xf32>,
    return
  }
}

</mosaic_0001>

<llo_original>
// kernel: self_attention_predictor_forward.3
$region0: #{self_attention_predictor_forward.3}
  #allocation0 [shape = 'u32[]', space=smem, size = 0x4, offset = 0x4, fixed_abs, tag = 'smem constant byte address 0x4 - core index']
  #allocation1 [shape = 'u32[144,128]{1,0:T(1,128)}', space=vmem, size = 0x12000, scoped, tag = 'internal scratch']
  %s0 = inlined_call_operand.vmem [shape: f32[48,1536], index: 0, kind: input, shape index: {}]
  %s1 = inlined_call_operand.vmem [shape: f32[8,48], index: 1, kind: input, shape index: {}]
  %s2 = inlined_call_operand.vmem [shape: f32[8,1], index: 2, kind: input, shape index: {}]
  %s3 = inlined_call_operand.vmem [shape: f32[8,1536], index: 3, kind: output, shape index: {}]
  %s4 = sld [smem:[#allocation0]]
  $region22: #{self_attention_predictor_forward.3} parent=0
    _
  %s6 = ssub.s32 1, %s4
  %s7 = scalar_select 0, %s6, %s4
  // Predicated region
  $region2: #{self_attention_predictor_forward.3} parent=0 // pred_check
    _
  $region3: #{self_attention_predictor_forward.3} parent=0 // pred_check_branch
    %9 = sbr.rel (0) target = $region5
  $region4: #{self_attention_predictor_forward.3} parent=0 // pred_region
    _
  $region5: #{self_attention_predictor_forward.3} parent=0 // pred_fallthru
    _
  // Predicated region
  $region6: #{self_attention_predictor_forward.3} parent=0 // pred_check
    _
  $region7: #{self_attention_predictor_forward.3} parent=0 // pred_check_branch
    %11 = sbr.rel (0) target = $region9
  $region8: #{self_attention_predictor_forward.3} parent=0 // pred_region
    _
  $region9: #{self_attention_predictor_forward.3} parent=0 // pred_fallthru
    _
  // Predicated region
  $region10: #{self_attention_predictor_forward.3} parent=0 // pred_check
    _
  $region11: #{self_attention_predictor_forward.3} parent=0 // pred_check_branch
    %13 = sbr.rel (0) target = $region13
  $region12: #{self_attention_predictor_forward.3} parent=0 // pred_region
    _
  $region13: #{self_attention_predictor_forward.3} parent=0 // pred_fallthru
    _
  %v14 = vld [vmem:[%s1] sm:$0xff]
  %v15 = vld [vmem:[%s0] sm:$0xff]
  %v16 = vld [vmem:[%s0 + $0x8] sm:$0xff]
  %v17 = vld [vmem:[%s0 + $0x10] sm:$0xff]
  %v18 = vld [vmem:[%s0 + $0x18] sm:$0xff]
  %v19 = vld [vmem:[%s0 + $0x20] sm:$0xff]
  %v20 = vld [vmem:[%s0 + $0x28] sm:$0xff]
  %v21 = vld [vmem:[%s0 + $0x30] sm:$0xff]
  %v22 = vld [vmem:[%s0 + $0x38] sm:$0xff]
  %v23 = vld [vmem:[%s0 + $0x40] sm:$0xff]
  %v24 = vld [vmem:[%s0 + $0x48] sm:$0xff]
  %v25 = vld [vmem:[%s0 + $0x50] sm:$0xff]
  %v26 = vld [vmem:[%s0 + $0x58] sm:$0xff]
  %v27 = vld [vmem:[%s0 + $0x60] sm:$0xff]
  %v28 = vld [vmem:[%s0 + $0x68] sm:$0xff]
  %v29 = vld [vmem:[%s0 + $0x70] sm:$0xff]
  %v30 = vld [vmem:[%s0 + $0x78] sm:$0xff]
  %v31 = vld [vmem:[%s0 + $0x80] sm:$0xff]
  %v32 = vld [vmem:[%s0 + $0x88] sm:$0xff]
  %v33 = vld [vmem:[%s0 + $0x90] sm:$0xff]
  %v34 = vld [vmem:[%s0 + $0x98] sm:$0xff]
  %v35 = vld [vmem:[%s0 + $0xa0] sm:$0xff]
  %v36 = vld [vmem:[%s0 + $0xa8] sm:$0xff]
  %v37 = vld [vmem:[%s0 + $0xb0] sm:$0xff]
  %v38 = vld [vmem:[%s0 + $0xb8] sm:$0xff]
  %v39 = vld [vmem:[%s0 + $0xc0] sm:$0xff]
  %v40 = vld [vmem:[%s0 + $0xc8] sm:$0xff]
  %v41 = vld [vmem:[%s0 + $0xd0] sm:$0xff]
  %v42 = vld [vmem:[%s0 + $0xd8] sm:$0xff]
  %v43 = vld [vmem:[%s0 + $0xe0] sm:$0xff]
  %v44 = vld [vmem:[%s0 + $0xe8] sm:$0xff]
  %v45 = vld [vmem:[%s0 + $0xf0] sm:$0xff]
  %v46 = vld [vmem:[%s0 + $0xf8] sm:$0xff]
  %v47 = vld [vmem:[%s0 + $0x100] sm:$0xff]
  %v48 = vld [vmem:[%s0 + $0x108] sm:$0xff]
  %v49 = vld [vmem:[%s0 + $0x110] sm:$0xff]
  %v50 = vld [vmem:[%s0 + $0x118] sm:$0xff]
  %v51 = vld [vmem:[%s0 + $0x120] sm:$0xff]
  %v52 = vld [vmem:[%s0 + $0x128] sm:$0xff]
  %v53 = vld [vmem:[%s0 + $0x130] sm:$0xff]
  %v54 = vld [vmem:[%s0 + $0x138] sm:$0xff]
  %v55 = vld [vmem:[%s0 + $0x140] sm:$0xff]
  %v56 = vld [vmem:[%s0 + $0x148] sm:$0xff]
  %v57 = vld [vmem:[%s0 + $0x150] sm:$0xff]
  %v58 = vld [vmem:[%s0 + $0x158] sm:$0xff]
  %v59 = vld [vmem:[%s0 + $0x160] sm:$0xff]
  %v60 = vld [vmem:[%s0 + $0x168] sm:$0xff]
  %v61 = vld [vmem:[%s0 + $0x170] sm:$0xff]
  %v62 = vld [vmem:[%s0 + $0x178] sm:$0xff]
  %v63 = vld [vmem:[%s0 + $0x180] sm:$0xff]
  %v64 = vld [vmem:[%s0 + $0x188] sm:$0xff]
  %v65 = vld [vmem:[%s0 + $0x190] sm:$0xff]
  %v66 = vld [vmem:[%s0 + $0x198] sm:$0xff]
  %v67 = vld [vmem:[%s0 + $0x1a0] sm:$0xff]
  %v68 = vld [vmem:[%s0 + $0x1a8] sm:$0xff]
  %v69 = vld [vmem:[%s0 + $0x1b0] sm:$0xff]
  %v70 = vld [vmem:[%s0 + $0x1b8] sm:$0xff]
  %v71 = vld [vmem:[%s0 + $0x1c0] sm:$0xff]
  %v72 = vld [vmem:[%s0 + $0x1c8] sm:$0xff]
  %v73 = vld [vmem:[%s0 + $0x1d0] sm:$0xff]
  %v74 = vld [vmem:[%s0 + $0x1d8] sm:$0xff]
  %v75 = vld [vmem:[%s0 + $0x1e0] sm:$0xff]
  %v76 = vld [vmem:[%s0 + $0x1e8] sm:$0xff]
  %v77 = vld [vmem:[%s0 + $0x1f0] sm:$0xff]
  %v78 = vld [vmem:[%s0 + $0x1f8] sm:$0xff]
  %v79 = vld [vmem:[%s0 + $0x200] sm:$0xff]
  %v80 = vld [vmem:[%s0 + $0x208] sm:$0xff]
  %v81 = vld [vmem:[%s0 + $0x210] sm:$0xff]
  %v82 = vld [vmem:[%s0 + $0x218] sm:$0xff]
  %v83 = vld [vmem:[%s0 + $0x220] sm:$0xff]
  %v84 = vld [vmem:[%s0 + $0x228] sm:$0xff]
  %v85 = vld [vmem:[%s0 + $0x230] sm:$0xff]
  %v86 = vld [vmem:[%s0 + $0x238] sm:$0xff]
  %v87 = vld [vmem:[%s2] sm:$0xff]
  %89 = vset.pattern.permute.xlu0 0
  %90 = vperm.xlu0 %89, %v87
  %v91 = vpop.permute.xlu0 %90
  %vm93 = vcmask 392192
  %v95 = vsel %vm93, %v14, 0
  %97 = vmatprep.subr.mxu0 %v16
  %98 = vmatpush1.msra.mxu0 %v15
  %99 = vmatprep.subr.mxu0 %v28
  %100 = vmatpush1.msra.mxu0 %v27
  %101 = vmatprep.subr.mxu0 %v40
  %102 = vmatpush1.msra.mxu0 %v39
  %103 = vmatprep.subr.mxu0 %v52
  %104 = vmatpush1.msra.mxu0 %v51
  %105 = vmatprep.subr.mxu0 %v64
  %106 = vmatpush1.msra.mxu0 %v63
  %107 = vmatprep.subr.mxu0 %v76
  %108 = vmatpush1.msra.mxu0 %v75
  %109 = vmatprep.subr.mxu0 0.0
  %110 = vmatpush1.msra.mxu0 0.0
  %111 = vmatprep.subr.mxu0 0.0
  %112 = vmatpush1.msra.mxu0 0.0
  %113 = vmatprep.subr.mxu0 0.0
  %114 = vmatpush1.msra.mxu0 0.0
  %115 = vmatprep.subr.mxu0 0.0
  %116 = vmatpush1.msra.mxu0 0.0
  %117 = vmatprep.subr.mxu0 0.0
  %118 = vmatpush1.msra.mxu0 0.0
  %119 = vmatprep.subr.mxu0 0.0
  %120 = vmatpush1.msra.mxu0 0.0
  %121 = vmatprep.subr.mxu0 0.0
  %122 = vmatpush1.msra.mxu0 0.0
  %123 = vmatprep.subr.mxu0 0.0
  %124 = vmatpush1.msra.mxu0 0.0
  %125 = vmatprep.subr.mxu0 0.0
  %126 = vmatpush1.msra.mxu0 0.0
  %127 = vmatprep.subr.mxu0 0.0
  %128 = vmatpush1.msra.mxu0 0.0
  %129 = vmatprep.subr.mxu0 0.0
  %130 = vmatpush1.msra.mxu0 0.0
  %131 = vmatprep.subr.mxu0 0.0
  %132 = vmatpush1.msra.mxu0 0.0
  %133 = vmatprep.subr.mxu0 0.0
  %134 = vmatpush1.msra.mxu0 0.0
  %135 = vmatprep.subr.mxu0 0.0
  %136 = vmatpush1.msra.mxu0 0.0
  %137 = vmatprep.subr.mxu0 0.0
  %138 = vmatpush1.msra.mxu0 0.0
  %139 = vmatprep.subr.mxu0 0.0
  %140 = vmatpush1.msra.mxu0 0.0
  %141 = vmatprep.subr.mxu0 0.0
  %142 = vmatpush1.msra.mxu0 0.0
  %143 = vmatprep.subr.mxu0 0.0
  %144 = vmatpush1.msra.mxu0 0.0
  %145 = vmatprep.subr.mxu0 0.0
  %146 = vmatpush1.msra.mxu0 0.0
  %147 = vmatprep.subr.mxu0 0.0
  %148 = vmatpush1.msra.mxu0 0.0
  %149 = vmatprep.subr.mxu0 0.0
  %150 = vmatpush1.msra.mxu0 0.0
  %151 = vmatprep.subr.mxu0 0.0
  %152 = vmatpush1.msra.mxu0 0.0
  %153 = vmatprep.subr.mxu0 0.0
  %154 = vmatpush1.msra.mxu0 0.0
  %155 = vmatprep.subr.mxu0 0.0
  %156 = vmatpush1.msra.mxu0 0.0
  %157 = vmatprep.subr.mxu0 0.0
  %158 = vmatpush1.msra.mxu0 0.0
  %159 = vmatprep.subr.mxu0 0.0
  %160 = vmatpush1.msra.mxu0 0.0
  %161 = vmatprep.mubr.f32.mxu0 0.0
  %162 = vmatmul.mubr.f32.gmra.mrb[0].mxu0 %v95
  %v163 = vpop.f32.mrb[0].mxu0
  %v164 = vadd.f32 %v91, %v163
  %v165 = vpop.f32.mrb[0].mxu0
  %v166 = vadd.f32 %v91, %v165
  %167 = vdwg.mxu0
  %168 = vmatprep.subr.mxu0 %v18
  %169 = vmatpush1.msra.mxu0 %v17
  %170 = vmatprep.subr.mxu0 %v30
  %171 = vmatpush1.msra.mxu0 %v29
  %172 = vmatprep.subr.mxu0 %v42
  %173 = vmatpush1.msra.mxu0 %v41
  %174 = vmatprep.subr.mxu0 %v54
  %175 = vmatpush1.msra.mxu0 %v53
  %176 = vmatprep.subr.mxu0 %v66
  %177 = vmatpush1.msra.mxu0 %v65
  %178 = vmatprep.subr.mxu0 %v78
  %179 = vmatpush1.msra.mxu0 %v77
  %180 = vmatprep.subr.mxu0 0.0
  %181 = vmatpush1.msra.mxu0 0.0
  %182 = vmatprep.subr.mxu0 0.0
  %183 = vmatpush1.msra.mxu0 0.0
  %184 = vmatprep.subr.mxu0 0.0
  %185 = vmatpush1.msra.mxu0 0.0
  %186 = vmatprep.subr.mxu0 0.0
  %187 = vmatpush1.msra.mxu0 0.0
  %188 = vmatprep.subr.mxu0 0.0
  %189 = vmatpush1.msra.mxu0 0.0
  %190 = vmatprep.subr.mxu0 0.0
  %191 = vmatpush1.msra.mxu0 0.0
  %192 = vmatprep.subr.mxu0 0.0
  %193 = vmatpush1.msra.mxu0 0.0
  %194 = vmatprep.subr.mxu0 0.0
  %195 = vmatpush1.msra.mxu0 0.0
  %196 = vmatprep.subr.mxu0 0.0
  %197 = vmatpush1.msra.mxu0 0.0
  %198 = vmatprep.subr.mxu0 0.0
  %199 = vmatpush1.msra.mxu0 0.0
  %200 = vmatprep.subr.mxu0 0.0
  %201 = vmatpush1.msra.mxu0 0.0
  %202 = vmatprep.subr.mxu0 0.0
  %203 = vmatpush1.msra.mxu0 0.0
  %204 = vmatprep.subr.mxu0 0.0
  %205 = vmatpush1.msra.mxu0 0.0
  %206 = vmatprep.subr.mxu0 0.0
  %207 = vmatpush1.msra.mxu0 0.0
  %208 = vmatprep.subr.mxu0 0.0
  %209 = vmatpush1.msra.mxu0 0.0
  %210 = vmatprep.subr.mxu0 0.0
  %211 = vmatpush1.msra.mxu0 0.0
  %212 = vmatprep.subr.mxu0 0.0
  %213 = vmatpush1.msra.mxu0 0.0
  %214 = vmatprep.subr.mxu0 0.0
  %215 = vmatpush1.msra.mxu0 0.0
  %216 = vmatprep.subr.mxu0 0.0
  %217 = vmatpush1.msra.mxu0 0.0
  %218 = vmatprep.subr.mxu0 0.0
  %219 = vmatpush1.msra.mxu0 0.0
  %220 = vmatprep.subr.mxu0 0.0
  %221 = vmatpush1.msra.mxu0 0.0
  %222 = vmatprep.subr.mxu0 0.0
  %223 = vmatpush1.msra.mxu0 0.0
  %224 = vmatprep.subr.mxu0 0.0
  %225 = vmatpush1.msra.mxu0 0.0
  %226 = vmatprep.subr.mxu0 0.0
  %227 = vmatpush1.msra.mxu0 0.0
  %228 = vmatprep.subr.mxu0 0.0
  %229 = vmatpush1.msra.mxu0 0.0
  %230 = vmatprep.subr.mxu0 0.0
  %231 = vmatpush1.msra.mxu0 0.0
  %232 = vmatprep.mubr.f32.mxu0 0.0
  %233 = vmatmul.mubr.f32.gmra.mrb[0].mxu0 %v95
  %v234 = vpop.f32.mrb[0].mxu0
  %v235 = vadd.f32 %v91, %v234
  %v236 = vpop.f32.mrb[0].mxu0
  %v237 = vadd.f32 %v91, %v236
  %238 = vdwg.mxu0
  %239 = vmatprep.subr.mxu0 %v20
  %240 = vmatpush1.msra.mxu0 %v19
  %241 = vmatprep.subr.mxu0 %v32
  %242 = vmatpush1.msra.mxu0 %v31
  %243 = vmatprep.subr.mxu0 %v44
  %244 = vmatpush1.msra.mxu0 %v43
  %245 = vmatprep.subr.mxu0 %v56
  %246 = vmatpush1.msra.mxu0 %v55
  %247 = vmatprep.subr.mxu0 %v68
  %248 = vmatpush1.msra.mxu0 %v67
  %249 = vmatprep.subr.mxu0 %v80
  %250 = vmatpush1.msra.mxu0 %v79
  %251 = vmatprep.subr.mxu0 0.0
  %252 = vmatpush1.msra.mxu0 0.0
  %253 = vmatprep.subr.mxu0 0.0
  %254 = vmatpush1.msra.mxu0 0.0
  %255 = vmatprep.subr.mxu0 0.0
  %256 = vmatpush1.msra.mxu0 0.0
  %257 = vmatprep.subr.mxu0 0.0
  %258 = vmatpush1.msra.mxu0 0.0
  %259 = vmatprep.subr.mxu0 0.0
  %260 = vmatpush1.msra.mxu0 0.0
  %261 = vmatprep.subr.mxu0 0.0
  %262 = vmatpush1.msra.mxu0 0.0
  %263 = vmatprep.subr.mxu0 0.0
  %264 = vmatpush1.msra.mxu0 0.0
  %265 = vmatprep.subr.mxu0 0.0
  %266 = vmatpush1.msra.mxu0 0.0
  %267 = vmatprep.subr.mxu0 0.0
  %268 = vmatpush1.msra.mxu0 0.0
  %269 = vmatprep.subr.mxu0 0.0
  %270 = vmatpush1.msra.mxu0 0.0
  %271 = vmatprep.subr.mxu0 0.0
  %272 = vmatpush1.msra.mxu0 0.0
  %273 = vmatprep.subr.mxu0 0.0
  %274 = vmatpush1.msra.mxu0 0.0
  %275 = vmatprep.subr.mxu0 0.0
  %276 = vmatpush1.msra.mxu0 0.0
  %277 = vmatprep.subr.mxu0 0.0
  %278 = vmatpush1.msra.mxu0 0.0
  %279 = vmatprep.subr.mxu0 0.0
  %280 = vmatpush1.msra.mxu0 0.0
  %281 = vmatprep.subr.mxu0 0.0
  %282 = vmatpush1.msra.mxu0 0.0
  %283 = vmatprep.subr.mxu0 0.0
  %284 = vmatpush1.msra.mxu0 0.0
  %285 = vmatprep.subr.mxu0 0.0
  %286 = vmatpush1.msra.mxu0 0.0
  %287 = vmatprep.subr.mxu0 0.0
  %288 = vmatpush1.msra.mxu0 0.0
  %289 = vmatprep.subr.mxu0 0.0
  %290 = vmatpush1.msra.mxu0 0.0
  %291 = vmatprep.subr.mxu0 0.0
  %292 = vmatpush1.msra.mxu0 0.0
  %293 = vmatprep.subr.mxu0 0.0
  %294 = vmatpush1.msra.mxu0 0.0
  %295 = vmatprep.subr.mxu0 0.0
  %296 = vmatpush1.msra.mxu0 0.0
  %297 = vmatprep.subr.mxu0 0.0
  %298 = vmatpush1.msra.mxu0 0.0
  %299 = vmatprep.subr.mxu0 0.0
  %300 = vmatpush1.msra.mxu0 0.0
  %301 = vmatprep.subr.mxu0 0.0
  %302 = vmatpush1.msra.mxu0 0.0
  %303 = vmatprep.mubr.f32.mxu0 0.0
  %304 = vmatmul.mubr.f32.gmra.mrb[0].mxu0 %v95
  %v305 = vpop.f32.mrb[0].mxu0
  %v306 = vadd.f32 %v91, %v305
  %v307 = vpop.f32.mrb[0].mxu0
  %v308 = vadd.f32 %v91, %v307
  %309 = vdwg.mxu0
  %310 = vmatprep.subr.mxu0 %v22
  %311 = vmatpush1.msra.mxu0 %v21
  %312 = vmatprep.subr.mxu0 %v34
  %313 = vmatpush1.msra.mxu0 %v33
  %314 = vmatprep.subr.mxu0 %v46
  %315 = vmatpush1.msra.mxu0 %v45
  %316 = vmatprep.subr.mxu0 %v58
  %317 = vmatpush1.msra.mxu0 %v57
  %318 = vmatprep.subr.mxu0 %v70
  %319 = vmatpush1.msra.mxu0 %v69
  %320 = vmatprep.subr.mxu0 %v82
  %321 = vmatpush1.msra.mxu0 %v81
  %322 = vmatprep.subr.mxu0 0.0
  %323 = vmatpush1.msra.mxu0 0.0
  %324 = vmatprep.subr.mxu0 0.0
  %325 = vmatpush1.msra.mxu0 0.0
  %326 = vmatprep.subr.mxu0 0.0
  %327 = vmatpush1.msra.mxu0 0.0
  %328 = vmatprep.subr.mxu0 0.0
  %329 = vmatpush1.msra.mxu0 0.0
  %330 = vmatprep.subr.mxu0 0.0
  %331 = vmatpush1.msra.mxu0 0.0
  %332 = vmatprep.subr.mxu0 0.0
  %333 = vmatpush1.msra.mxu0 0.0
  %334 = vmatprep.subr.mxu0 0.0
  %335 = vmatpush1.msra.mxu0 0.0
  %336 = vmatprep.subr.mxu0 0.0
  %337 = vmatpush1.msra.mxu0 0.0
  %338 = vmatprep.subr.mxu0 0.0
  %339 = vmatpush1.msra.mxu0 0.0
  %340 = vmatprep.subr.mxu0 0.0
  %341 = vmatpush1.msra.mxu0 0.0
  %342 = vmatprep.subr.mxu0 0.0
  %343 = vmatpush1.msra.mxu0 0.0
  %344 = vmatprep.subr.mxu0 0.0
  %345 = vmatpush1.msra.mxu0 0.0
  %346 = vmatprep.subr.mxu0 0.0
  %347 = vmatpush1.msra.mxu0 0.0
  %348 = vmatprep.subr.mxu0 0.0
  %349 = vmatpush1.msra.mxu0 0.0
  %350 = vmatprep.subr.mxu0 0.0
  %351 = vmatpush1.msra.mxu0 0.0
  %352 = vmatprep.subr.mxu0 0.0
  %353 = vmatpush1.msra.mxu0 0.0
  %354 = vmatprep.subr.mxu0 0.0
  %355 = vmatpush1.msra.mxu0 0.0
  %356 = vmatprep.subr.mxu0 0.0
  %357 = vmatpush1.msra.mxu0 0.0
  %358 = vmatprep.subr.mxu0 0.0
  %359 = vmatpush1.msra.mxu0 0.0
  %360 = vmatprep.subr.mxu0 0.0
  %361 = vmatpush1.msra.mxu0 0.0
  %362 = vmatprep.subr.mxu0 0.0
  %363 = vmatpush1.msra.mxu0 0.0
  %364 = vmatprep.subr.mxu0 0.0
  %365 = vmatpush1.msra.mxu0 0.0
  %366 = vmatprep.subr.mxu0 0.0
  %367 = vmatpush1.msra.mxu0 0.0
  %368 = vmatprep.subr.mxu0 0.0
  %369 = vmatpush1.msra.mxu0 0.0
  %370 = vmatprep.subr.mxu0 0.0
  %371 = vmatpush1.msra.mxu0 0.0
  %372 = vmatprep.subr.mxu0 0.0
  %373 = vmatpush1.msra.mxu0 0.0
  %374 = vmatprep.mubr.f32.mxu0 0.0
  %375 = vmatmul.mubr.f32.gmra.mrb[0].mxu0 %v95
  %v376 = vpop.f32.mrb[0].mxu0
  %v377 = vadd.f32 %v91, %v376
  %v378 = vpop.f32.mrb[0].mxu0
  %v379 = vadd.f32 %v91, %v378
  %380 = vdwg.mxu0
  %381 = vmatprep.subr.mxu0 %v24
  %382 = vmatpush1.msra.mxu0 %v23
  %383 = vmatprep.subr.mxu0 %v36
  %384 = vmatpush1.msra.mxu0 %v35
  %385 = vmatprep.subr.mxu0 %v48
  %386 = vmatpush1.msra.mxu0 %v47
  %387 = vmatprep.subr.mxu0 %v60
  %388 = vmatpush1.msra.mxu0 %v59
  %389 = vmatprep.subr.mxu0 %v72
  %390 = vmatpush1.msra.mxu0 %v71
  %391 = vmatprep.subr.mxu0 %v84
  %392 = vmatpush1.msra.mxu0 %v83
  %393 = vmatprep.subr.mxu0 0.0
  %394 = vmatpush1.msra.mxu0 0.0
  %395 = vmatprep.subr.mxu0 0.0
  %396 = vmatpush1.msra.mxu0 0.0
  %397 = vmatprep.subr.mxu0 0.0
  %398 = vmatpush1.msra.mxu0 0.0
  %399 = vmatprep.subr.mxu0 0.0
  %400 = vmatpush1.msra.mxu0 0.0
  %401 = vmatprep.subr.mxu0 0.0
  %402 = vmatpush1.msra.mxu0 0.0
  %403 = vmatprep.subr.mxu0 0.0
  %404 = vmatpush1.msra.mxu0 0.0
  %405 = vmatprep.subr.mxu0 0.0
  %406 = vmatpush1.msra.mxu0 0.0
  %407 = vmatprep.subr.mxu0 0.0
  %408 = vmatpush1.msra.mxu0 0.0
  %409 = vmatprep.subr.mxu0 0.0
  %410 = vmatpush1.msra.mxu0 0.0
  %411 = vmatprep.subr.mxu0 0.0
  %412 = vmatpush1.msra.mxu0 0.0
  %413 = vmatprep.subr.mxu0 0.0
  %414 = vmatpush1.msra.mxu0 0.0
  %415 = vmatprep.subr.mxu0 0.0
  %416 = vmatpush1.msra.mxu0 0.0
  %417 = vmatprep.subr.mxu0 0.0
  %418 = vmatpush1.msra.mxu0 0.0
  %419 = vmatprep.subr.mxu0 0.0
  %420 = vmatpush1.msra.mxu0 0.0
  %421 = vmatprep.subr.mxu0 0.0
  %422 = vmatpush1.msra.mxu0 0.0
  %423 = vmatprep.subr.mxu0 0.0
  %424 = vmatpush1.msra.mxu0 0.0
  %425 = vmatprep.subr.mxu0 0.0
  %426 = vmatpush1.msra.mxu0 0.0
  %427 = vmatprep.subr.mxu0 0.0
  %428 = vmatpush1.msra.mxu0 0.0
  %429 = vmatprep.subr.mxu0 0.0
  %430 = vmatpush1.msra.mxu0 0.0
  %431 = vmatprep.subr.mxu0 0.0
  %432 = vmatpush1.msra.mxu0 0.0
  %433 = vmatprep.subr.mxu0 0.0
  %434 = vmatpush1.msra.mxu0 0.0
  %435 = vmatprep.subr.mxu0 0.0
  %436 = vmatpush1.msra.mxu0 0.0
  %437 = vmatprep.subr.mxu0 0.0
  %438 = vmatpush1.msra.mxu0 0.0
  %439 = vmatprep.subr.mxu0 0.0
  %440 = vmatpush1.msra.mxu0 0.0
  %441 = vmatprep.subr.mxu0 0.0
  %442 = vmatpush1.msra.mxu0 0.0
  %443 = vmatprep.subr.mxu0 0.0
  %444 = vmatpush1.msra.mxu0 0.0
  %445 = vmatprep.mubr.f32.mxu0 0.0
  %446 = vmatmul.mubr.f32.gmra.mrb[0].mxu0 %v95
  %v447 = vpop.f32.mrb[0].mxu0
  %v448 = vadd.f32 %v91, %v447
  %v449 = vpop.f32.mrb[0].mxu0
  %v450 = vadd.f32 %v91, %v449
  %451 = vdwg.mxu0
  %452 = vmatprep.subr.mxu0 %v26
  %453 = vmatpush1.msra.mxu0 %v25
  %454 = vmatprep.subr.mxu0 %v38
  %455 = vmatpush1.msra.mxu0 %v37
  %456 = vmatprep.subr.mxu0 %v50
  %457 = vmatpush1.msra.mxu0 %v49
  %458 = vmatprep.subr.mxu0 %v62
  %459 = vmatpush1.msra.mxu0 %v61
  %460 = vmatprep.subr.mxu0 %v74
  %461 = vmatpush1.msra.mxu0 %v73
  %462 = vmatprep.subr.mxu0 %v86
  %463 = vmatpush1.msra.mxu0 %v85
  %464 = vmatprep.subr.mxu0 0.0
  %465 = vmatpush1.msra.mxu0 0.0
  %466 = vmatprep.subr.mxu0 0.0
  %467 = vmatpush1.msra.mxu0 0.0
  %468 = vmatprep.subr.mxu0 0.0
  %469 = vmatpush1.msra.mxu0 0.0
  %470 = vmatprep.subr.mxu0 0.0
  %471 = vmatpush1.msra.mxu0 0.0
  %472 = vmatprep.subr.mxu0 0.0
  %473 = vmatpush1.msra.mxu0 0.0
  %474 = vmatprep.subr.mxu0 0.0
  %475 = vmatpush1.msra.mxu0 0.0
  %476 = vmatprep.subr.mxu0 0.0
  %477 = vmatpush1.msra.mxu0 0.0
  %478 = vmatprep.subr.mxu0 0.0
  %479 = vmatpush1.msra.mxu0 0.0
  %480 = vmatprep.subr.mxu0 0.0
  %481 = vmatpush1.msra.mxu0 0.0
  %482 = vmatprep.subr.mxu0 0.0
  %483 = vmatpush1.msra.mxu0 0.0
  %484 = vmatprep.subr.mxu0 0.0
  %485 = vmatpush1.msra.mxu0 0.0
  %486 = vmatprep.subr.mxu0 0.0
  %487 = vmatpush1.msra.mxu0 0.0
  %488 = vmatprep.subr.mxu0 0.0
  %489 = vmatpush1.msra.mxu0 0.0
  %490 = vmatprep.subr.mxu0 0.0
  %491 = vmatpush1.msra.mxu0 0.0
  %492 = vmatprep.subr.mxu0 0.0
  %493 = vmatpush1.msra.mxu0 0.0
  %494 = vmatprep.subr.mxu0 0.0
  %495 = vmatpush1.msra.mxu0 0.0
  %496 = vmatprep.subr.mxu0 0.0
  %497 = vmatpush1.msra.mxu0 0.0
  %498 = vmatprep.subr.mxu0 0.0
  %499 = vmatpush1.msra.mxu0 0.0
  %500 = vmatprep.subr.mxu0 0.0
  %501 = vmatpush1.msra.mxu0 0.0
  %502 = vmatprep.subr.mxu0 0.0
  %503 = vmatpush1.msra.mxu0 0.0
  %504 = vmatprep.subr.mxu0 0.0
  %505 = vmatpush1.msra.mxu0 0.0
  %506 = vmatprep.subr.mxu0 0.0
  %507 = vmatpush1.msra.mxu0 0.0
  %508 = vmatprep.subr.mxu0 0.0
  %509 = vmatpush1.msra.mxu0 0.0
  %510 = vmatprep.subr.mxu0 0.0
  %511 = vmatpush1.msra.mxu0 0.0
  %512 = vmatprep.subr.mxu0 0.0
  %513 = vmatpush1.msra.mxu0 0.0
  %514 = vmatprep.subr.mxu0 0.0
  %515 = vmatpush1.msra.mxu0 0.0
  %516 = vmatprep.mubr.f32.mxu0 0.0
  %517 = vmatmul.mubr.f32.gmra.mrb[0].mxu0 %v95
  %v518 = vpop.f32.mrb[0].mxu0
  %v519 = vadd.f32 %v91, %v518
  %v520 = vpop.f32.mrb[0].mxu0
  %v521 = vadd.f32 %v91, %v520
  %522 = vdwg.mxu0
  %v523 = vmax.f32 %v164, 0.0
  %v524 = vmax.f32 %v166, 0.0
  %v525 = vmax.f32 %v235, 0.0
  %v526 = vmax.f32 %v237, 0.0
  %v527 = vmax.f32 %v306, 0.0
  %v528 = vmax.f32 %v308, 0.0
  %v529 = vmax.f32 %v377, 0.0
  %v530 = vmax.f32 %v379, 0.0
  %v531 = vmax.f32 %v448, 0.0
  %v532 = vmax.f32 %v450, 0.0
  %v533 = vmax.f32 %v519, 0.0
  %v534 = vmax.f32 %v521, 0.0
  %535 = vst [vmem:[%s3] sm:$0xff] %v523
  %536 = vst [vmem:[%s3 + $0x8] sm:$0xff] %v524
  %537 = vst [vmem:[%s3 + $0x10] sm:$0xff] %v525
  %538 = vst [vmem:[%s3 + $0x18] sm:$0xff] %v526
  %539 = vst [vmem:[%s3 + $0x20] sm:$0xff] %v527
  %540 = vst [vmem:[%s3 + $0x28] sm:$0xff] %v528
  %541 = vst [vmem:[%s3 + $0x30] sm:$0xff] %v529
  %542 = vst [vmem:[%s3 + $0x38] sm:$0xff] %v530
  %543 = vst [vmem:[%s3 + $0x40] sm:$0xff] %v531
  %544 = vst [vmem:[%s3 + $0x48] sm:$0xff] %v532
  %545 = vst [vmem:[%s3 + $0x50] sm:$0xff] %v533
  %546 = vst [vmem:[%s3 + $0x58] sm:$0xff] %v534
  // Predicated region
  $region14: #{self_attention_predictor_forward.3} parent=0 // pred_check
    _
  $region15: #{self_attention_predictor_forward.3} parent=0 // pred_check_branch
    %548 = sbr.rel (0) target = $region17
  $region16: #{self_attention_predictor_forward.3} parent=0 // pred_region
    _
  $region17: #{self_attention_predictor_forward.3} parent=0 // pred_fallthru
    _
  // Predicated region
  $region18: #{self_attention_predictor_forward.3} parent=0 // pred_check
    _
  $region19: #{self_attention_predictor_forward.3} parent=0 // pred_check_branch
    %550 = sbr.rel (0) target = $region21
  $region20: #{self_attention_predictor_forward.3} parent=0 // pred_region
    _
  $region21: #{self_attention_predictor_forward.3} parent=0 // pred_fallthru
    _

// kernel: self_attention_predictor_forward.4
$region0: #{self_attention_predictor_forward.4}
  #allocation0 [shape = 'u32[]', space=smem, size = 0x4, offset = 0x4, fixed_abs, tag = 'smem constant byte address 0x4 - core index']
  #allocation1 [shape = 'u32[144,128]{1,0:T(1,128)}', space=vmem, size = 0x12000, scoped, tag = 'internal scratch']
  %s0 = inlined_call_operand.vmem [shape: f32[72,384], index: 0, kind: input, shape index: {}]
  %s1 = inlined_call_operand.vmem [shape: f32[8,72], index: 1, kind: input, shape index: {}]
  %s2 = inlined_call_operand.vmem [shape: f32[8,1], index: 2, kind: input, shape index: {}]
  %s3 = inlined_call_operand.vmem [shape: f32[8,384], index: 3, kind: output, shape index: {}]
  %s4 = sld [smem:[#allocation0]]
  $region22: #{self_attention_predictor_forward.4} parent=0
    _
  %s6 = ssub.s32 1, %s4
  %s7 = scalar_select 0, %s6, %s4
  // Predicated region
  $region2: #{self_attention_predictor_forward.4} parent=0 // pred_check
    _
  $region3: #{self_attention_predictor_forward.4} parent=0 // pred_check_branch
    %9 = sbr.rel (0) target = $region5
  $region4: #{self_attention_predictor_forward.4} parent=0 // pred_region
    _
  $region5: #{self_attention_predictor_forward.4} parent=0 // pred_fallthru
    _
  // Predicated region
  $region6: #{self_attention_predictor_forward.4} parent=0 // pred_check
    _
  $region7: #{self_attention_predictor_forward.4} parent=0 // pred_check_branch
    %11 = sbr.rel (0) target = $region9
  $region8: #{self_attention_predictor_forward.4} parent=0 // pred_region
    _
  $region9: #{self_attention_predictor_forward.4} parent=0 // pred_fallthru
    _
  // Predicated region
  $region10: #{self_attention_predictor_forward.4} parent=0 // pred_check
    _
  $region11: #{self_attention_predictor_forward.4} parent=0 // pred_check_branch
    %13 = sbr.rel (0) target = $region13
  $region12: #{self_attention_predictor_forward.4} parent=0 // pred_region
    _
  $region13: #{self_attention_predictor_forward.4} parent=0 // pred_fallthru
    _
  %v14 = vld [vmem:[%s1] sm:$0xff]
  %v15 = vld [vmem:[%s0] sm:$0xff]
  %v16 = vld [vmem:[%s0 + $0x8] sm:$0xff]
  %v17 = vld [vmem:[%s0 + $0x10] sm:$0xff]
  %v18 = vld [vmem:[%s0 + $0x18] sm:$0xff]
  %v19 = vld [vmem:[%s0 + $0x20] sm:$0xff]
  %v20 = vld [vmem:[%s0 + $0x28] sm:$0xff]
  %v21 = vld [vmem:[%s0 + $0x30] sm:$0xff]
  %v22 = vld [vmem:[%s0 + $0x38] sm:$0xff]
  %v23 = vld [vmem:[%s0 + $0x40] sm:$0xff]
  %v24 = vld [vmem:[%s0 + $0x48] sm:$0xff]
  %v25 = vld [vmem:[%s0 + $0x50] sm:$0xff]
  %v26 = vld [vmem:[%s0 + $0x58] sm:$0xff]
  %v27 = vld [vmem:[%s0 + $0x60] sm:$0xff]
  %v28 = vld [vmem:[%s0 + $0x68] sm:$0xff]
  %v29 = vld [vmem:[%s0 + $0x70] sm:$0xff]
  %v30 = vld [vmem:[%s0 + $0x78] sm:$0xff]
  %v31 = vld [vmem:[%s0 + $0x80] sm:$0xff]
  %v32 = vld [vmem:[%s0 + $0x88] sm:$0xff]
  %v33 = vld [vmem:[%s0 + $0x90] sm:$0xff]
  %v34 = vld [vmem:[%s0 + $0x98] sm:$0xff]
  %v35 = vld [vmem:[%s0 + $0xa0] sm:$0xff]
  %v36 = vld [vmem:[%s0 + $0xa8] sm:$0xff]
  %v37 = vld [vmem:[%s0 + $0xb0] sm:$0xff]
  %v38 = vld [vmem:[%s0 + $0xb8] sm:$0xff]
  %v39 = vld [vmem:[%s0 + $0xc0] sm:$0xff]
  %v40 = vld [vmem:[%s0 + $0xc8] sm:$0xff]
  %v41 = vld [vmem:[%s0 + $0xd0] sm:$0xff]
  %v42 = vld [vmem:[%s2] sm:$0xff]
  %44 = vset.pattern.permute.xlu0 0
  %45 = vperm.xlu0 %44, %v42
  %v46 = vpop.permute.xlu0 %45
  %vm48 = vcmask 588800
  %v50 = vsel %vm48, %v14, 0
  %52 = vmatprep.subr.mxu0 %v16
  %53 = vmatpush1.msra.mxu0 %v15
  %54 = vmatprep.subr.mxu0 %v19
  %55 = vmatpush1.msra.mxu0 %v18
  %56 = vmatprep.subr.mxu0 %v22
  %57 = vmatpush1.msra.mxu0 %v21
  %58 = vmatprep.subr.mxu0 %v25
  %59 = vmatpush1.msra.mxu0 %v24
  %60 = vmatprep.subr.mxu0 %v28
  %61 = vmatpush1.msra.mxu0 %v27
  %62 = vmatprep.subr.mxu0 %v31
  %63 = vmatpush1.msra.mxu0 %v30
  %64 = vmatprep.subr.mxu0 %v34
  %65 = vmatpush1.msra.mxu0 %v33
  %66 = vmatprep.subr.mxu0 %v37
  %67 = vmatpush1.msra.mxu0 %v36
  %68 = vmatprep.subr.mxu0 %v40
  %69 = vmatpush1.msra.mxu0 %v39
  %70 = vmatprep.subr.mxu0 0.0
  %71 = vmatpush1.msra.mxu0 0.0
  %72 = vmatprep.subr.mxu0 0.0
  %73 = vmatpush1.msra.mxu0 0.0
  %74 = vmatprep.subr.mxu0 0.0
  %75 = vmatpush1.msra.mxu0 0.0
  %76 = vmatprep.subr.mxu0 0.0
  %77 = vmatpush1.msra.mxu0 0.0
  %78 = vmatprep.subr.mxu0 0.0
  %79 = vmatpush1.msra.mxu0 0.0
  %80 = vmatprep.subr.mxu0 0.0
  %81 = vmatpush1.msra.mxu0 0.0
  %82 = vmatprep.subr.mxu0 0.0
  %83 = vmatpush1.msra.mxu0 0.0
  %84 = vmatprep.subr.mxu0 0.0
  %85 = vmatpush1.msra.mxu0 0.0
  %86 = vmatprep.subr.mxu0 0.0
  %87 = vmatpush1.msra.mxu0 0.0
  %88 = vmatprep.subr.mxu0 0.0
  %89 = vmatpush1.msra.mxu0 0.0
  %90 = vmatprep.subr.mxu0 0.0
  %91 = vmatpush1.msra.mxu0 0.0
  %92 = vmatprep.subr.mxu0 0.0
  %93 = vmatpush1.msra.mxu0 0.0
  %94 = vmatprep.subr.mxu0 0.0
  %95 = vmatpush1.msra.mxu0 0.0
  %96 = vmatprep.subr.mxu0 0.0
  %97 = vmatpush1.msra.mxu0 0.0
  %98 = vmatprep.subr.mxu0 0.0
  %99 = vmatpush1.msra.mxu0 0.0
  %100 = vmatprep.subr.mxu0 0.0
  %101 = vmatpush1.msra.mxu0 0.0
  %102 = vmatprep.subr.mxu0 0.0
  %103 = vmatpush1.msra.mxu0 0.0
  %104 = vmatprep.subr.mxu0 0.0
  %105 = vmatpush1.msra.mxu0 0.0
  %106 = vmatprep.subr.mxu0 0.0
  %107 = vmatpush1.msra.mxu0 0.0
  %108 = vmatprep.subr.mxu0 0.0
  %109 = vmatpush1.msra.mxu0 0.0
  %110 = vmatprep.subr.mxu0 0.0
  %111 = vmatpush1.msra.mxu0 0.0
  %112 = vmatprep.subr.mxu0 0.0
  %113 = vmatpush1.msra.mxu0 0.0
  %114 = vmatprep.subr.mxu0 0.0
  %115 = vmatpush1.msra.mxu0 0.0
  %116 = vmatprep.mubr.f32.mxu0 0.0
  %117 = vmatmul.mubr.f32.gmra.mrb[0].mxu0 %v50
  %v118 = vpop.f32.mrb[0].mxu0
  %v119 = vadd.f32 %v46, %v118
  %v120 = vpop.f32.mrb[0].mxu0
  %v121 = vadd.f32 %v46, %v120
  %122 = vdwg.mxu0
  %123 = vmatprep.subr.mxu0 0.0
  %124 = vmatpush1.msra.mxu0 %v17
  %125 = vmatprep.subr.mxu0 0.0
  %126 = vmatpush1.msra.mxu0 %v20
  %127 = vmatprep.subr.mxu0 0.0
  %128 = vmatpush1.msra.mxu0 %v23
  %129 = vmatprep.subr.mxu0 0.0
  %130 = vmatpush1.msra.mxu0 %v26
  %131 = vmatprep.subr.mxu0 0.0
  %132 = vmatpush1.msra.mxu0 %v29
  %133 = vmatprep.subr.mxu0 0.0
  %134 = vmatpush1.msra.mxu0 %v32
  %135 = vmatprep.subr.mxu0 0.0
  %136 = vmatpush1.msra.mxu0 %v35
  %137 = vmatprep.subr.mxu0 0.0
  %138 = vmatpush1.msra.mxu0 %v38
  %139 = vmatprep.subr.mxu0 0.0
  %140 = vmatpush1.msra.mxu0 %v41
  %141 = vmatprep.subr.mxu0 0.0
  %142 = vmatpush1.msra.mxu0 0.0
  %143 = vmatprep.subr.mxu0 0.0
  %144 = vmatpush1.msra.mxu0 0.0
  %145 = vmatprep.subr.mxu0 0.0
  %146 = vmatpush1.msra.mxu0 0.0
  %147 = vmatprep.subr.mxu0 0.0
  %148 = vmatpush1.msra.mxu0 0.0
  %149 = vmatprep.subr.mxu0 0.0
  %150 = vmatpush1.msra.mxu0 0.0
  %151 = vmatprep.subr.mxu0 0.0
  %152 = vmatpush1.msra.mxu0 0.0
  %153 = vmatprep.subr.mxu0 0.0
  %154 = vmatpush1.msra.mxu0 0.0
  %155 = vmatprep.subr.mxu0 0.0
  %156 = vmatpush1.msra.mxu0 0.0
  %157 = vmatprep.subr.mxu0 0.0
  %158 = vmatpush1.msra.mxu0 0.0
  %159 = vmatprep.subr.mxu0 0.0
  %160 = vmatpush1.msra.mxu0 0.0
  %161 = vmatprep.subr.mxu0 0.0
  %162 = vmatpush1.msra.mxu0 0.0
  %163 = vmatprep.subr.mxu0 0.0
  %164 = vmatpush1.msra.mxu0 0.0
  %165 = vmatprep.subr.mxu0 0.0
  %166 = vmatpush1.msra.mxu0 0.0
  %167 = vmatprep.subr.mxu0 0.0
  %168 = vmatpush1.msra.mxu0 0.0
  %169 = vmatprep.subr.mxu0 0.0
  %170 = vmatpush1.msra.mxu0 0.0
  %171 = vmatprep.subr.mxu0 0.0
  %172 = vmatpush1.msra.mxu0 0.0
  %173 = vmatprep.subr.mxu0 0.0
  %174 = vmatpush1.msra.mxu0 0.0
  %175 = vmatprep.subr.mxu0 0.0
  %176 = vmatpush1.msra.mxu0 0.0
  %177 = vmatprep.subr.mxu0 0.0
  %178 = vmatpush1.msra.mxu0 0.0
  %179 = vmatprep.subr.mxu0 0.0
  %180 = vmatpush1.msra.mxu0 0.0
  %181 = vmatprep.subr.mxu0 0.0
  %182 = vmatpush1.msra.mxu0 0.0
  %183 = vmatprep.subr.mxu0 0.0
  %184 = vmatpush1.msra.mxu0 0.0
  %185 = vmatprep.subr.mxu0 0.0
  %186 = vmatpush1.msra.mxu0 0.0
  %187 = vmatprep.mubr.f32.mxu0 0.0
  %188 = vmatmul.mubr.f32.gmra.mrb[0].mxu0 %v50
  %v189 = vpop.f32.mrb[0].mxu0
  %v190 = vadd.f32 %v46, %v189
  %v191 = vpop.f32.mrb[0].mxu0
  %192 = vdwg.mxu0
  %v193 = vmax.f32 %v119, 0.0
  %v194 = vmax.f32 %v121, 0.0
  %v195 = vmax.f32 %v190, 0.0
  %196 = vst [vmem:[%s3] sm:$0xff] %v193
  %197 = vst [vmem:[%s3 + $0x8] sm:$0xff] %v194
  %198 = vst [vmem:[%s3 + $0x10] sm:$0xff] %v195
  // Predicated region
  $region14: #{self_attention_predictor_forward.4} parent=0 // pred_check
    _
  $region15: #{self_attention_predictor_forward.4} parent=0 // pred_check_branch
    %200 = sbr.rel (0) target = $region17
  $region16: #{self_attention_predictor_forward.4} parent=0 // pred_region
    _
  $region17: #{self_attention_predictor_forward.4} parent=0 // pred_fallthru
    _
  // Predicated region
  $region18: #{self_attention_predictor_forward.4} parent=0 // pred_check
    _
  $region19: #{self_attention_predictor_forward.4} parent=0 // pred_check_branch
    %202 = sbr.rel (0) target = $region21
  $region20: #{self_attention_predictor_forward.4} parent=0 // pred_region
    _
  $region21: #{self_attention_predictor_forward.4} parent=0 // pred_fallthru
    _

// kernel: self_attention_predictor_forward.5
$region0: #{self_attention_predictor_forward.5}
  #allocation0 [shape = 'u32[]', space=smem, size = 0x4, offset = 0x4, fixed_abs, tag = 'smem constant byte address 0x4 - core index']
  #allocation1 [shape = 'u32[144,128]{1,0:T(1,128)}', space=vmem, size = 0x12000, scoped, tag = 'internal scratch']
  %s0 = inlined_call_operand.vmem [shape: f32[6,512], index: 0, kind: input, shape index: {}]
  %s1 = inlined_call_operand.vmem [shape: f32[512,32], index: 1, kind: input, shape index: {}]
  %s2 = inlined_call_operand.vmem [shape: f32[1,32], index: 2, kind: input, shape index: {}]
  %s3 = inlined_call_operand.vmem [shape: f32[32,16], index: 3, kind: input, shape index: {}]
  %s4 = inlined_call_operand.vmem [shape: f32[1,16], index: 4, kind: input, shape index: {}]
  %s5 = inlined_call_operand.vmem [shape: f32[2,16,48], index: 5, kind: input, shape index: {}]
  %s6 = inlined_call_operand.vmem [shape: f32[2,1,48], index: 6, kind: input, shape index: {}]
  %s7 = inlined_call_operand.vmem [shape: f32[2,16,16], index: 7, kind: input, shape index: {}]
  %s8 = inlined_call_operand.vmem [shape: f32[2,1,16], index: 8, kind: input, shape index: {}]
  %s9 = inlined_call_operand.vmem [shape: f32[2,1,16], index: 9, kind: input, shape index: {}]
  %s10 = inlined_call_operand.vmem [shape: f32[2,1,16], index: 10, kind: input, shape index: {}]
  %s11 = inlined_call_operand.vmem [shape: f32[2,16,64], index: 11, kind: input, shape index: {}]
  %s12 = inlined_call_operand.vmem [shape: f32[2,1,64], index: 12, kind: input, shape index: {}]
  %s13 = inlined_call_operand.vmem [shape: f32[2,64,16], index: 13, kind: input, shape index: {}]
  %s14 = inlined_call_operand.vmem [shape: f32[2,1,16], index: 14, kind: input, shape index: {}]
  %s15 = inlined_call_operand.vmem [shape: f32[2,1,16], index: 15, kind: input, shape index: {}]
  %s16 = inlined_call_operand.vmem [shape: f32[2,1,16], index: 16, kind: input, shape index: {}]
  %s17 = inlined_call_operand.vmem [shape: f32[16,5], index: 17, kind: input, shape index: {}]
  %s18 = inlined_call_operand.vmem [shape: f32[1,5], index: 18, kind: input, shape index: {}]
  %s19 = inlined_call_operand.hbm [shape: f32[6,5], index: 19, kind: output, shape index: {}]
  %s20 = sld [smem:[#allocation0]]
  $region86: #{self_attention_predictor_forward.5} parent=0
    _
  %s22 = ssub.s32 1, %s20
  %s23 = scalar_select 0, %s22, %s20
  $region1: #{self_attention_predictor_forward.5} parent=0
    #allocation2 [shape = 'u8[4096]{0}', space=vmem, size = 0x1000, scoped, tag = 'output window, operand 0, single buffered']
    #allocation3 [shape = 's32[1]{0}', space=sflag, size = 0x4, scoped, tag = 'scoped memory for self_attention_predictor_forward.5']
    %24 = vsyncpa [#allocation3], 0
    // Predicated region
    $region2: #{self_attention_predictor_forward.5} parent=1 // pred_check
      _
    $region3: #{self_attention_predictor_forward.5} parent=1 // pred_check_branch
      %26 = sbr.rel (0) target = $region5
    $region4: #{self_attention_predictor_forward.5} parent=1 // pred_region
      _
    $region5: #{self_attention_predictor_forward.5} parent=1 // pred_fallthru
      _
    // Predicated region
    $region6: #{self_attention_predictor_forward.5} parent=1 // pred_check
      _
    $region7: #{self_attention_predictor_forward.5} parent=1 // pred_check_branch
      %28 = sbr.rel (0) target = $region9
    $region8: #{self_attention_predictor_forward.5} parent=1 // pred_region
      _
    $region9: #{self_attention_predictor_forward.5} parent=1 // pred_fallthru
      _
    // Predicated region
    $region10: #{self_attention_predictor_forward.5} parent=1 // pred_check
      _
    $region11: #{self_attention_predictor_forward.5} parent=1 // pred_check_branch
      %30 = sbr.rel (0) target = $region13
    $region12: #{self_attention_predictor_forward.5} parent=1 // pred_region
      _
    $region13: #{self_attention_predictor_forward.5} parent=1 // pred_fallthru
      _
    // Predicated region
    $region14: #{self_attention_predictor_forward.5} parent=1 // pred_check
      _
    $region15: #{self_attention_predictor_forward.5} parent=1 // pred_check_branch
      %32 = sbr.rel (0) target = $region17
    $region16: #{self_attention_predictor_forward.5} parent=1 // pred_region
      _
    $region17: #{self_attention_predictor_forward.5} parent=1 // pred_fallthru
      _
    // Predicated region
    $region18: #{self_attention_predictor_forward.5} parent=1 // pred_check
      _
    $region19: #{self_attention_predictor_forward.5} parent=1 // pred_check_branch
      %34 = sbr.rel (0) target = $region21
    $region20: #{self_attention_predictor_forward.5} parent=1 // pred_region
      _
    $region21: #{self_attention_predictor_forward.5} parent=1 // pred_fallthru
      _
    // Predicated region
    $region22: #{self_attention_predictor_forward.5} parent=1 // pred_check
      _
    $region23: #{self_attention_predictor_forward.5} parent=1 // pred_check_branch
      %36 = sbr.rel (0) target = $region25
    $region24: #{self_attention_predictor_forward.5} parent=1 // pred_region
      _
    $region25: #{self_attention_predictor_forward.5} parent=1 // pred_fallthru
      _
    // Predicated region
    $region26: #{self_attention_predictor_forward.5} parent=1 // pred_check
      _
    $region27: #{self_attention_predictor_forward.5} parent=1 // pred_check_branch
      %38 = sbr.rel (0) target = $region29
    $region28: #{self_attention_predictor_forward.5} parent=1 // pred_region
      _
    $region29: #{self_attention_predictor_forward.5} parent=1 // pred_fallthru
      _
    // Predicated region
    $region30: #{self_attention_predictor_forward.5} parent=1 // pred_check
      _
    $region31: #{self_attention_predictor_forward.5} parent=1 // pred_check_branch
      %40 = sbr.rel (0) target = $region33
    $region32: #{self_attention_predictor_forward.5} parent=1 // pred_region
      _
    $region33: #{self_attention_predictor_forward.5} parent=1 // pred_fallthru
      _
    // Predicated region
    $region34: #{self_attention_predictor_forward.5} parent=1 // pred_check
      _
    $region35: #{self_attention_predictor_forward.5} parent=1 // pred_check_branch
      %42 = sbr.rel (0) target = $region37
    $region36: #{self_attention_predictor_forward.5} parent=1 // pred_region
      _
    $region37: #{self_attention_predictor_forward.5} parent=1 // pred_fallthru
      _
    // Predicated region
    $region38: #{self_attention_predictor_forward.5} parent=1 // pred_check
      _
    $region39: #{self_attention_predictor_forward.5} parent=1 // pred_check_branch
      %44 = sbr.rel (0) target = $region41
    $region40: #{self_attention_predictor_forward.5} parent=1 // pred_region
      _
    $region41: #{self_attention_predictor_forward.5} parent=1 // pred_fallthru
      _
    // Predicated region
    $region42: #{self_attention_predictor_forward.5} parent=1 // pred_check
      _
    $region43: #{self_attention_predictor_forward.5} parent=1 // pred_check_branch
      %46 = sbr.rel (0) target = $region45
    $region44: #{self_attention_predictor_forward.5} parent=1 // pred_region
      _
    $region45: #{self_attention_predictor_forward.5} parent=1 // pred_fallthru
      _
    // Predicated region
    $region46: #{self_attention_predictor_forward.5} parent=1 // pred_check
      _
    $region47: #{self_attention_predictor_forward.5} parent=1 // pred_check_branch
      %48 = sbr.rel (0) target = $region49
    $region48: #{self_attention_predictor_forward.5} parent=1 // pred_region
      _
    $region49: #{self_attention_predictor_forward.5} parent=1 // pred_fallthru
      _
    // Predicated region
    $region50: #{self_attention_predictor_forward.5} parent=1 // pred_check
      _
    $region51: #{self_attention_predictor_forward.5} parent=1 // pred_check_branch
      %50 = sbr.rel (0) target = $region53
    $region52: #{self_attention_predictor_forward.5} parent=1 // pred_region
      _
    $region53: #{self_attention_predictor_forward.5} parent=1 // pred_fallthru
      _
    // Predicated region
    $region54: #{self_attention_predictor_forward.5} parent=1 // pred_check
      _
    $region55: #{self_attention_predictor_forward.5} parent=1 // pred_check_branch
      %52 = sbr.rel (0) target = $region57
    $region56: #{self_attention_predictor_forward.5} parent=1 // pred_region
      _
    $region57: #{self_attention_predictor_forward.5} parent=1 // pred_fallthru
      _
    // Predicated region
    $region58: #{self_attention_predictor_forward.5} parent=1 // pred_check
      _
    $region59: #{self_attention_predictor_forward.5} parent=1 // pred_check_branch
      %54 = sbr.rel (0) target = $region61
    $region60: #{self_attention_predictor_forward.5} parent=1 // pred_region
      _
    $region61: #{self_attention_predictor_forward.5} parent=1 // pred_fallthru
      _
    // Predicated region
    $region62: #{self_attention_predictor_forward.5} parent=1 // pred_check
      _
    $region63: #{self_attention_predictor_forward.5} parent=1 // pred_check_branch
      %56 = sbr.rel (0) target = $region65
    $region64: #{self_attention_predictor_forward.5} parent=1 // pred_region
      _
    $region65: #{self_attention_predictor_forward.5} parent=1 // pred_fallthru
      _
    // Predicated region
    $region66: #{self_attention_predictor_forward.5} parent=1 // pred_check
      _
    $region67: #{self_attention_predictor_forward.5} parent=1 // pred_check_branch
      %58 = sbr.rel (0) target = $region69
    $region68: #{self_attention_predictor_forward.5} parent=1 // pred_region
      _
    $region69: #{self_attention_predictor_forward.5} parent=1 // pred_fallthru
      _
    // Predicated region
    $region70: #{self_attention_predictor_forward.5} parent=1 // pred_check
      _
    $region71: #{self_attention_predictor_forward.5} parent=1 // pred_check_branch
      %60 = sbr.rel (0) target = $region73
    $region72: #{self_attention_predictor_forward.5} parent=1 // pred_region
      _
    $region73: #{self_attention_predictor_forward.5} parent=1 // pred_fallthru
      _
    // Predicated region
    $region74: #{self_attention_predictor_forward.5} parent=1 // pred_check
      _
    $region75: #{self_attention_predictor_forward.5} parent=1 // pred_check_branch
      %62 = sbr.rel (0) target = $region77
    $region76: #{self_attention_predictor_forward.5} parent=1 // pred_region
      _
    $region77: #{self_attention_predictor_forward.5} parent=1 // pred_fallthru
      _
    %v63 = vld [vmem:[%s0] sm:$0x3f]
    %v64 = vld [vmem:[%s0 + $0x8] sm:$0x3f]
    %v65 = vld [vmem:[%s0 + $0x10] sm:$0x3f]
    %v66 = vld [vmem:[%s0 + $0x18] sm:$0x3f]
    %v67 = vld [vmem:[%s1] sm:$0xff]
    %v68 = vld [vmem:[%s1 + $0x8] sm:$0xff]
    %v69 = vld [vmem:[%s1 + $0x10] sm:$0xff]
    %v70 = vld [vmem:[%s1 + $0x18] sm:$0xff]
    %v71 = vld [vmem:[%s1 + $0x20] sm:$0xff]
    %v72 = vld [vmem:[%s1 + $0x28] sm:$0xff]
    %v73 = vld [vmem:[%s1 + $0x30] sm:$0xff]
    %v74 = vld [vmem:[%s1 + $0x38] sm:$0xff]
    %v75 = vld [vmem:[%s1 + $0x40] sm:$0xff]
    %v76 = vld [vmem:[%s1 + $0x48] sm:$0xff]
    %v77 = vld [vmem:[%s1 + $0x50] sm:$0xff]
    %v78 = vld [vmem:[%s1 + $0x58] sm:$0xff]
    %v79 = vld [vmem:[%s1 + $0x60] sm:$0xff]
    %v80 = vld [vmem:[%s1 + $0x68] sm:$0xff]
    %v81 = vld [vmem:[%s1 + $0x70] sm:$0xff]
    %v82 = vld [vmem:[%s1 + $0x78] sm:$0xff]
    %v83 = vld [vmem:[%s1 + $0x80] sm:$0xff]
    %v84 = vld [vmem:[%s1 + $0x88] sm:$0xff]
    %v85 = vld [vmem:[%s1 + $0x90] sm:$0xff]
    %v86 = vld [vmem:[%s1 + $0x98] sm:$0xff]
    %v87 = vld [vmem:[%s1 + $0xa0] sm:$0xff]
    %v88 = vld [vmem:[%s1 + $0xa8] sm:$0xff]
    %v89 = vld [vmem:[%s1 + $0xb0] sm:$0xff]
    %v90 = vld [vmem:[%s1 + $0xb8] sm:$0xff]
    %v91 = vld [vmem:[%s1 + $0xc0] sm:$0xff]
    %v92 = vld [vmem:[%s1 + $0xc8] sm:$0xff]
    %v93 = vld [vmem:[%s1 + $0xd0] sm:$0xff]
    %v94 = vld [vmem:[%s1 + $0xd8] sm:$0xff]
    %v95 = vld [vmem:[%s1 + $0xe0] sm:$0xff]
    %v96 = vld [vmem:[%s1 + $0xe8] sm:$0xff]
    %v97 = vld [vmem:[%s1 + $0xf0] sm:$0xff]
    %v98 = vld [vmem:[%s1 + $0xf8] sm:$0xff]
    %v99 = vld [vmem:[%s1 + $0x100] sm:$0xff]
    %v100 = vld [vmem:[%s1 + $0x108] sm:$0xff]
    %v101 = vld [vmem:[%s1 + $0x110] sm:$0xff]
    %v102 = vld [vmem:[%s1 + $0x118] sm:$0xff]
    %v103 = vld [vmem:[%s1 + $0x120] sm:$0xff]
    %v104 = vld [vmem:[%s1 + $0x128] sm:$0xff]
    %v105 = vld [vmem:[%s1 + $0x130] sm:$0xff]
    %v106 = vld [vmem:[%s1 + $0x138] sm:$0xff]
    %v107 = vld [vmem:[%s1 + $0x140] sm:$0xff]
    %v108 = vld [vmem:[%s1 + $0x148] sm:$0xff]
    %v109 = vld [vmem:[%s1 + $0x150] sm:$0xff]
    %v110 = vld [vmem:[%s1 + $0x158] sm:$0xff]
    %v111 = vld [vmem:[%s1 + $0x160] sm:$0xff]
    %v112 = vld [vmem:[%s1 + $0x168] sm:$0xff]
    %v113 = vld [vmem:[%s1 + $0x170] sm:$0xff]
    %v114 = vld [vmem:[%s1 + $0x178] sm:$0xff]
    %v115 = vld [vmem:[%s1 + $0x180] sm:$0xff]
    %v116 = vld [vmem:[%s1 + $0x188] sm:$0xff]
    %v117 = vld [vmem:[%s1 + $0x190] sm:$0xff]
    %v118 = vld [vmem:[%s1 + $0x198] sm:$0xff]
    %v119 = vld [vmem:[%s1 + $0x1a0] sm:$0xff]
    %v120 = vld [vmem:[%s1 + $0x1a8] sm:$0xff]
    %v121 = vld [vmem:[%s1 + $0x1b0] sm:$0xff]
    %v122 = vld [vmem:[%s1 + $0x1b8] sm:$0xff]
    %v123 = vld [vmem:[%s1 + $0x1c0] sm:$0xff]
    %v124 = vld [vmem:[%s1 + $0x1c8] sm:$0xff]
    %v125 = vld [vmem:[%s1 + $0x1d0] sm:$0xff]
    %v126 = vld [vmem:[%s1 + $0x1d8] sm:$0xff]
    %v127 = vld [vmem:[%s1 + $0x1e0] sm:$0xff]
    %v128 = vld [vmem:[%s1 + $0x1e8] sm:$0xff]
    %v129 = vld [vmem:[%s1 + $0x1f0] sm:$0xff]
    %v130 = vld [vmem:[%s1 + $0x1f8] sm:$0xff]
    %v131 = vld [vmem:[%s2] sm:$0x1]
    %v133 = vlaneseq
    %v134 = vshrl.u32 %v133, 7
    %v135 = vsub.s32 0, %v134
    %v136 = vrot.slane %v131, %v135
    %138 = vmatprep.subr.mxu0 0.0
    %139 = vmatpush1.msra.mxu0 %v67
    %140 = vmatprep.subr.mxu0 0.0
    %141 = vmatpush1.msra.mxu0 %v68
    %142 = vmatprep.subr.mxu0 0.0
    %143 = vmatpush1.msra.mxu0 %v69
    %144 = vmatprep.subr.mxu0 0.0
    %145 = vmatpush1.msra.mxu0 %v70
    %146 = vmatprep.subr.mxu0 0.0
    %147 = vmatpush1.msra.mxu0 %v71
    %148 = vmatprep.subr.mxu0 0.0
    %149 = vmatpush1.msra.mxu0 %v72
    %150 = vmatprep.subr.mxu0 0.0
    %151 = vmatpush1.msra.mxu0 %v73
    %152 = vmatprep.subr.mxu0 0.0
    %153 = vmatpush1.msra.mxu0 %v74
    %154 = vmatprep.subr.mxu0 0.0
    %155 = vmatpush1.msra.mxu0 %v75
    %156 = vmatprep.subr.mxu0 0.0
    %157 = vmatpush1.msra.mxu0 %v76
    %158 = vmatprep.subr.mxu0 0.0
    %159 = vmatpush1.msra.mxu0 %v77
    %160 = vmatprep.subr.mxu0 0.0
    %161 = vmatpush1.msra.mxu0 %v78
    %162 = vmatprep.subr.mxu0 0.0
    %163 = vmatpush1.msra.mxu0 %v79
    %164 = vmatprep.subr.mxu0 0.0
    %165 = vmatpush1.msra.mxu0 %v80
    %166 = vmatprep.subr.mxu0 0.0
    %167 = vmatpush1.msra.mxu0 %v81
    %168 = vmatprep.subr.mxu0 0.0
    %169 = vmatpush1.msra.mxu0 %v82
    %170 = vmatprep.subr.mxu0 0.0
    %171 = vmatpush1.msra.mxu0 %v83
    %172 = vmatprep.subr.mxu0 0.0
    %173 = vmatpush1.msra.mxu0 %v84
    %174 = vmatprep.subr.mxu0 0.0
    %175 = vmatpush1.msra.mxu0 %v85
    %176 = vmatprep.subr.mxu0 0.0
    %177 = vmatpush1.msra.mxu0 %v86
    %178 = vmatprep.subr.mxu0 0.0
    %179 = vmatpush1.msra.mxu0 %v87
    %180 = vmatprep.subr.mxu0 0.0
    %181 = vmatpush1.msra.mxu0 %v88
    %182 = vmatprep.subr.mxu0 0.0
    %183 = vmatpush1.msra.mxu0 %v89
    %184 = vmatprep.subr.mxu0 0.0
    %185 = vmatpush1.msra.mxu0 %v90
    %186 = vmatprep.subr.mxu0 0.0
    %187 = vmatpush1.msra.mxu0 %v91
    %188 = vmatprep.subr.mxu0 0.0
    %189 = vmatpush1.msra.mxu0 %v92
    %190 = vmatprep.subr.mxu0 0.0
    %191 = vmatpush1.msra.mxu0 %v93
    %192 = vmatprep.subr.mxu0 0.0
    %193 = vmatpush1.msra.mxu0 %v94
    %194 = vmatprep.subr.mxu0 0.0
    %195 = vmatpush1.msra.mxu0 %v95
    %196 = vmatprep.subr.mxu0 0.0
    %197 = vmatpush1.msra.mxu0 %v96
    %198 = vmatprep.subr.mxu0 0.0
    %199 = vmatpush1.msra.mxu0 %v97
    %200 = vmatprep.subr.mxu0 0.0
    %201 = vmatpush1.msra.mxu0 %v98
    %202 = vmatprep.mubr.f32.mxu0 %v64
    %203 = vmatmul.mubr.f32.gmra.mrb[0].mxu0 %v63
    %v204 = vpop.f32.mrb[0].mxu0
    %v205 = vadd.f32 %v136, %v204
    %v206 = vpop.f32.mrb[0].mxu0
    %207 = vdwg.mxu0
    %208 = vmatprep.subr.mxu0 0.0
    %209 = vmatpush1.msra.mxu0 %v99
    %210 = vmatprep.subr.mxu0 0.0
    %211 = vmatpush1.msra.mxu0 %v100
    %212 = vmatprep.subr.mxu0 0.0
    %213 = vmatpush1.msra.mxu0 %v101
    %214 = vmatprep.subr.mxu0 0.0
    %215 = vmatpush1.msra.mxu0 %v102
    %216 = vmatprep.subr.mxu0 0.0
    %217 = vmatpush1.msra.mxu0 %v103
    %218 = vmatprep.subr.mxu0 0.0
    %219 = vmatpush1.msra.mxu0 %v104
    %220 = vmatprep.subr.mxu0 0.0
    %221 = vmatpush1.msra.mxu0 %v105
    %222 = vmatprep.subr.mxu0 0.0
    %223 = vmatpush1.msra.mxu0 %v106
    %224 = vmatprep.subr.mxu0 0.0
    %225 = vmatpush1.msra.mxu0 %v107
    %226 = vmatprep.subr.mxu0 0.0
    %227 = vmatpush1.msra.mxu0 %v108
    %228 = vmatprep.subr.mxu0 0.0
    %229 = vmatpush1.msra.mxu0 %v109
    %230 = vmatprep.subr.mxu0 0.0
    %231 = vmatpush1.msra.mxu0 %v110
    %232 = vmatprep.subr.mxu0 0.0
    %233 = vmatpush1.msra.mxu0 %v111
    %234 = vmatprep.subr.mxu0 0.0
    %235 = vmatpush1.msra.mxu0 %v112
    %236 = vmatprep.subr.mxu0 0.0
    %237 = vmatpush1.msra.mxu0 %v113
    %238 = vmatprep.subr.mxu0 0.0
    %239 = vmatpush1.msra.mxu0 %v114
    %240 = vmatprep.subr.mxu0 0.0
    %241 = vmatpush1.msra.mxu0 %v115
    %242 = vmatprep.subr.mxu0 0.0
    %243 = vmatpush1.msra.mxu0 %v116
    %244 = vmatprep.subr.mxu0 0.0
    %245 = vmatpush1.msra.mxu0 %v117
    %246 = vmatprep.subr.mxu0 0.0
    %247 = vmatpush1.msra.mxu0 %v118
    %248 = vmatprep.subr.mxu0 0.0
    %249 = vmatpush1.msra.mxu0 %v119
    %250 = vmatprep.subr.mxu0 0.0
    %251 = vmatpush1.msra.mxu0 %v120
    %252 = vmatprep.subr.mxu0 0.0
    %253 = vmatpush1.msra.mxu0 %v121
    %254 = vmatprep.subr.mxu0 0.0
    %255 = vmatpush1.msra.mxu0 %v122
    %256 = vmatprep.subr.mxu0 0.0
    %257 = vmatpush1.msra.mxu0 %v123
    %258 = vmatprep.subr.mxu0 0.0
    %259 = vmatpush1.msra.mxu0 %v124
    %260 = vmatprep.subr.mxu0 0.0
    %261 = vmatpush1.msra.mxu0 %v125
    %262 = vmatprep.subr.mxu0 0.0
    %263 = vmatpush1.msra.mxu0 %v126
    %264 = vmatprep.subr.mxu0 0.0
    %265 = vmatpush1.msra.mxu0 %v127
    %266 = vmatprep.subr.mxu0 0.0
    %267 = vmatpush1.msra.mxu0 %v128
    %268 = vmatprep.subr.mxu0 0.0
    %269 = vmatpush1.msra.mxu0 %v129
    %270 = vmatprep.subr.mxu0 0.0
    %271 = vmatpush1.msra.mxu0 %v130
    %272 = vmatprep.mubr.f32.mxu0 %v66
    %273 = vmatmul.mubr.f32.gmra.mrb[0].mxu0 %v65
    %v274 = vpop.f32.mrb[0].mxu0
    %v275 = vadd.f32 %v205, %v274
    %v276 = vpop.f32.mrb[0].mxu0
    %277 = vdwg.mxu0
    %v278 = vmax.f32 %v275, 0.0
    %v279 = vld [vmem:[%s3] sm:$0xff]
    %v280 = vld [vmem:[%s3 + $0x8] sm:$0xff]
    %v281 = vld [vmem:[%s3 + $0x10] sm:$0xff]
    %v282 = vld [vmem:[%s3 + $0x18] sm:$0xff]
    %v283 = vld [vmem:[%s4] sm:$0x1]
    %v285 = vlaneseq
    %v286 = vshrl.u32 %v285, 7
    %v287 = vsub.s32 0, %v286
    %v288 = vrot.slane %v283, %v287
    %vm290 = vcmask 261120
    %v292 = vsel %vm290, %v278, 0
    %294 = vmatprep.subr.mxu0 0.0
    %295 = vmatpush1.msra.mxu0 %v279
    %296 = vmatprep.subr.mxu0 0.0
    %297 = vmatpush1.msra.mxu0 %v280
    %298 = vmatprep.subr.mxu0 0.0
    %299 = vmatpush1.msra.mxu0 %v281
    %300 = vmatprep.subr.mxu0 0.0
    %301 = vmatpush1.msra.mxu0 %v282
    %302 = vmatprep.subr.mxu0 0.0
    %303 = vmatpush1.msra.mxu0 0.0
    %304 = vmatprep.subr.mxu0 0.0
    %305 = vmatpush1.msra.mxu0 0.0
    %306 = vmatprep.subr.mxu0 0.0
    %307 = vmatpush1.msra.mxu0 0.0
    %308 = vmatprep.subr.mxu0 0.0
    %309 = vmatpush1.msra.mxu0 0.0
    %310 = vmatprep.subr.mxu0 0.0
    %311 = vmatpush1.msra.mxu0 0.0
    %312 = vmatprep.subr.mxu0 0.0
    %313 = vmatpush1.msra.mxu0 0.0
    %314 = vmatprep.subr.mxu0 0.0
    %315 = vmatpush1.msra.mxu0 0.0
    %316 = vmatprep.subr.mxu0 0.0
    %317 = vmatpush1.msra.mxu0 0.0
    %318 = vmatprep.subr.mxu0 0.0
    %319 = vmatpush1.msra.mxu0 0.0
    %320 = vmatprep.subr.mxu0 0.0
    %321 = vmatpush1.msra.mxu0 0.0
    %322 = vmatprep.subr.mxu0 0.0
    %323 = vmatpush1.msra.mxu0 0.0
    %324 = vmatprep.subr.mxu0 0.0
    %325 = vmatpush1.msra.mxu0 0.0
    %326 = vmatprep.subr.mxu0 0.0
    %327 = vmatpush1.msra.mxu0 0.0
    %328 = vmatprep.subr.mxu0 0.0
    %329 = vmatpush1.msra.mxu0 0.0
    %330 = vmatprep.subr.mxu0 0.0
    %331 = vmatpush1.msra.mxu0 0.0
    %332 = vmatprep.subr.mxu0 0.0
    %333 = vmatpush1.msra.mxu0 0.0
    %334 = vmatprep.subr.mxu0 0.0
    %335 = vmatpush1.msra.mxu0 0.0
    %336 = vmatprep.subr.mxu0 0.0
    %337 = vmatpush1.msra.mxu0 0.0
    %338 = vmatprep.subr.mxu0 0.0
    %339 = vmatpush1.msra.mxu0 0.0
    %340 = vmatprep.subr.mxu0 0.0
    %341 = vmatpush1.msra.mxu0 0.0
    %342 = vmatprep.subr.mxu0 0.0
    %343 = vmatpush1.msra.mxu0 0.0
    %344 = vmatprep.subr.mxu0 0.0
    %345 = vmatpush1.msra.mxu0 0.0
    %346 = vmatprep.subr.mxu0 0.0
    %347 = vmatpush1.msra.mxu0 0.0
    %348 = vmatprep.subr.mxu0 0.0
    %349 = vmatpush1.msra.mxu0 0.0
    %350 = vmatprep.subr.mxu0 0.0
    %351 = vmatpush1.msra.mxu0 0.0
    %352 = vmatprep.subr.mxu0 0.0
    %353 = vmatpush1.msra.mxu0 0.0
    %354 = vmatprep.subr.mxu0 0.0
    %355 = vmatpush1.msra.mxu0 0.0
    %356 = vmatprep.subr.mxu0 0.0
    %357 = vmatpush1.msra.mxu0 0.0
    %358 = vmatprep.mubr.f32.mxu0 0.0
    %359 = vmatmul.mubr.f32.gmra.mrb[0].mxu0 %v292
    %v360 = vpop.f32.mrb[0].mxu0
    %v361 = vadd.f32 %v288, %v360
    %v362 = vpop.f32.mrb[0].mxu0
    %363 = vdwg.mxu0
    %v364 = vmax.f32 %v361, 0.0
    %v365 = vld [vmem:[%s5] sm:$0xff]
    %v366 = vld [vmem:[%s5 + $0x8] sm:$0xff]
    %v367 = vld [vmem:[%s6] sm:$0x1]
    %v368 = vld [vmem:[%s7] sm:$0xff]
    %v369 = vld [vmem:[%s7 + $0x8] sm:$0xff]
    %v370 = vld [vmem:[%s8] sm:$0x1]
    %v372 = vlaneseq
    %v373 = vshrl.u32 %v372, 7
    %v374 = vsub.s32 0, %v373
    %v375 = vrot.slane %v367, %v374
    %vm377 = vcmask 130048
    %v379 = vsel %vm377, %v364, 0
    %381 = vmatprep.subr.mxu0 0.0
    %382 = vmatpush1.msra.mxu0 %v365
    %383 = vmatprep.subr.mxu0 0.0
    %384 = vmatpush1.msra.mxu0 %v366
    %385 = vmatprep.subr.mxu0 0.0
    %386 = vmatpush1.msra.mxu0 0.0
    %387 = vmatprep.subr.mxu0 0.0
    %388 = vmatpush1.msra.mxu0 0.0
    %389 = vmatprep.subr.mxu0 0.0
    %390 = vmatpush1.msra.mxu0 0.0
    %391 = vmatprep.subr.mxu0 0.0
    %392 = vmatpush1.msra.mxu0 0.0
    %393 = vmatprep.subr.mxu0 0.0
    %394 = vmatpush1.msra.mxu0 0.0
    %395 = vmatprep.subr.mxu0 0.0
    %396 = vmatpush1.msra.mxu0 0.0
    %397 = vmatprep.subr.mxu0 0.0
    %398 = vmatpush1.msra.mxu0 0.0
    %399 = vmatprep.subr.mxu0 0.0
    %400 = vmatpush1.msra.mxu0 0.0
    %401 = vmatprep.subr.mxu0 0.0
    %402 = vmatpush1.msra.mxu0 0.0
    %403 = vmatprep.subr.mxu0 0.0
    %404 = vmatpush1.msra.mxu0 0.0
    %405 = vmatprep.subr.mxu0 0.0
    %406 = vmatpush1.msra.mxu0 0.0
    %407 = vmatprep.subr.mxu0 0.0
    %408 = vmatpush1.msra.mxu0 0.0
    %409 = vmatprep.subr.mxu0 0.0
    %410 = vmatpush1.msra.mxu0 0.0
    %411 = vmatprep.subr.mxu0 0.0
    %412 = vmatpush1.msra.mxu0 0.0
    %413 = vmatprep.subr.mxu0 0.0
    %414 = vmatpush1.msra.mxu0 0.0
    %415 = vmatprep.subr.mxu0 0.0
    %416 = vmatpush1.msra.mxu0 0.0
    %417 = vmatprep.subr.mxu0 0.0
    %418 = vmatpush1.msra.mxu0 0.0
    %419 = vmatprep.subr.mxu0 0.0
    %420 = vmatpush1.msra.mxu0 0.0
    %421 = vmatprep.subr.mxu0 0.0
    %422 = vmatpush1.msra.mxu0 0.0
    %423 = vmatprep.subr.mxu0 0.0
    %424 = vmatpush1.msra.mxu0 0.0
    %425 = vmatprep.subr.mxu0 0.0
    %426 = vmatpush1.msra.mxu0 0.0
    %427 = vmatprep.subr.mxu0 0.0
    %428 = vmatpush1.msra.mxu0 0.0
    %429 = vmatprep.subr.mxu0 0.0
    %430 = vmatpush1.msra.mxu0 0.0
    %431 = vmatprep.subr.mxu0 0.0
    %432 = vmatpush1.msra.mxu0 0.0
    %433 = vmatprep.subr.mxu0 0.0
    %434 = vmatpush1.msra.mxu0 0.0
    %435 = vmatprep.subr.mxu0 0.0
    %436 = vmatpush1.msra.mxu0 0.0
    %437 = vmatprep.subr.mxu0 0.0
    %438 = vmatpush1.msra.mxu0 0.0
    %439 = vmatprep.subr.mxu0 0.0
    %440 = vmatpush1.msra.mxu0 0.0
    %441 = vmatprep.subr.mxu0 0.0
    %442 = vmatpush1.msra.mxu0 0.0
    %443 = vmatprep.subr.mxu0 0.0
    %444 = vmatpush1.msra.mxu0 0.0
    %445 = vmatprep.mubr.f32.mxu0 0.0
    %446 = vmatmul.mubr.f32.gmra.mrb[0].mxu0 %v379
    %v447 = vpop.f32.mrb[0].mxu0
    %v448 = vadd.f32 %v375, %v447
    %v449 = vpop.f32.mrb[0].mxu0
    %450 = vdwg.mxu0
    %452 = vrot.lane.b32.xlu0 %v448, 112
    %v453 = vpop.permute.xlu0 %452
    %vm454 = vcmask 31744
    %v455 = vsel %vm454, %v448, 0
    %v457 = vsel %vm454, %v453, 0
    %459 = vmatprep.subr.mxu0 0.0
    %460 = vmatpush1.xpose.msra.mxu0 %v457
    %461 = vmatprep.subr.mxu0 0.0
    %462 = vmatpush1.xpose.msra.mxu0 0.0
    %463 = vmatprep.subr.mxu0 0.0
    %464 = vmatpush1.xpose.msra.mxu0 0.0
    %465 = vmatprep.subr.mxu0 0.0
    %466 = vmatpush1.xpose.msra.mxu0 0.0
    %467 = vmatprep.subr.mxu0 0.0
    %468 = vmatpush1.xpose.msra.mxu0 0.0
    %469 = vmatprep.subr.mxu0 0.0
    %470 = vmatpush1.xpose.msra.mxu0 0.0
    %471 = vmatprep.subr.mxu0 0.0
    %472 = vmatpush1.xpose.msra.mxu0 0.0
    %473 = vmatprep.subr.mxu0 0.0
    %474 = vmatpush1.xpose.msra.mxu0 0.0
    %475 = vmatprep.subr.mxu0 0.0
    %476 = vmatpush1.xpose.msra.mxu0 0.0
    %477 = vmatprep.subr.mxu0 0.0
    %478 = vmatpush1.xpose.msra.mxu0 0.0
    %479 = vmatprep.subr.mxu0 0.0
    %480 = vmatpush1.xpose.msra.mxu0 0.0
    %481 = vmatprep.subr.mxu0 0.0
    %482 = vmatpush1.xpose.msra.mxu0 0.0
    %483 = vmatprep.subr.mxu0 0.0
    %484 = vmatpush1.xpose.msra.mxu0 0.0
    %485 = vmatprep.subr.mxu0 0.0
    %486 = vmatpush1.xpose.msra.mxu0 0.0
    %487 = vmatprep.subr.mxu0 0.0
    %488 = vmatpush1.xpose.msra.mxu0 0.0
    %489 = vmatprep.subr.mxu0 0.0
    %490 = vmatpush1.xpose.msra.mxu0 0.0
    %491 = vmatprep.subr.mxu0 0.0
    %492 = vmatpush1.xpose.msra.mxu0 0.0
    %493 = vmatprep.subr.mxu0 0.0
    %494 = vmatpush1.xpose.msra.mxu0 0.0
    %495 = vmatprep.subr.mxu0 0.0
    %496 = vmatpush1.xpose.msra.mxu0 0.0
    %497 = vmatprep.subr.mxu0 0.0
    %498 = vmatpush1.xpose.msra.mxu0 0.0
    %499 = vmatprep.subr.mxu0 0.0
    %500 = vmatpush1.xpose.msra.mxu0 0.0
    %501 = vmatprep.subr.mxu0 0.0
    %502 = vmatpush1.xpose.msra.mxu0 0.0
    %503 = vmatprep.subr.mxu0 0.0
    %504 = vmatpush1.xpose.msra.mxu0 0.0
    %505 = vmatprep.subr.mxu0 0.0
    %506 = vmatpush1.xpose.msra.mxu0 0.0
    %507 = vmatprep.subr.mxu0 0.0
    %508 = vmatpush1.xpose.msra.mxu0 0.0
    %509 = vmatprep.subr.mxu0 0.0
    %510 = vmatpush1.xpose.msra.mxu0 0.0
    %511 = vmatprep.subr.mxu0 0.0
    %512 = vmatpush1.xpose.msra.mxu0 0.0
    %513 = vmatprep.subr.mxu0 0.0
    %514 = vmatpush1.xpose.msra.mxu0 0.0
    %515 = vmatprep.subr.mxu0 0.0
    %516 = vmatpush1.xpose.msra.mxu0 0.0
    %517 = vmatprep.subr.mxu0 0.0
    %518 = vmatpush1.xpose.msra.mxu0 0.0
    %519 = vmatprep.subr.mxu0 0.0
    %520 = vmatpush1.xpose.msra.mxu0 0.0
    %521 = vmatprep.subr.mxu0 0.0
    %522 = vmatpush1.xpose.msra.mxu0 0.0
    %523 = vmatprep.mubr.f32.mxu0 0.0
    %524 = vmatmul.mubr.f32.gmra.mrb[0].mxu0 %v455
    %v525 = vpop.f32.mrb[0].mxu0
    %v526 = vadd.f32 0.0, %v525
    %v527 = vpop.f32.mrb[0].mxu0
    %528 = vdwg.mxu0
    %v529 = vmul.f32 %v526, 0.5
    %vm530 = vcmask 46080
    %v531 = vsel %vm530, %v529, -inf
    %532 = vmax.xlane.f32.xlu0 %v531
    %v533 = vpop.xlane.xlu0 %532
    %v534 = vsub.f32 %v529, %v533
    %v535 = vmul.f32 %v534, 1.442695
    %v536 = vpow.pop %v535
    %v537 = vsel %vm530, %v536, 0.0
    %538 = vadd.xlane.f32.xlu0 %v537
    %v539 = vpop.xlane.xlu0 %538
    %v540 = vrcp.pop %v539
    %v541 = vmul.f32 %v536, %v540
    %542 = vrot.lane.b32.xlu0 %v448, 96
    %v543 = vpop.permute.xlu0 %542
    %vm544 = vcmask 48128
    %v546 = vsel %vm544, %v541, 0
    %vm548 = vcmask 1045504
    %v549 = vsel %vm548, %v543, 0
    %551 = vmatprep.subr.mxu0 0.0
    %552 = vmatpush1.msra.mxu0 %v549
    %553 = vmatprep.subr.mxu0 0.0
    %554 = vmatpush1.msra.mxu0 0.0
    %555 = vmatprep.subr.mxu0 0.0
    %556 = vmatpush1.msra.mxu0 0.0
    %557 = vmatprep.subr.mxu0 0.0
    %558 = vmatpush1.msra.mxu0 0.0
    %559 = vmatprep.subr.mxu0 0.0
    %560 = vmatpush1.msra.mxu0 0.0
    %561 = vmatprep.subr.mxu0 0.0
    %562 = vmatpush1.msra.mxu0 0.0
    %563 = vmatprep.subr.mxu0 0.0
    %564 = vmatpush1.msra.mxu0 0.0
    %565 = vmatprep.subr.mxu0 0.0
    %566 = vmatpush1.msra.mxu0 0.0
    %567 = vmatprep.subr.mxu0 0.0
    %568 = vmatpush1.msra.mxu0 0.0
    %569 = vmatprep.subr.mxu0 0.0
    %570 = vmatpush1.msra.mxu0 0.0
    %571 = vmatprep.subr.mxu0 0.0
    %572 = vmatpush1.msra.mxu0 0.0
    %573 = vmatprep.subr.mxu0 0.0
    %574 = vmatpush1.msra.mxu0 0.0
    %575 = vmatprep.subr.mxu0 0.0
    %576 = vmatpush1.msra.mxu0 0.0
    %577 = vmatprep.subr.mxu0 0.0
    %578 = vmatpush1.msra.mxu0 0.0
    %579 = vmatprep.subr.mxu0 0.0
    %580 = vmatpush1.msra.mxu0 0.0
    %581 = vmatprep.subr.mxu0 0.0
    %582 = vmatpush1.msra.mxu0 0.0
    %583 = vmatprep.subr.mxu0 0.0
    %584 = vmatpush1.msra.mxu0 0.0
    %585 = vmatprep.subr.mxu0 0.0
    %586 = vmatpush1.msra.mxu0 0.0
    %587 = vmatprep.subr.mxu0 0.0
    %588 = vmatpush1.msra.mxu0 0.0
    %589 = vmatprep.subr.mxu0 0.0
    %590 = vmatpush1.msra.mxu0 0.0
    %591 = vmatprep.subr.mxu0 0.0
    %592 = vmatpush1.msra.mxu0 0.0
    %593 = vmatprep.subr.mxu0 0.0
    %594 = vmatpush1.msra.mxu0 0.0
    %595 = vmatprep.subr.mxu0 0.0
    %596 = vmatpush1.msra.mxu0 0.0
    %597 = vmatprep.subr.mxu0 0.0
    %598 = vmatpush1.msra.mxu0 0.0
    %599 = vmatprep.subr.mxu0 0.0
    %600 = vmatpush1.msra.mxu0 0.0
    %601 = vmatprep.subr.mxu0 0.0
    %602 = vmatpush1.msra.mxu0 0.0
    %603 = vmatprep.subr.mxu0 0.0
    %604 = vmatpush1.msra.mxu0 0.0
    %605 = vmatprep.subr.mxu0 0.0
    %606 = vmatpush1.msra.mxu0 0.0
    %607 = vmatprep.subr.mxu0 0.0
    %608 = vmatpush1.msra.mxu0 0.0
    %609 = vmatprep.subr.mxu0 0.0
    %610 = vmatpush1.msra.mxu0 0.0
    %611 = vmatprep.subr.mxu0 0.0
    %612 = vmatpush1.msra.mxu0 0.0
    %613 = vmatprep.subr.mxu0 0.0
    %614 = vmatpush1.msra.mxu0 0.0
    %615 = vmatprep.mubr.f32.mxu0 0.0
    %616 = vmatmul.mubr.f32.gmra.mrb[0].mxu0 %v546
    %v617 = vpop.f32.mrb[0].mxu0
    %v618 = vadd.f32 0.0, %v617
    %v619 = vpop.f32.mrb[0].mxu0
    %620 = vdwg.mxu0
    %621 = vrot.lane.b32.xlu0 %v448, 124
    %v622 = vpop.permute.xlu0 %621
    %623 = vrot.lane.b32.xlu0 %v448, 108
    %v624 = vpop.permute.xlu0 %623
    %v625 = vsel %vm454, %v622, 0
    %v627 = vsel %vm454, %v624, 0
    %629 = vmatprep.subr.mxu0 0.0
    %630 = vmatpush1.xpose.msra.mxu0 %v627
    %631 = vmatprep.subr.mxu0 0.0
    %632 = vmatpush1.xpose.msra.mxu0 0.0
    %633 = vmatprep.subr.mxu0 0.0
    %634 = vmatpush1.xpose.msra.mxu0 0.0
    %635 = vmatprep.subr.mxu0 0.0
    %636 = vmatpush1.xpose.msra.mxu0 0.0
    %637 = vmatprep.subr.mxu0 0.0
    %638 = vmatpush1.xpose.msra.mxu0 0.0
    %639 = vmatprep.subr.mxu0 0.0
    %640 = vmatpush1.xpose.msra.mxu0 0.0
    %641 = vmatprep.subr.mxu0 0.0
    %642 = vmatpush1.xpose.msra.mxu0 0.0
    %643 = vmatprep.subr.mxu0 0.0
    %644 = vmatpush1.xpose.msra.mxu0 0.0
    %645 = vmatprep.subr.mxu0 0.0
    %646 = vmatpush1.xpose.msra.mxu0 0.0
    %647 = vmatprep.subr.mxu0 0.0
    %648 = vmatpush1.xpose.msra.mxu0 0.0
    %649 = vmatprep.subr.mxu0 0.0
    %650 = vmatpush1.xpose.msra.mxu0 0.0
    %651 = vmatprep.subr.mxu0 0.0
    %652 = vmatpush1.xpose.msra.mxu0 0.0
    %653 = vmatprep.subr.mxu0 0.0
    %654 = vmatpush1.xpose.msra.mxu0 0.0
    %655 = vmatprep.subr.mxu0 0.0
    %656 = vmatpush1.xpose.msra.mxu0 0.0
    %657 = vmatprep.subr.mxu0 0.0
    %658 = vmatpush1.xpose.msra.mxu0 0.0
    %659 = vmatprep.subr.mxu0 0.0
    %660 = vmatpush1.xpose.msra.mxu0 0.0
    %661 = vmatprep.subr.mxu0 0.0
    %662 = vmatpush1.xpose.msra.mxu0 0.0
    %663 = vmatprep.subr.mxu0 0.0
    %664 = vmatpush1.xpose.msra.mxu0 0.0
    %665 = vmatprep.subr.mxu0 0.0
    %666 = vmatpush1.xpose.msra.mxu0 0.0
    %667 = vmatprep.subr.mxu0 0.0
    %668 = vmatpush1.xpose.msra.mxu0 0.0
    %669 = vmatprep.subr.mxu0 0.0
    %670 = vmatpush1.xpose.msra.mxu0 0.0
    %671 = vmatprep.subr.mxu0 0.0
    %672 = vmatpush1.xpose.msra.mxu0 0.0
    %673 = vmatprep.subr.mxu0 0.0
    %674 = vmatpush1.xpose.msra.mxu0 0.0
    %675 = vmatprep.subr.mxu0 0.0
    %676 = vmatpush1.xpose.msra.mxu0 0.0
    %677 = vmatprep.subr.mxu0 0.0
    %678 = vmatpush1.xpose.msra.mxu0 0.0
    %679 = vmatprep.subr.mxu0 0.0
    %680 = vmatpush1.xpose.msra.mxu0 0.0
    %681 = vmatprep.subr.mxu0 0.0
    %682 = vmatpush1.xpose.msra.mxu0 0.0
    %683 = vmatprep.subr.mxu0 0.0
    %684 = vmatpush1.xpose.msra.mxu0 0.0
    %685 = vmatprep.subr.mxu0 0.0
    %686 = vmatpush1.xpose.msra.mxu0 0.0
    %687 = vmatprep.subr.mxu0 0.0
    %688 = vmatpush1.xpose.msra.mxu0 0.0
    %689 = vmatprep.subr.mxu0 0.0
    %690 = vmatpush1.xpose.msra.mxu0 0.0
    %691 = vmatprep.subr.mxu0 0.0
    %692 = vmatpush1.xpose.msra.mxu0 0.0
    %693 = vmatprep.mubr.f32.mxu0 0.0
    %694 = vmatmul.mubr.f32.gmra.mrb[0].mxu0 %v625
    %v695 = vpop.f32.mrb[0].mxu0
    %v696 = vadd.f32 0.0, %v695
    %v697 = vpop.f32.mrb[0].mxu0
    %698 = vdwg.mxu0
    %v699 = vmul.f32 %v696, 0.5
    %v700 = vsel %vm530, %v699, -inf
    %701 = vmax.xlane.f32.xlu0 %v700
    %v702 = vpop.xlane.xlu0 %701
    %v703 = vsub.f32 %v699, %v702
    %v704 = vmul.f32 %v703, 1.442695
    %v705 = vpow.pop %v704
    %v706 = vsel %vm530, %v705, 0.0
    %707 = vadd.xlane.f32.xlu0 %v706
    %v708 = vpop.xlane.xlu0 %707
    %v709 = vrcp.pop %v708
    %v710 = vmul.f32 %v705, %v709
    %711 = vrot.lane.b32.xlu0 %v448, 92
    %v712 = vpop.permute.xlu0 %711
    %v714 = vsel %vm544, %v710, 0
    %v716 = vsel %vm548, %v712, 0
    %718 = vmatprep.subr.mxu0 0.0
    %719 = vmatpush1.msra.mxu0 %v716
    %720 = vmatprep.subr.mxu0 0.0
    %721 = vmatpush1.msra.mxu0 0.0
    %722 = vmatprep.subr.mxu0 0.0
    %723 = vmatpush1.msra.mxu0 0.0
    %724 = vmatprep.subr.mxu0 0.0
    %725 = vmatpush1.msra.mxu0 0.0
    %726 = vmatprep.subr.mxu0 0.0
    %727 = vmatpush1.msra.mxu0 0.0
    %728 = vmatprep.subr.mxu0 0.0
    %729 = vmatpush1.msra.mxu0 0.0
    %730 = vmatprep.subr.mxu0 0.0
    %731 = vmatpush1.msra.mxu0 0.0
    %732 = vmatprep.subr.mxu0 0.0
    %733 = vmatpush1.msra.mxu0 0.0
    %734 = vmatprep.subr.mxu0 0.0
    %735 = vmatpush1.msra.mxu0 0.0
    %736 = vmatprep.subr.mxu0 0.0
    %737 = vmatpush1.msra.mxu0 0.0
    %738 = vmatprep.subr.mxu0 0.0
    %739 = vmatpush1.msra.mxu0 0.0
    %740 = vmatprep.subr.mxu0 0.0
    %741 = vmatpush1.msra.mxu0 0.0
    %742 = vmatprep.subr.mxu0 0.0
    %743 = vmatpush1.msra.mxu0 0.0
    %744 = vmatprep.subr.mxu0 0.0
    %745 = vmatpush1.msra.mxu0 0.0
    %746 = vmatprep.subr.mxu0 0.0
    %747 = vmatpush1.msra.mxu0 0.0
    %748 = vmatprep.subr.mxu0 0.0
    %749 = vmatpush1.msra.mxu0 0.0
    %750 = vmatprep.subr.mxu0 0.0
    %751 = vmatpush1.msra.mxu0 0.0
    %752 = vmatprep.subr.mxu0 0.0
    %753 = vmatpush1.msra.mxu0 0.0
    %754 = vmatprep.subr.mxu0 0.0
    %755 = vmatpush1.msra.mxu0 0.0
    %756 = vmatprep.subr.mxu0 0.0
    %757 = vmatpush1.msra.mxu0 0.0
    %758 = vmatprep.subr.mxu0 0.0
    %759 = vmatpush1.msra.mxu0 0.0
    %760 = vmatprep.subr.mxu0 0.0
    %761 = vmatpush1.msra.mxu0 0.0
    %762 = vmatprep.subr.mxu0 0.0
    %763 = vmatpush1.msra.mxu0 0.0
    %764 = vmatprep.subr.mxu0 0.0
    %765 = vmatpush1.msra.mxu0 0.0
    %766 = vmatprep.subr.mxu0 0.0
    %767 = vmatpush1.msra.mxu0 0.0
    %768 = vmatprep.subr.mxu0 0.0
    %769 = vmatpush1.msra.mxu0 0.0
    %770 = vmatprep.subr.mxu0 0.0
    %771 = vmatpush1.msra.mxu0 0.0
    %772 = vmatprep.subr.mxu0 0.0
    %773 = vmatpush1.msra.mxu0 0.0
    %774 = vmatprep.subr.mxu0 0.0
    %775 = vmatpush1.msra.mxu0 0.0
    %776 = vmatprep.subr.mxu0 0.0
    %777 = vmatpush1.msra.mxu0 0.0
    %778 = vmatprep.subr.mxu0 0.0
    %779 = vmatpush1.msra.mxu0 0.0
    %780 = vmatprep.subr.mxu0 0.0
    %781 = vmatpush1.msra.mxu0 0.0
    %782 = vmatprep.mubr.f32.mxu0 0.0
    %783 = vmatmul.mubr.f32.gmra.mrb[0].mxu0 %v714
    %v784 = vpop.f32.mrb[0].mxu0
    %v785 = vadd.f32 0.0, %v784
    %v786 = vpop.f32.mrb[0].mxu0
    %787 = vdwg.mxu0
    %v789 = vrot.slane %v368, 4
    %v791 = vsel %vm454, %v785, 0
    %vm793 = vcmask 1043456
    %v794 = vsel %vm793, %v789, 0
    %796 = vmatprep.subr.mxu0 0.0
    %797 = vmatpush1.msra.mxu0 %v794
    %798 = vmatprep.subr.mxu0 0.0
    %799 = vmatpush1.msra.mxu0 0.0
    %800 = vmatprep.subr.mxu0 0.0
    %801 = vmatpush1.msra.mxu0 0.0
    %802 = vmatprep.subr.mxu0 0.0
    %803 = vmatpush1.msra.mxu0 0.0
    %804 = vmatprep.subr.mxu0 0.0
    %805 = vmatpush1.msra.mxu0 0.0
    %806 = vmatprep.subr.mxu0 0.0
    %807 = vmatpush1.msra.mxu0 0.0
    %808 = vmatprep.subr.mxu0 0.0
    %809 = vmatpush1.msra.mxu0 0.0
    %810 = vmatprep.subr.mxu0 0.0
    %811 = vmatpush1.msra.mxu0 0.0
    %812 = vmatprep.subr.mxu0 0.0
    %813 = vmatpush1.msra.mxu0 0.0
    %814 = vmatprep.subr.mxu0 0.0
    %815 = vmatpush1.msra.mxu0 0.0
    %816 = vmatprep.subr.mxu0 0.0
    %817 = vmatpush1.msra.mxu0 0.0
    %818 = vmatprep.subr.mxu0 0.0
    %819 = vmatpush1.msra.mxu0 0.0
    %820 = vmatprep.subr.mxu0 0.0
    %821 = vmatpush1.msra.mxu0 0.0
    %822 = vmatprep.subr.mxu0 0.0
    %823 = vmatpush1.msra.mxu0 0.0
    %824 = vmatprep.subr.mxu0 0.0
    %825 = vmatpush1.msra.mxu0 0.0
    %826 = vmatprep.subr.mxu0 0.0
    %827 = vmatpush1.msra.mxu0 0.0
    %828 = vmatprep.subr.mxu0 0.0
    %829 = vmatpush1.msra.mxu0 0.0
    %830 = vmatprep.subr.mxu0 0.0
    %831 = vmatpush1.msra.mxu0 0.0
    %832 = vmatprep.subr.mxu0 0.0
    %833 = vmatpush1.msra.mxu0 0.0
    %834 = vmatprep.subr.mxu0 0.0
    %835 = vmatpush1.msra.mxu0 0.0
    %836 = vmatprep.subr.mxu0 0.0
    %837 = vmatpush1.msra.mxu0 0.0
    %838 = vmatprep.subr.mxu0 0.0
    %839 = vmatpush1.msra.mxu0 0.0
    %840 = vmatprep.subr.mxu0 0.0
    %841 = vmatpush1.msra.mxu0 0.0
    %842 = vmatprep.subr.mxu0 0.0
    %843 = vmatpush1.msra.mxu0 0.0
    %844 = vmatprep.subr.mxu0 0.0
    %845 = vmatpush1.msra.mxu0 0.0
    %846 = vmatprep.subr.mxu0 0.0
    %847 = vmatpush1.msra.mxu0 0.0
    %848 = vmatprep.subr.mxu0 0.0
    %849 = vmatpush1.msra.mxu0 0.0
    %850 = vmatprep.subr.mxu0 0.0
    %851 = vmatpush1.msra.mxu0 0.0
    %852 = vmatprep.subr.mxu0 0.0
    %853 = vmatpush1.msra.mxu0 0.0
    %854 = vmatprep.subr.mxu0 0.0
    %855 = vmatpush1.msra.mxu0 0.0
    %856 = vmatprep.subr.mxu0 0.0
    %857 = vmatpush1.msra.mxu0 0.0
    %858 = vmatprep.subr.mxu0 0.0
    %859 = vmatpush1.msra.mxu0 0.0
    %860 = vmatprep.mubr.f32.mxu0 0.0
    %861 = vmatmul.mubr.f32.gmra.mrb[0].mxu0 %v791
    %v862 = vpop.f32.mrb[0].mxu0
    %v863 = vadd.f32 0.0, %v862
    %v864 = vpop.f32.mrb[0].mxu0
    %865 = vdwg.mxu0
    %v867 = vsel %vm454, %v618, 0
    %v869 = vsel %vm793, %v368, 0
    %871 = vmatprep.subr.mxu0 0.0
    %872 = vmatpush1.msra.mxu0 %v869
    %873 = vmatprep.subr.mxu0 0.0
    %874 = vmatpush1.msra.mxu0 0.0
    %875 = vmatprep.subr.mxu0 0.0
    %876 = vmatpush1.msra.mxu0 0.0
    %877 = vmatprep.subr.mxu0 0.0
    %878 = vmatpush1.msra.mxu0 0.0
    %879 = vmatprep.subr.mxu0 0.0
    %880 = vmatpush1.msra.mxu0 0.0
    %881 = vmatprep.subr.mxu0 0.0
    %882 = vmatpush1.msra.mxu0 0.0
    %883 = vmatprep.subr.mxu0 0.0
    %884 = vmatpush1.msra.mxu0 0.0
    %885 = vmatprep.subr.mxu0 0.0
    %886 = vmatpush1.msra.mxu0 0.0
    %887 = vmatprep.subr.mxu0 0.0
    %888 = vmatpush1.msra.mxu0 0.0
    %889 = vmatprep.subr.mxu0 0.0
    %890 = vmatpush1.msra.mxu0 0.0
    %891 = vmatprep.subr.mxu0 0.0
    %892 = vmatpush1.msra.mxu0 0.0
    %893 = vmatprep.subr.mxu0 0.0
    %894 = vmatpush1.msra.mxu0 0.0
    %895 = vmatprep.subr.mxu0 0.0
    %896 = vmatpush1.msra.mxu0 0.0
    %897 = vmatprep.subr.mxu0 0.0
    %898 = vmatpush1.msra.mxu0 0.0
    %899 = vmatprep.subr.mxu0 0.0
    %900 = vmatpush1.msra.mxu0 0.0
    %901 = vmatprep.subr.mxu0 0.0
    %902 = vmatpush1.msra.mxu0 0.0
    %903 = vmatprep.subr.mxu0 0.0
    %904 = vmatpush1.msra.mxu0 0.0
    %905 = vmatprep.subr.mxu0 0.0
    %906 = vmatpush1.msra.mxu0 0.0
    %907 = vmatprep.subr.mxu0 0.0
    %908 = vmatpush1.msra.mxu0 0.0
    %909 = vmatprep.subr.mxu0 0.0
    %910 = vmatpush1.msra.mxu0 0.0
    %911 = vmatprep.subr.mxu0 0.0
    %912 = vmatpush1.msra.mxu0 0.0
    %913 = vmatprep.subr.mxu0 0.0
    %914 = vmatpush1.msra.mxu0 0.0
    %915 = vmatprep.subr.mxu0 0.0
    %916 = vmatpush1.msra.mxu0 0.0
    %917 = vmatprep.subr.mxu0 0.0
    %918 = vmatpush1.msra.mxu0 0.0
    %919 = vmatprep.subr.mxu0 0.0
    %920 = vmatpush1.msra.mxu0 0.0
    %921 = vmatprep.subr.mxu0 0.0
    %922 = vmatpush1.msra.mxu0 0.0
    %923 = vmatprep.subr.mxu0 0.0
    %924 = vmatpush1.msra.mxu0 0.0
    %925 = vmatprep.subr.mxu0 0.0
    %926 = vmatpush1.msra.mxu0 0.0
    %927 = vmatprep.subr.mxu0 0.0
    %928 = vmatpush1.msra.mxu0 0.0
    %929 = vmatprep.subr.mxu0 0.0
    %930 = vmatpush1.msra.mxu0 0.0
    %931 = vmatprep.subr.mxu0 0.0
    %932 = vmatpush1.msra.mxu0 0.0
    %933 = vmatprep.subr.mxu0 0.0
    %934 = vmatpush1.msra.mxu0 0.0
    %935 = vmatprep.mubr.f32.mxu0 0.0
    %936 = vmatmul.mubr.f32.gmra.mrb[0].mxu0 %v867
    %v937 = vpop.f32.mrb[0].mxu0
    %v938 = vadd.f32 %v863, %v937
    %v939 = vpop.f32.mrb[0].mxu0
    %940 = vdwg.mxu0
    %941 = vrot.lane.b32.xlu0 %v448, 120
    %v942 = vpop.permute.xlu0 %941
    %943 = vrot.lane.b32.xlu0 %v448, 104
    %v944 = vpop.permute.xlu0 %943
    %v945 = vsel %vm454, %v942, 0
    %v947 = vsel %vm454, %v944, 0
    %949 = vmatprep.subr.mxu0 0.0
    %950 = vmatpush1.xpose.msra.mxu0 %v947
    %951 = vmatprep.subr.mxu0 0.0
    %952 = vmatpush1.xpose.msra.mxu0 0.0
    %953 = vmatprep.subr.mxu0 0.0
    %954 = vmatpush1.xpose.msra.mxu0 0.0
    %955 = vmatprep.subr.mxu0 0.0
    %956 = vmatpush1.xpose.msra.mxu0 0.0
    %957 = vmatprep.subr.mxu0 0.0
    %958 = vmatpush1.xpose.msra.mxu0 0.0
    %959 = vmatprep.subr.mxu0 0.0
    %960 = vmatpush1.xpose.msra.mxu0 0.0
    %961 = vmatprep.subr.mxu0 0.0
    %962 = vmatpush1.xpose.msra.mxu0 0.0
    %963 = vmatprep.subr.mxu0 0.0
    %964 = vmatpush1.xpose.msra.mxu0 0.0
    %965 = vmatprep.subr.mxu0 0.0
    %966 = vmatpush1.xpose.msra.mxu0 0.0
    %967 = vmatprep.subr.mxu0 0.0
    %968 = vmatpush1.xpose.msra.mxu0 0.0
    %969 = vmatprep.subr.mxu0 0.0
    %970 = vmatpush1.xpose.msra.mxu0 0.0
    %971 = vmatprep.subr.mxu0 0.0
    %972 = vmatpush1.xpose.msra.mxu0 0.0
    %973 = vmatprep.subr.mxu0 0.0
    %974 = vmatpush1.xpose.msra.mxu0 0.0
    %975 = vmatprep.subr.mxu0 0.0
    %976 = vmatpush1.xpose.msra.mxu0 0.0
    %977 = vmatprep.subr.mxu0 0.0
    %978 = vmatpush1.xpose.msra.mxu0 0.0
    %979 = vmatprep.subr.mxu0 0.0
    %980 = vmatpush1.xpose.msra.mxu0 0.0
    %981 = vmatprep.subr.mxu0 0.0
    %982 = vmatpush1.xpose.msra.mxu0 0.0
    %983 = vmatprep.subr.mxu0 0.0
    %984 = vmatpush1.xpose.msra.mxu0 0.0
    %985 = vmatprep.subr.mxu0 0.0
    %986 = vmatpush1.xpose.msra.mxu0 0.0
    %987 = vmatprep.subr.mxu0 0.0
    %988 = vmatpush1.xpose.msra.mxu0 0.0
    %989 = vmatprep.subr.mxu0 0.0
    %990 = vmatpush1.xpose.msra.mxu0 0.0
    %991 = vmatprep.subr.mxu0 0.0
    %992 = vmatpush1.xpose.msra.mxu0 0.0
    %993 = vmatprep.subr.mxu0 0.0
    %994 = vmatpush1.xpose.msra.mxu0 0.0
    %995 = vmatprep.subr.mxu0 0.0
    %996 = vmatpush1.xpose.msra.mxu0 0.0
    %997 = vmatprep.subr.mxu0 0.0
    %998 = vmatpush1.xpose.msra.mxu0 0.0
    %999 = vmatprep.subr.mxu0 0.0
    %1000 = vmatpush1.xpose.msra.mxu0 0.0
    %1001 = vmatprep.subr.mxu0 0.0
    %1002 = vmatpush1.xpose.msra.mxu0 0.0
    %1003 = vmatprep.subr.mxu0 0.0
    %1004 = vmatpush1.xpose.msra.mxu0 0.0
    %1005 = vmatprep.subr.mxu0 0.0
    %1006 = vmatpush1.xpose.msra.mxu0 0.0
    %1007 = vmatprep.subr.mxu0 0.0
    %1008 = vmatpush1.xpose.msra.mxu0 0.0
    %1009 = vmatprep.subr.mxu0 0.0
    %1010 = vmatpush1.xpose.msra.mxu0 0.0
    %1011 = vmatprep.subr.mxu0 0.0
    %1012 = vmatpush1.xpose.msra.mxu0 0.0
    %1013 = vmatprep.mubr.f32.mxu0 0.0
    %1014 = vmatmul.mubr.f32.gmra.mrb[0].mxu0 %v945
    %v1015 = vpop.f32.mrb[0].mxu0
    %v1016 = vadd.f32 0.0, %v1015
    %v1017 = vpop.f32.mrb[0].mxu0
    %1018 = vdwg.mxu0
    %v1019 = vmul.f32 %v1016, 0.5
    %v1020 = vsel %vm530, %v1019, -inf
    %1021 = vmax.xlane.f32.xlu0 %v1020
    %v1022 = vpop.xlane.xlu0 %1021
    %v1023 = vsub.f32 %v1019, %v1022
    %v1024 = vmul.f32 %v1023, 1.442695
    %v1025 = vpow.pop %v1024
    %v1026 = vsel %vm530, %v1025, 0.0
    %1027 = vadd.xlane.f32.xlu0 %v1026
    %v1028 = vpop.xlane.xlu0 %1027
    %v1029 = vrcp.pop %v1028
    %v1030 = vmul.f32 %v1025, %v1029
    %1031 = vrot.lane.b32.xlu0 %v448, 88
    %v1032 = vpop.permute.xlu0 %1031
    %v1034 = vsel %vm544, %v1030, 0
    %v1036 = vsel %vm548, %v1032, 0
    %1038 = vmatprep.subr.mxu0 0.0
    %1039 = vmatpush1.msra.mxu0 %v1036
    %1040 = vmatprep.subr.mxu0 0.0
    %1041 = vmatpush1.msra.mxu0 0.0
    %1042 = vmatprep.subr.mxu0 0.0
    %1043 = vmatpush1.msra.mxu0 0.0
    %1044 = vmatprep.subr.mxu0 0.0
    %1045 = vmatpush1.msra.mxu0 0.0
    %1046 = vmatprep.subr.mxu0 0.0
    %1047 = vmatpush1.msra.mxu0 0.0
    %1048 = vmatprep.subr.mxu0 0.0
    %1049 = vmatpush1.msra.mxu0 0.0
    %1050 = vmatprep.subr.mxu0 0.0
    %1051 = vmatpush1.msra.mxu0 0.0
    %1052 = vmatprep.subr.mxu0 0.0
    %1053 = vmatpush1.msra.mxu0 0.0
    %1054 = vmatprep.subr.mxu0 0.0
    %1055 = vmatpush1.msra.mxu0 0.0
    %1056 = vmatprep.subr.mxu0 0.0
    %1057 = vmatpush1.msra.mxu0 0.0
    %1058 = vmatprep.subr.mxu0 0.0
    %1059 = vmatpush1.msra.mxu0 0.0
    %1060 = vmatprep.subr.mxu0 0.0
    %1061 = vmatpush1.msra.mxu0 0.0
    %1062 = vmatprep.subr.mxu0 0.0
    %1063 = vmatpush1.msra.mxu0 0.0
    %1064 = vmatprep.subr.mxu0 0.0
    %1065 = vmatpush1.msra.mxu0 0.0
    %1066 = vmatprep.subr.mxu0 0.0
    %1067 = vmatpush1.msra.mxu0 0.0
    %1068 = vmatprep.subr.mxu0 0.0
    %1069 = vmatpush1.msra.mxu0 0.0
    %1070 = vmatprep.subr.mxu0 0.0
    %1071 = vmatpush1.msra.mxu0 0.0
    %1072 = vmatprep.subr.mxu0 0.0
    %1073 = vmatpush1.msra.mxu0 0.0
    %1074 = vmatprep.subr.mxu0 0.0
    %1075 = vmatpush1.msra.mxu0 0.0
    %1076 = vmatprep.subr.mxu0 0.0
    %1077 = vmatpush1.msra.mxu0 0.0
    %1078 = vmatprep.subr.mxu0 0.0
    %1079 = vmatpush1.msra.mxu0 0.0
    %1080 = vmatprep.subr.mxu0 0.0
    %1081 = vmatpush1.msra.mxu0 0.0
    %1082 = vmatprep.subr.mxu0 0.0
    %1083 = vmatpush1.msra.mxu0 0.0
    %1084 = vmatprep.subr.mxu0 0.0
    %1085 = vmatpush1.msra.mxu0 0.0
    %1086 = vmatprep.subr.mxu0 0.0
    %1087 = vmatpush1.msra.mxu0 0.0
    %1088 = vmatprep.subr.mxu0 0.0
    %1089 = vmatpush1.msra.mxu0 0.0
    %1090 = vmatprep.subr.mxu0 0.0
    %1091 = vmatpush1.msra.mxu0 0.0
    %1092 = vmatprep.subr.mxu0 0.0
    %1093 = vmatpush1.msra.mxu0 0.0
    %1094 = vmatprep.subr.mxu0 0.0
    %1095 = vmatpush1.msra.mxu0 0.0
    %1096 = vmatprep.subr.mxu0 0.0
    %1097 = vmatpush1.msra.mxu0 0.0
    %1098 = vmatprep.subr.mxu0 0.0
    %1099 = vmatpush1.msra.mxu0 0.0
    %1100 = vmatprep.subr.mxu0 0.0
    %1101 = vmatpush1.msra.mxu0 0.0
    %1102 = vmatprep.mubr.f32.mxu0 0.0
    %1103 = vmatmul.mubr.f32.gmra.mrb[0].mxu0 %v1034
    %v1104 = vpop.f32.mrb[0].mxu0
    %v1105 = vadd.f32 0.0, %v1104
    %v1106 = vpop.f32.mrb[0].mxu0
    %1107 = vdwg.mxu0
    %v1109 = vsel %vm454, %v1105, 0
    %v1112 = vsel %vm793, %v369, 0
    %1114 = vmatprep.subr.mxu0 0.0
    %1115 = vmatpush1.msra.mxu0 %v1112
    %1116 = vmatprep.subr.mxu0 0.0
    %1117 = vmatpush1.msra.mxu0 0.0
    %1118 = vmatprep.subr.mxu0 0.0
    %1119 = vmatpush1.msra.mxu0 0.0
    %1120 = vmatprep.subr.mxu0 0.0
    %1121 = vmatpush1.msra.mxu0 0.0
    %1122 = vmatprep.subr.mxu0 0.0
    %1123 = vmatpush1.msra.mxu0 0.0
    %1124 = vmatprep.subr.mxu0 0.0
    %1125 = vmatpush1.msra.mxu0 0.0
    %1126 = vmatprep.subr.mxu0 0.0
    %1127 = vmatpush1.msra.mxu0 0.0
    %1128 = vmatprep.subr.mxu0 0.0
    %1129 = vmatpush1.msra.mxu0 0.0
    %1130 = vmatprep.subr.mxu0 0.0
    %1131 = vmatpush1.msra.mxu0 0.0
    %1132 = vmatprep.subr.mxu0 0.0
    %1133 = vmatpush1.msra.mxu0 0.0
    %1134 = vmatprep.subr.mxu0 0.0
    %1135 = vmatpush1.msra.mxu0 0.0
    %1136 = vmatprep.subr.mxu0 0.0
    %1137 = vmatpush1.msra.mxu0 0.0
    %1138 = vmatprep.subr.mxu0 0.0
    %1139 = vmatpush1.msra.mxu0 0.0
    %1140 = vmatprep.subr.mxu0 0.0
    %1141 = vmatpush1.msra.mxu0 0.0
    %1142 = vmatprep.subr.mxu0 0.0
    %1143 = vmatpush1.msra.mxu0 0.0
    %1144 = vmatprep.subr.mxu0 0.0
    %1145 = vmatpush1.msra.mxu0 0.0
    %1146 = vmatprep.subr.mxu0 0.0
    %1147 = vmatpush1.msra.mxu0 0.0
    %1148 = vmatprep.subr.mxu0 0.0
    %1149 = vmatpush1.msra.mxu0 0.0
    %1150 = vmatprep.subr.mxu0 0.0
    %1151 = vmatpush1.msra.mxu0 0.0
    %1152 = vmatprep.subr.mxu0 0.0
    %1153 = vmatpush1.msra.mxu0 0.0
    %1154 = vmatprep.subr.mxu0 0.0
    %1155 = vmatpush1.msra.mxu0 0.0
    %1156 = vmatprep.subr.mxu0 0.0
    %1157 = vmatpush1.msra.mxu0 0.0
    %1158 = vmatprep.subr.mxu0 0.0
    %1159 = vmatpush1.msra.mxu0 0.0
    %1160 = vmatprep.subr.mxu0 0.0
    %1161 = vmatpush1.msra.mxu0 0.0
    %1162 = vmatprep.subr.mxu0 0.0
    %1163 = vmatpush1.msra.mxu0 0.0
    %1164 = vmatprep.subr.mxu0 0.0
    %1165 = vmatpush1.msra.mxu0 0.0
    %1166 = vmatprep.subr.mxu0 0.0
    %1167 = vmatpush1.msra.mxu0 0.0
    %1168 = vmatprep.subr.mxu0 0.0
    %1169 = vmatpush1.msra.mxu0 0.0
    %1170 = vmatprep.subr.mxu0 0.0
    %1171 = vmatpush1.msra.mxu0 0.0
    %1172 = vmatprep.subr.mxu0 0.0
    %1173 = vmatpush1.msra.mxu0 0.0
    %1174 = vmatprep.subr.mxu0 0.0
    %1175 = vmatpush1.msra.mxu0 0.0
    %1176 = vmatprep.subr.mxu0 0.0
    %1177 = vmatpush1.msra.mxu0 0.0
    %1178 = vmatprep.mubr.f32.mxu0 0.0
    %1179 = vmatmul.mubr.f32.gmra.mrb[0].mxu0 %v1109
    %v1180 = vpop.f32.mrb[0].mxu0
    %v1181 = vadd.f32 0.0, %v1180
    %v1182 = vpop.f32.mrb[0].mxu0
    %1183 = vdwg.mxu0
    %v1184 = vadd.f32 %v938, %v1181
    %1185 = vrot.lane.b32.xlu0 %v448, 116
    %v1186 = vpop.permute.xlu0 %1185
    %1187 = vrot.lane.b32.xlu0 %v448, 100
    %v1188 = vpop.permute.xlu0 %1187
    %v1189 = vsel %vm454, %v1186, 0
    %v1191 = vsel %vm454, %v1188, 0
    %1193 = vmatprep.subr.mxu0 0.0
    %1194 = vmatpush1.xpose.msra.mxu0 %v1191
    %1195 = vmatprep.subr.mxu0 0.0
    %1196 = vmatpush1.xpose.msra.mxu0 0.0
    %1197 = vmatprep.subr.mxu0 0.0
    %1198 = vmatpush1.xpose.msra.mxu0 0.0
    %1199 = vmatprep.subr.mxu0 0.0
    %1200 = vmatpush1.xpose.msra.mxu0 0.0
    %1201 = vmatprep.subr.mxu0 0.0
    %1202 = vmatpush1.xpose.msra.mxu0 0.0
    %1203 = vmatprep.subr.mxu0 0.0
    %1204 = vmatpush1.xpose.msra.mxu0 0.0
    %1205 = vmatprep.subr.mxu0 0.0
    %1206 = vmatpush1.xpose.msra.mxu0 0.0
    %1207 = vmatprep.subr.mxu0 0.0
    %1208 = vmatpush1.xpose.msra.mxu0 0.0
    %1209 = vmatprep.subr.mxu0 0.0
    %1210 = vmatpush1.xpose.msra.mxu0 0.0
    %1211 = vmatprep.subr.mxu0 0.0
    %1212 = vmatpush1.xpose.msra.mxu0 0.0
    %1213 = vmatprep.subr.mxu0 0.0
    %1214 = vmatpush1.xpose.msra.mxu0 0.0
    %1215 = vmatprep.subr.mxu0 0.0
    %1216 = vmatpush1.xpose.msra.mxu0 0.0
    %1217 = vmatprep.subr.mxu0 0.0
    %1218 = vmatpush1.xpose.msra.mxu0 0.0
    %1219 = vmatprep.subr.mxu0 0.0
    %1220 = vmatpush1.xpose.msra.mxu0 0.0
    %1221 = vmatprep.subr.mxu0 0.0
    %1222 = vmatpush1.xpose.msra.mxu0 0.0
    %1223 = vmatprep.subr.mxu0 0.0
    %1224 = vmatpush1.xpose.msra.mxu0 0.0
    %1225 = vmatprep.subr.mxu0 0.0
    %1226 = vmatpush1.xpose.msra.mxu0 0.0
    %1227 = vmatprep.subr.mxu0 0.0
    %1228 = vmatpush1.xpose.msra.mxu0 0.0
    %1229 = vmatprep.subr.mxu0 0.0
    %1230 = vmatpush1.xpose.msra.mxu0 0.0
    %1231 = vmatprep.subr.mxu0 0.0
    %1232 = vmatpush1.xpose.msra.mxu0 0.0
    %1233 = vmatprep.subr.mxu0 0.0
    %1234 = vmatpush1.xpose.msra.mxu0 0.0
    %1235 = vmatprep.subr.mxu0 0.0
    %1236 = vmatpush1.xpose.msra.mxu0 0.0
    %1237 = vmatprep.subr.mxu0 0.0
    %1238 = vmatpush1.xpose.msra.mxu0 0.0
    %1239 = vmatprep.subr.mxu0 0.0
    %1240 = vmatpush1.xpose.msra.mxu0 0.0
    %1241 = vmatprep.subr.mxu0 0.0
    %1242 = vmatpush1.xpose.msra.mxu0 0.0
    %1243 = vmatprep.subr.mxu0 0.0
    %1244 = vmatpush1.xpose.msra.mxu0 0.0
    %1245 = vmatprep.subr.mxu0 0.0
    %1246 = vmatpush1.xpose.msra.mxu0 0.0
    %1247 = vmatprep.subr.mxu0 0.0
    %1248 = vmatpush1.xpose.msra.mxu0 0.0
    %1249 = vmatprep.subr.mxu0 0.0
    %1250 = vmatpush1.xpose.msra.mxu0 0.0
    %1251 = vmatprep.subr.mxu0 0.0
    %1252 = vmatpush1.xpose.msra.mxu0 0.0
    %1253 = vmatprep.subr.mxu0 0.0
    %1254 = vmatpush1.xpose.msra.mxu0 0.0
    %1255 = vmatprep.subr.mxu0 0.0
    %1256 = vmatpush1.xpose.msra.mxu0 0.0
    %1257 = vmatprep.mubr.f32.mxu0 0.0
    %1258 = vmatmul.mubr.f32.gmra.mrb[0].mxu0 %v1189
    %v1259 = vpop.f32.mrb[0].mxu0
    %v1260 = vadd.f32 0.0, %v1259
    %v1261 = vpop.f32.mrb[0].mxu0
    %1262 = vdwg.mxu0
    %v1263 = vmul.f32 %v1260, 0.5
    %v1264 = vsel %vm530, %v1263, -inf
    %1265 = vmax.xlane.f32.xlu0 %v1264
    %v1266 = vpop.xlane.xlu0 %1265
    %v1267 = vsub.f32 %v1263, %v1266
    %v1268 = vmul.f32 %v1267, 1.442695
    %v1269 = vpow.pop %v1268
    %v1270 = vsel %vm530, %v1269, 0.0
    %1271 = vadd.xlane.f32.xlu0 %v1270
    %v1272 = vpop.xlane.xlu0 %1271
    %v1273 = vrcp.pop %v1272
    %v1274 = vmul.f32 %v1269, %v1273
    %1275 = vrot.lane.b32.xlu0 %v448, 84
    %v1276 = vpop.permute.xlu0 %1275
    %v1278 = vsel %vm544, %v1274, 0
    %v1280 = vsel %vm548, %v1276, 0
    %1282 = vmatprep.subr.mxu0 0.0
    %1283 = vmatpush1.msra.mxu0 %v1280
    %1284 = vmatprep.subr.mxu0 0.0
    %1285 = vmatpush1.msra.mxu0 0.0
    %1286 = vmatprep.subr.mxu0 0.0
    %1287 = vmatpush1.msra.mxu0 0.0
    %1288 = vmatprep.subr.mxu0 0.0
    %1289 = vmatpush1.msra.mxu0 0.0
    %1290 = vmatprep.subr.mxu0 0.0
    %1291 = vmatpush1.msra.mxu0 0.0
    %1292 = vmatprep.subr.mxu0 0.0
    %1293 = vmatpush1.msra.mxu0 0.0
    %1294 = vmatprep.subr.mxu0 0.0
    %1295 = vmatpush1.msra.mxu0 0.0
    %1296 = vmatprep.subr.mxu0 0.0
    %1297 = vmatpush1.msra.mxu0 0.0
    %1298 = vmatprep.subr.mxu0 0.0
    %1299 = vmatpush1.msra.mxu0 0.0
    %1300 = vmatprep.subr.mxu0 0.0
    %1301 = vmatpush1.msra.mxu0 0.0
    %1302 = vmatprep.subr.mxu0 0.0
    %1303 = vmatpush1.msra.mxu0 0.0
    %1304 = vmatprep.subr.mxu0 0.0
    %1305 = vmatpush1.msra.mxu0 0.0
    %1306 = vmatprep.subr.mxu0 0.0
    %1307 = vmatpush1.msra.mxu0 0.0
    %1308 = vmatprep.subr.mxu0 0.0
    %1309 = vmatpush1.msra.mxu0 0.0
    %1310 = vmatprep.subr.mxu0 0.0
    %1311 = vmatpush1.msra.mxu0 0.0
    %1312 = vmatprep.subr.mxu0 0.0
    %1313 = vmatpush1.msra.mxu0 0.0
    %1314 = vmatprep.subr.mxu0 0.0
    %1315 = vmatpush1.msra.mxu0 0.0
    %1316 = vmatprep.subr.mxu0 0.0
    %1317 = vmatpush1.msra.mxu0 0.0
    %1318 = vmatprep.subr.mxu0 0.0
    %1319 = vmatpush1.msra.mxu0 0.0
    %1320 = vmatprep.subr.mxu0 0.0
    %1321 = vmatpush1.msra.mxu0 0.0
    %1322 = vmatprep.subr.mxu0 0.0
    %1323 = vmatpush1.msra.mxu0 0.0
    %1324 = vmatprep.subr.mxu0 0.0
    %1325 = vmatpush1.msra.mxu0 0.0
    %1326 = vmatprep.subr.mxu0 0.0
    %1327 = vmatpush1.msra.mxu0 0.0
    %1328 = vmatprep.subr.mxu0 0.0
    %1329 = vmatpush1.msra.mxu0 0.0
    %1330 = vmatprep.subr.mxu0 0.0
    %1331 = vmatpush1.msra.mxu0 0.0
    %1332 = vmatprep.subr.mxu0 0.0
    %1333 = vmatpush1.msra.mxu0 0.0
    %1334 = vmatprep.subr.mxu0 0.0
    %1335 = vmatpush1.msra.mxu0 0.0
    %1336 = vmatprep.subr.mxu0 0.0
    %1337 = vmatpush1.msra.mxu0 0.0
    %1338 = vmatprep.subr.mxu0 0.0
    %1339 = vmatpush1.msra.mxu0 0.0
    %1340 = vmatprep.subr.mxu0 0.0
    %1341 = vmatpush1.msra.mxu0 0.0
    %1342 = vmatprep.subr.mxu0 0.0
    %1343 = vmatpush1.msra.mxu0 0.0
    %1344 = vmatprep.subr.mxu0 0.0
    %1345 = vmatpush1.msra.mxu0 0.0
    %1346 = vmatprep.mubr.f32.mxu0 0.0
    %1347 = vmatmul.mubr.f32.gmra.mrb[0].mxu0 %v1278
    %v1348 = vpop.f32.mrb[0].mxu0
    %v1349 = vadd.f32 0.0, %v1348
    %v1350 = vpop.f32.mrb[0].mxu0
    %1351 = vdwg.mxu0
    %v1352 = vrot.slane %v369, 4
    %v1354 = vsel %vm454, %v1349, 0
    %v1356 = vsel %vm793, %v1352, 0
    %1358 = vmatprep.subr.mxu0 0.0
    %1359 = vmatpush1.msra.mxu0 %v1356
    %1360 = vmatprep.subr.mxu0 0.0
    %1361 = vmatpush1.msra.mxu0 0.0
    %1362 = vmatprep.subr.mxu0 0.0
    %1363 = vmatpush1.msra.mxu0 0.0
    %1364 = vmatprep.subr.mxu0 0.0
    %1365 = vmatpush1.msra.mxu0 0.0
    %1366 = vmatprep.subr.mxu0 0.0
    %1367 = vmatpush1.msra.mxu0 0.0
    %1368 = vmatprep.subr.mxu0 0.0
    %1369 = vmatpush1.msra.mxu0 0.0
    %1370 = vmatprep.subr.mxu0 0.0
    %1371 = vmatpush1.msra.mxu0 0.0
    %1372 = vmatprep.subr.mxu0 0.0
    %1373 = vmatpush1.msra.mxu0 0.0
    %1374 = vmatprep.subr.mxu0 0.0
    %1375 = vmatpush1.msra.mxu0 0.0
    %1376 = vmatprep.subr.mxu0 0.0
    %1377 = vmatpush1.msra.mxu0 0.0
    %1378 = vmatprep.subr.mxu0 0.0
    %1379 = vmatpush1.msra.mxu0 0.0
    %1380 = vmatprep.subr.mxu0 0.0
    %1381 = vmatpush1.msra.mxu0 0.0
    %1382 = vmatprep.subr.mxu0 0.0
    %1383 = vmatpush1.msra.mxu0 0.0
    %1384 = vmatprep.subr.mxu0 0.0
    %1385 = vmatpush1.msra.mxu0 0.0
    %1386 = vmatprep.subr.mxu0 0.0
    %1387 = vmatpush1.msra.mxu0 0.0
    %1388 = vmatprep.subr.mxu0 0.0
    %1389 = vmatpush1.msra.mxu0 0.0
    %1390 = vmatprep.subr.mxu0 0.0
    %1391 = vmatpush1.msra.mxu0 0.0
    %1392 = vmatprep.subr.mxu0 0.0
    %1393 = vmatpush1.msra.mxu0 0.0
    %1394 = vmatprep.subr.mxu0 0.0
    %1395 = vmatpush1.msra.mxu0 0.0
    %1396 = vmatprep.subr.mxu0 0.0
    %1397 = vmatpush1.msra.mxu0 0.0
    %1398 = vmatprep.subr.mxu0 0.0
    %1399 = vmatpush1.msra.mxu0 0.0
    %1400 = vmatprep.subr.mxu0 0.0
    %1401 = vmatpush1.msra.mxu0 0.0
    %1402 = vmatprep.subr.mxu0 0.0
    %1403 = vmatpush1.msra.mxu0 0.0
    %1404 = vmatprep.subr.mxu0 0.0
    %1405 = vmatpush1.msra.mxu0 0.0
    %1406 = vmatprep.subr.mxu0 0.0
    %1407 = vmatpush1.msra.mxu0 0.0
    %1408 = vmatprep.subr.mxu0 0.0
    %1409 = vmatpush1.msra.mxu0 0.0
    %1410 = vmatprep.subr.mxu0 0.0
    %1411 = vmatpush1.msra.mxu0 0.0
    %1412 = vmatprep.subr.mxu0 0.0
    %1413 = vmatpush1.msra.mxu0 0.0
    %1414 = vmatprep.subr.mxu0 0.0
    %1415 = vmatpush1.msra.mxu0 0.0
    %1416 = vmatprep.subr.mxu0 0.0
    %1417 = vmatpush1.msra.mxu0 0.0
    %1418 = vmatprep.subr.mxu0 0.0
    %1419 = vmatpush1.msra.mxu0 0.0
    %1420 = vmatprep.subr.mxu0 0.0
    %1421 = vmatpush1.msra.mxu0 0.0
    %1422 = vmatprep.mubr.f32.mxu0 0.0
    %1423 = vmatmul.mubr.f32.gmra.mrb[0].mxu0 %v1354
    %v1424 = vpop.f32.mrb[0].mxu0
    %v1425 = vadd.f32 0.0, %v1424
    %v1426 = vpop.f32.mrb[0].mxu0
    %1427 = vdwg.mxu0
    %v1428 = vadd.f32 %v1184, %v1425
    %v1430 = vlaneseq
    %v1431 = vshrl.u32 %v1430, 7
    %v1432 = vsub.s32 0, %v1431
    %v1433 = vrot.slane %v370, %v1432
    %v1435 = vadd.f32 %v1428, %v1433
    %v1436 = vadd.f32 %v364, %v1435
    %vm1437 = vcmask 128000
    %v1438 = vsel %vm1437, %v1436, 0.0
    %1439 = vadd.xlane.f32.xlu0 %v1438
    %v1440 = vpop.xlane.xlu0 %1439
    %v1441 = vrcp.pop 16.0
    %v1442 = vmul.f32 %v1440, %v1441
    %v1443 = vsub.f32 %v1436, %v1442
    %v1444 = vmul.f32 %v1443, %v1443
    %v1445 = vsel %vm1437, %v1444, 0.0
    %1446 = vadd.xlane.f32.xlu0 %v1445
    %v1447 = vpop.xlane.xlu0 %1446
    %v1448 = vmul.f32 %v1447, %v1441
    %v1449 = vadd.f32 %v1448, 1e-05
    %v1450 = vrsqrt.pop %v1449
    %v1451 = vmul.f32 %v1443, %v1450
    %v1452 = vld [vmem:[%s9] sm:$0x1]
    %v1454 = vlaneseq
    %v1455 = vshrl.u32 %v1454, 7
    %v1456 = vsub.s32 0, %v1455
    %v1457 = vrot.slane %v1452, %v1456
    %v1459 = vmul.f32 %v1451, %v1457
    %v1460 = vld [vmem:[%s10] sm:$0x1]
    %v1462 = vlaneseq
    %v1463 = vshrl.u32 %v1462, 7
    %v1464 = vsub.s32 0, %v1463
    %v1465 = vrot.slane %v1460, %v1464
    %v1467 = vadd.f32 %v1459, %v1465
    %v1468 = vld [vmem:[%s11] sm:$0xff]
    %v1469 = vld [vmem:[%s11 + $0x8] sm:$0xff]
    %v1470 = vld [vmem:[%s12] sm:$0x1]
    %v1472 = vlaneseq
    %v1473 = vshrl.u32 %v1472, 7
    %v1474 = vsub.s32 0, %v1473
    %v1475 = vrot.slane %v1470, %v1474
    %v1478 = vsel %vm377, %v1467, 0
    %1480 = vmatprep.subr.mxu0 0.0
    %1481 = vmatpush1.msra.mxu0 %v1468
    %1482 = vmatprep.subr.mxu0 0.0
    %1483 = vmatpush1.msra.mxu0 %v1469
    %1484 = vmatprep.subr.mxu0 0.0
    %1485 = vmatpush1.msra.mxu0 0.0
    %1486 = vmatprep.subr.mxu0 0.0
    %1487 = vmatpush1.msra.mxu0 0.0
    %1488 = vmatprep.subr.mxu0 0.0
    %1489 = vmatpush1.msra.mxu0 0.0
    %1490 = vmatprep.subr.mxu0 0.0
    %1491 = vmatpush1.msra.mxu0 0.0
    %1492 = vmatprep.subr.mxu0 0.0
    %1493 = vmatpush1.msra.mxu0 0.0
    %1494 = vmatprep.subr.mxu0 0.0
    %1495 = vmatpush1.msra.mxu0 0.0
    %1496 = vmatprep.subr.mxu0 0.0
    %1497 = vmatpush1.msra.mxu0 0.0
    %1498 = vmatprep.subr.mxu0 0.0
    %1499 = vmatpush1.msra.mxu0 0.0
    %1500 = vmatprep.subr.mxu0 0.0
    %1501 = vmatpush1.msra.mxu0 0.0
    %1502 = vmatprep.subr.mxu0 0.0
    %1503 = vmatpush1.msra.mxu0 0.0
    %1504 = vmatprep.subr.mxu0 0.0
    %1505 = vmatpush1.msra.mxu0 0.0
    %1506 = vmatprep.subr.mxu0 0.0
    %1507 = vmatpush1.msra.mxu0 0.0
    %1508 = vmatprep.subr.mxu0 0.0
    %1509 = vmatpush1.msra.mxu0 0.0
    %1510 = vmatprep.subr.mxu0 0.0
    %1511 = vmatpush1.msra.mxu0 0.0
    %1512 = vmatprep.subr.mxu0 0.0
    %1513 = vmatpush1.msra.mxu0 0.0
    %1514 = vmatprep.subr.mxu0 0.0
    %1515 = vmatpush1.msra.mxu0 0.0
    %1516 = vmatprep.subr.mxu0 0.0
    %1517 = vmatpush1.msra.mxu0 0.0
    %1518 = vmatprep.subr.mxu0 0.0
    %1519 = vmatpush1.msra.mxu0 0.0
    %1520 = vmatprep.subr.mxu0 0.0
    %1521 = vmatpush1.msra.mxu0 0.0
    %1522 = vmatprep.subr.mxu0 0.0
    %1523 = vmatpush1.msra.mxu0 0.0
    %1524 = vmatprep.subr.mxu0 0.0
    %1525 = vmatpush1.msra.mxu0 0.0
    %1526 = vmatprep.subr.mxu0 0.0
    %1527 = vmatpush1.msra.mxu0 0.0
    %1528 = vmatprep.subr.mxu0 0.0
    %1529 = vmatpush1.msra.mxu0 0.0
    %1530 = vmatprep.subr.mxu0 0.0
    %1531 = vmatpush1.msra.mxu0 0.0
    %1532 = vmatprep.subr.mxu0 0.0
    %1533 = vmatpush1.msra.mxu0 0.0
    %1534 = vmatprep.subr.mxu0 0.0
    %1535 = vmatpush1.msra.mxu0 0.0
    %1536 = vmatprep.subr.mxu0 0.0
    %1537 = vmatpush1.msra.mxu0 0.0
    %1538 = vmatprep.subr.mxu0 0.0
    %1539 = vmatpush1.msra.mxu0 0.0
    %1540 = vmatprep.subr.mxu0 0.0
    %1541 = vmatpush1.msra.mxu0 0.0
    %1542 = vmatprep.subr.mxu0 0.0
    %1543 = vmatpush1.msra.mxu0 0.0
    %1544 = vmatprep.mubr.f32.mxu0 0.0
    %1545 = vmatmul.mubr.f32.gmra.mrb[0].mxu0 %v1478
    %v1546 = vpop.f32.mrb[0].mxu0
    %v1547 = vadd.f32 %v1475, %v1546
    %v1548 = vpop.f32.mrb[0].mxu0
    %1549 = vdwg.mxu0
    %v1550 = vmax.f32 %v1547, 0.0
    %v1551 = vld [vmem:[%s13] sm:$0xff]
    %v1552 = vld [vmem:[%s13 + $0x8] sm:$0xff]
    %v1553 = vld [vmem:[%s13 + $0x10] sm:$0xff]
    %v1554 = vld [vmem:[%s13 + $0x18] sm:$0xff]
    %v1555 = vld [vmem:[%s13 + $0x20] sm:$0xff]
    %v1556 = vld [vmem:[%s13 + $0x28] sm:$0xff]
    %v1557 = vld [vmem:[%s13 + $0x30] sm:$0xff]
    %v1558 = vld [vmem:[%s13 + $0x38] sm:$0xff]
    %v1559 = vld [vmem:[%s14] sm:$0x1]
    %v1561 = vlaneseq
    %v1562 = vshrl.u32 %v1561, 7
    %v1563 = vsub.s32 0, %v1562
    %v1564 = vrot.slane %v1559, %v1563
    %vm1566 = vcmask 523264
    %v1568 = vsel %vm1566, %v1550, 0
    %1570 = vmatprep.subr.mxu0 0.0
    %1571 = vmatpush1.msra.mxu0 %v1551
    %1572 = vmatprep.subr.mxu0 0.0
    %1573 = vmatpush1.msra.mxu0 %v1552
    %1574 = vmatprep.subr.mxu0 0.0
    %1575 = vmatpush1.msra.mxu0 %v1553
    %1576 = vmatprep.subr.mxu0 0.0
    %1577 = vmatpush1.msra.mxu0 %v1554
    %1578 = vmatprep.subr.mxu0 0.0
    %1579 = vmatpush1.msra.mxu0 %v1555
    %1580 = vmatprep.subr.mxu0 0.0
    %1581 = vmatpush1.msra.mxu0 %v1556
    %1582 = vmatprep.subr.mxu0 0.0
    %1583 = vmatpush1.msra.mxu0 %v1557
    %1584 = vmatprep.subr.mxu0 0.0
    %1585 = vmatpush1.msra.mxu0 %v1558
    %1586 = vmatprep.subr.mxu0 0.0
    %1587 = vmatpush1.msra.mxu0 0.0
    %1588 = vmatprep.subr.mxu0 0.0
    %1589 = vmatpush1.msra.mxu0 0.0
    %1590 = vmatprep.subr.mxu0 0.0
    %1591 = vmatpush1.msra.mxu0 0.0
    %1592 = vmatprep.subr.mxu0 0.0
    %1593 = vmatpush1.msra.mxu0 0.0
    %1594 = vmatprep.subr.mxu0 0.0
    %1595 = vmatpush1.msra.mxu0 0.0
    %1596 = vmatprep.subr.mxu0 0.0
    %1597 = vmatpush1.msra.mxu0 0.0
    %1598 = vmatprep.subr.mxu0 0.0
    %1599 = vmatpush1.msra.mxu0 0.0
    %1600 = vmatprep.subr.mxu0 0.0
    %1601 = vmatpush1.msra.mxu0 0.0
    %1602 = vmatprep.subr.mxu0 0.0
    %1603 = vmatpush1.msra.mxu0 0.0
    %1604 = vmatprep.subr.mxu0 0.0
    %1605 = vmatpush1.msra.mxu0 0.0
    %1606 = vmatprep.subr.mxu0 0.0
    %1607 = vmatpush1.msra.mxu0 0.0
    %1608 = vmatprep.subr.mxu0 0.0
    %1609 = vmatpush1.msra.mxu0 0.0
    %1610 = vmatprep.subr.mxu0 0.0
    %1611 = vmatpush1.msra.mxu0 0.0
    %1612 = vmatprep.subr.mxu0 0.0
    %1613 = vmatpush1.msra.mxu0 0.0
    %1614 = vmatprep.subr.mxu0 0.0
    %1615 = vmatpush1.msra.mxu0 0.0
    %1616 = vmatprep.subr.mxu0 0.0
    %1617 = vmatpush1.msra.mxu0 0.0
    %1618 = vmatprep.subr.mxu0 0.0
    %1619 = vmatpush1.msra.mxu0 0.0
    %1620 = vmatprep.subr.mxu0 0.0
    %1621 = vmatpush1.msra.mxu0 0.0
    %1622 = vmatprep.subr.mxu0 0.0
    %1623 = vmatpush1.msra.mxu0 0.0
    %1624 = vmatprep.subr.mxu0 0.0
    %1625 = vmatpush1.msra.mxu0 0.0
    %1626 = vmatprep.subr.mxu0 0.0
    %1627 = vmatpush1.msra.mxu0 0.0
    %1628 = vmatprep.subr.mxu0 0.0
    %1629 = vmatpush1.msra.mxu0 0.0
    %1630 = vmatprep.subr.mxu0 0.0
    %1631 = vmatpush1.msra.mxu0 0.0
    %1632 = vmatprep.subr.mxu0 0.0
    %1633 = vmatpush1.msra.mxu0 0.0
    %1634 = vmatprep.mubr.f32.mxu0 0.0
    %1635 = vmatmul.mubr.f32.gmra.mrb[0].mxu0 %v1568
    %v1636 = vpop.f32.mrb[0].mxu0
    %v1637 = vadd.f32 %v1564, %v1636
    %v1638 = vpop.f32.mrb[0].mxu0
    %1639 = vdwg.mxu0
    %v1640 = vadd.f32 %v1467, %v1637
    %v1641 = vsel %vm1437, %v1640, 0.0
    %1642 = vadd.xlane.f32.xlu0 %v1641
    %v1643 = vpop.xlane.xlu0 %1642
    %v1644 = vmul.f32 %v1643, %v1441
    %v1645 = vsub.f32 %v1640, %v1644
    %v1646 = vmul.f32 %v1645, %v1645
    %v1647 = vsel %vm1437, %v1646, 0.0
    %1648 = vadd.xlane.f32.xlu0 %v1647
    %v1649 = vpop.xlane.xlu0 %1648
    %v1650 = vmul.f32 %v1649, %v1441
    %v1651 = vadd.f32 %v1650, 1e-05
    %v1652 = vrsqrt.pop %v1651
    %v1653 = vmul.f32 %v1645, %v1652
    %v1654 = vld [vmem:[%s15] sm:$0x1]
    %v1656 = vlaneseq
    %v1657 = vshrl.u32 %v1656, 7
    %v1658 = vsub.s32 0, %v1657
    %v1659 = vrot.slane %v1654, %v1658
    %v1661 = vmul.f32 %v1653, %v1659
    %v1662 = vld [vmem:[%s16] sm:$0x1]
    %v1664 = vlaneseq
    %v1665 = vshrl.u32 %v1664, 7
    %v1666 = vsub.s32 0, %v1665
    %v1667 = vrot.slane %v1662, %v1666
    %v1669 = vadd.f32 %v1661, %v1667
    %s1670 = scalar_lea.vmem %s5, 16
    %v1671 = vld [vmem:[%s1670] sm:$0xff]
    %v1672 = vld [vmem:[%s1670 + $0x8] sm:$0xff]
    %s1673 = scalar_lea.vmem %s6, 1
    %v1674 = vld [vmem:[%s1673] sm:$0x1]
    %s1675 = scalar_lea.vmem %s7, 16
    %v1676 = vld [vmem:[%s1675] sm:$0xff]
    %v1677 = vld [vmem:[%s1675 + $0x8] sm:$0xff]
    %s1678 = scalar_lea.vmem %s8, 1
    %v1679 = vld [vmem:[%s1678] sm:$0x1]
    %v1681 = vlaneseq
    %v1682 = vshrl.u32 %v1681, 7
    %v1683 = vsub.s32 0, %v1682
    %v1684 = vrot.slane %v1674, %v1683
    %v1687 = vsel %vm377, %v1669, 0
    %1689 = vmatprep.subr.mxu0 0.0
    %1690 = vmatpush1.msra.mxu0 %v1671
    %1691 = vmatprep.subr.mxu0 0.0
    %1692 = vmatpush1.msra.mxu0 %v1672
    %1693 = vmatprep.subr.mxu0 0.0
    %1694 = vmatpush1.msra.mxu0 0.0
    %1695 = vmatprep.subr.mxu0 0.0
    %1696 = vmatpush1.msra.mxu0 0.0
    %1697 = vmatprep.subr.mxu0 0.0
    %1698 = vmatpush1.msra.mxu0 0.0
    %1699 = vmatprep.subr.mxu0 0.0
    %1700 = vmatpush1.msra.mxu0 0.0
    %1701 = vmatprep.subr.mxu0 0.0
    %1702 = vmatpush1.msra.mxu0 0.0
    %1703 = vmatprep.subr.mxu0 0.0
    %1704 = vmatpush1.msra.mxu0 0.0
    %1705 = vmatprep.subr.mxu0 0.0
    %1706 = vmatpush1.msra.mxu0 0.0
    %1707 = vmatprep.subr.mxu0 0.0
    %1708 = vmatpush1.msra.mxu0 0.0
    %1709 = vmatprep.subr.mxu0 0.0
    %1710 = vmatpush1.msra.mxu0 0.0
    %1711 = vmatprep.subr.mxu0 0.0
    %1712 = vmatpush1.msra.mxu0 0.0
    %1713 = vmatprep.subr.mxu0 0.0
    %1714 = vmatpush1.msra.mxu0 0.0
    %1715 = vmatprep.subr.mxu0 0.0
    %1716 = vmatpush1.msra.mxu0 0.0
    %1717 = vmatprep.subr.mxu0 0.0
    %1718 = vmatpush1.msra.mxu0 0.0
    %1719 = vmatprep.subr.mxu0 0.0
    %1720 = vmatpush1.msra.mxu0 0.0
    %1721 = vmatprep.subr.mxu0 0.0
    %1722 = vmatpush1.msra.mxu0 0.0
    %1723 = vmatprep.subr.mxu0 0.0
    %1724 = vmatpush1.msra.mxu0 0.0
    %1725 = vmatprep.subr.mxu0 0.0
    %1726 = vmatpush1.msra.mxu0 0.0
    %1727 = vmatprep.subr.mxu0 0.0
    %1728 = vmatpush1.msra.mxu0 0.0
    %1729 = vmatprep.subr.mxu0 0.0
    %1730 = vmatpush1.msra.mxu0 0.0
    %1731 = vmatprep.subr.mxu0 0.0
    %1732 = vmatpush1.msra.mxu0 0.0
    %1733 = vmatprep.subr.mxu0 0.0
    %1734 = vmatpush1.msra.mxu0 0.0
    %1735 = vmatprep.subr.mxu0 0.0
    %1736 = vmatpush1.msra.mxu0 0.0
    %1737 = vmatprep.subr.mxu0 0.0
    %1738 = vmatpush1.msra.mxu0 0.0
    %1739 = vmatprep.subr.mxu0 0.0
    %1740 = vmatpush1.msra.mxu0 0.0
    %1741 = vmatprep.subr.mxu0 0.0
    %1742 = vmatpush1.msra.mxu0 0.0
    %1743 = vmatprep.subr.mxu0 0.0
    %1744 = vmatpush1.msra.mxu0 0.0
    %1745 = vmatprep.subr.mxu0 0.0
    %1746 = vmatpush1.msra.mxu0 0.0
    %1747 = vmatprep.subr.mxu0 0.0
    %1748 = vmatpush1.msra.mxu0 0.0
    %1749 = vmatprep.subr.mxu0 0.0
    %1750 = vmatpush1.msra.mxu0 0.0
    %1751 = vmatprep.subr.mxu0 0.0
    %1752 = vmatpush1.msra.mxu0 0.0
    %1753 = vmatprep.mubr.f32.mxu0 0.0
    %1754 = vmatmul.mubr.f32.gmra.mrb[0].mxu0 %v1687
    %v1755 = vpop.f32.mrb[0].mxu0
    %v1756 = vadd.f32 %v1684, %v1755
    %v1757 = vpop.f32.mrb[0].mxu0
    %1758 = vdwg.mxu0
    %1760 = vrot.lane.b32.xlu0 %v1756, 112
    %v1761 = vpop.permute.xlu0 %1760
    %v1762 = vsel %vm454, %v1756, 0
    %v1764 = vsel %vm454, %v1761, 0
    %1766 = vmatprep.subr.mxu0 0.0
    %1767 = vmatpush1.xpose.msra.mxu0 %v1764
    %1768 = vmatprep.subr.mxu0 0.0
    %1769 = vmatpush1.xpose.msra.mxu0 0.0
    %1770 = vmatprep.subr.mxu0 0.0
    %1771 = vmatpush1.xpose.msra.mxu0 0.0
    %1772 = vmatprep.subr.mxu0 0.0
    %1773 = vmatpush1.xpose.msra.mxu0 0.0
    %1774 = vmatprep.subr.mxu0 0.0
    %1775 = vmatpush1.xpose.msra.mxu0 0.0
    %1776 = vmatprep.subr.mxu0 0.0
    %1777 = vmatpush1.xpose.msra.mxu0 0.0
    %1778 = vmatprep.subr.mxu0 0.0
    %1779 = vmatpush1.xpose.msra.mxu0 0.0
    %1780 = vmatprep.subr.mxu0 0.0
    %1781 = vmatpush1.xpose.msra.mxu0 0.0
    %1782 = vmatprep.subr.mxu0 0.0
    %1783 = vmatpush1.xpose.msra.mxu0 0.0
    %1784 = vmatprep.subr.mxu0 0.0
    %1785 = vmatpush1.xpose.msra.mxu0 0.0
    %1786 = vmatprep.subr.mxu0 0.0
    %1787 = vmatpush1.xpose.msra.mxu0 0.0
    %1788 = vmatprep.subr.mxu0 0.0
    %1789 = vmatpush1.xpose.msra.mxu0 0.0
    %1790 = vmatprep.subr.mxu0 0.0
    %1791 = vmatpush1.xpose.msra.mxu0 0.0
    %1792 = vmatprep.subr.mxu0 0.0
    %1793 = vmatpush1.xpose.msra.mxu0 0.0
    %1794 = vmatprep.subr.mxu0 0.0
    %1795 = vmatpush1.xpose.msra.mxu0 0.0
    %1796 = vmatprep.subr.mxu0 0.0
    %1797 = vmatpush1.xpose.msra.mxu0 0.0
    %1798 = vmatprep.subr.mxu0 0.0
    %1799 = vmatpush1.xpose.msra.mxu0 0.0
    %1800 = vmatprep.subr.mxu0 0.0
    %1801 = vmatpush1.xpose.msra.mxu0 0.0
    %1802 = vmatprep.subr.mxu0 0.0
    %1803 = vmatpush1.xpose.msra.mxu0 0.0
    %1804 = vmatprep.subr.mxu0 0.0
    %1805 = vmatpush1.xpose.msra.mxu0 0.0
    %1806 = vmatprep.subr.mxu0 0.0
    %1807 = vmatpush1.xpose.msra.mxu0 0.0
    %1808 = vmatprep.subr.mxu0 0.0
    %1809 = vmatpush1.xpose.msra.mxu0 0.0
    %1810 = vmatprep.subr.mxu0 0.0
    %1811 = vmatpush1.xpose.msra.mxu0 0.0
    %1812 = vmatprep.subr.mxu0 0.0
    %1813 = vmatpush1.xpose.msra.mxu0 0.0
    %1814 = vmatprep.subr.mxu0 0.0
    %1815 = vmatpush1.xpose.msra.mxu0 0.0
    %1816 = vmatprep.subr.mxu0 0.0
    %1817 = vmatpush1.xpose.msra.mxu0 0.0
    %1818 = vmatprep.subr.mxu0 0.0
    %1819 = vmatpush1.xpose.msra.mxu0 0.0
    %1820 = vmatprep.subr.mxu0 0.0
    %1821 = vmatpush1.xpose.msra.mxu0 0.0
    %1822 = vmatprep.subr.mxu0 0.0
    %1823 = vmatpush1.xpose.msra.mxu0 0.0
    %1824 = vmatprep.subr.mxu0 0.0
    %1825 = vmatpush1.xpose.msra.mxu0 0.0
    %1826 = vmatprep.subr.mxu0 0.0
    %1827 = vmatpush1.xpose.msra.mxu0 0.0
    %1828 = vmatprep.subr.mxu0 0.0
    %1829 = vmatpush1.xpose.msra.mxu0 0.0
    %1830 = vmatprep.mubr.f32.mxu0 0.0
    %1831 = vmatmul.mubr.f32.gmra.mrb[0].mxu0 %v1762
    %v1832 = vpop.f32.mrb[0].mxu0
    %v1833 = vadd.f32 0.0, %v1832
    %v1834 = vpop.f32.mrb[0].mxu0
    %1835 = vdwg.mxu0
    %v1836 = vmul.f32 %v1833, 0.5
    %v1837 = vsel %vm530, %v1836, -inf
    %1838 = vmax.xlane.f32.xlu0 %v1837
    %v1839 = vpop.xlane.xlu0 %1838
    %v1840 = vsub.f32 %v1836, %v1839
    %v1841 = vmul.f32 %v1840, 1.442695
    %v1842 = vpow.pop %v1841
    %v1843 = vsel %vm530, %v1842, 0.0
    %1844 = vadd.xlane.f32.xlu0 %v1843
    %v1845 = vpop.xlane.xlu0 %1844
    %v1846 = vrcp.pop %v1845
    %v1847 = vmul.f32 %v1842, %v1846
    %1848 = vrot.lane.b32.xlu0 %v1756, 96
    %v1849 = vpop.permute.xlu0 %1848
    %v1851 = vsel %vm544, %v1847, 0
    %v1853 = vsel %vm548, %v1849, 0
    %1855 = vmatprep.subr.mxu0 0.0
    %1856 = vmatpush1.msra.mxu0 %v1853
    %1857 = vmatprep.subr.mxu0 0.0
    %1858 = vmatpush1.msra.mxu0 0.0
    %1859 = vmatprep.subr.mxu0 0.0
    %1860 = vmatpush1.msra.mxu0 0.0
    %1861 = vmatprep.subr.mxu0 0.0
    %1862 = vmatpush1.msra.mxu0 0.0
    %1863 = vmatprep.subr.mxu0 0.0
    %1864 = vmatpush1.msra.mxu0 0.0
    %1865 = vmatprep.subr.mxu0 0.0
    %1866 = vmatpush1.msra.mxu0 0.0
    %1867 = vmatprep.subr.mxu0 0.0
    %1868 = vmatpush1.msra.mxu0 0.0
    %1869 = vmatprep.subr.mxu0 0.0
    %1870 = vmatpush1.msra.mxu0 0.0
    %1871 = vmatprep.subr.mxu0 0.0
    %1872 = vmatpush1.msra.mxu0 0.0
    %1873 = vmatprep.subr.mxu0 0.0
    %1874 = vmatpush1.msra.mxu0 0.0
    %1875 = vmatprep.subr.mxu0 0.0
    %1876 = vmatpush1.msra.mxu0 0.0
    %1877 = vmatprep.subr.mxu0 0.0
    %1878 = vmatpush1.msra.mxu0 0.0
    %1879 = vmatprep.subr.mxu0 0.0
    %1880 = vmatpush1.msra.mxu0 0.0
    %1881 = vmatprep.subr.mxu0 0.0
    %1882 = vmatpush1.msra.mxu0 0.0
    %1883 = vmatprep.subr.mxu0 0.0
    %1884 = vmatpush1.msra.mxu0 0.0
    %1885 = vmatprep.subr.mxu0 0.0
    %1886 = vmatpush1.msra.mxu0 0.0
    %1887 = vmatprep.subr.mxu0 0.0
    %1888 = vmatpush1.msra.mxu0 0.0
    %1889 = vmatprep.subr.mxu0 0.0
    %1890 = vmatpush1.msra.mxu0 0.0
    %1891 = vmatprep.subr.mxu0 0.0
    %1892 = vmatpush1.msra.mxu0 0.0
    %1893 = vmatprep.subr.mxu0 0.0
    %1894 = vmatpush1.msra.mxu0 0.0
    %1895 = vmatprep.subr.mxu0 0.0
    %1896 = vmatpush1.msra.mxu0 0.0
    %1897 = vmatprep.subr.mxu0 0.0
    %1898 = vmatpush1.msra.mxu0 0.0
    %1899 = vmatprep.subr.mxu0 0.0
    %1900 = vmatpush1.msra.mxu0 0.0
    %1901 = vmatprep.subr.mxu0 0.0
    %1902 = vmatpush1.msra.mxu0 0.0
    %1903 = vmatprep.subr.mxu0 0.0
    %1904 = vmatpush1.msra.mxu0 0.0
    %1905 = vmatprep.subr.mxu0 0.0
    %1906 = vmatpush1.msra.mxu0 0.0
    %1907 = vmatprep.subr.mxu0 0.0
    %1908 = vmatpush1.msra.mxu0 0.0
    %1909 = vmatprep.subr.mxu0 0.0
    %1910 = vmatpush1.msra.mxu0 0.0
    %1911 = vmatprep.subr.mxu0 0.0
    %1912 = vmatpush1.msra.mxu0 0.0
    %1913 = vmatprep.subr.mxu0 0.0
    %1914 = vmatpush1.msra.mxu0 0.0
    %1915 = vmatprep.subr.mxu0 0.0
    %1916 = vmatpush1.msra.mxu0 0.0
    %1917 = vmatprep.subr.mxu0 0.0
    %1918 = vmatpush1.msra.mxu0 0.0
    %1919 = vmatprep.mubr.f32.mxu0 0.0
    %1920 = vmatmul.mubr.f32.gmra.mrb[0].mxu0 %v1851
    %v1921 = vpop.f32.mrb[0].mxu0
    %v1922 = vadd.f32 0.0, %v1921
    %v1923 = vpop.f32.mrb[0].mxu0
    %1924 = vdwg.mxu0
    %1925 = vrot.lane.b32.xlu0 %v1756, 124
    %v1926 = vpop.permute.xlu0 %1925
    %1927 = vrot.lane.b32.xlu0 %v1756, 108
    %v1928 = vpop.permute.xlu0 %1927
    %v1929 = vsel %vm454, %v1926, 0
    %v1931 = vsel %vm454, %v1928, 0
    %1933 = vmatprep.subr.mxu0 0.0
    %1934 = vmatpush1.xpose.msra.mxu0 %v1931
    %1935 = vmatprep.subr.mxu0 0.0
    %1936 = vmatpush1.xpose.msra.mxu0 0.0
    %1937 = vmatprep.subr.mxu0 0.0
    %1938 = vmatpush1.xpose.msra.mxu0 0.0
    %1939 = vmatprep.subr.mxu0 0.0
    %1940 = vmatpush1.xpose.msra.mxu0 0.0
    %1941 = vmatprep.subr.mxu0 0.0
    %1942 = vmatpush1.xpose.msra.mxu0 0.0
    %1943 = vmatprep.subr.mxu0 0.0
    %1944 = vmatpush1.xpose.msra.mxu0 0.0
    %1945 = vmatprep.subr.mxu0 0.0
    %1946 = vmatpush1.xpose.msra.mxu0 0.0
    %1947 = vmatprep.subr.mxu0 0.0
    %1948 = vmatpush1.xpose.msra.mxu0 0.0
    %1949 = vmatprep.subr.mxu0 0.0
    %1950 = vmatpush1.xpose.msra.mxu0 0.0
    %1951 = vmatprep.subr.mxu0 0.0
    %1952 = vmatpush1.xpose.msra.mxu0 0.0
    %1953 = vmatprep.subr.mxu0 0.0
    %1954 = vmatpush1.xpose.msra.mxu0 0.0
    %1955 = vmatprep.subr.mxu0 0.0
    %1956 = vmatpush1.xpose.msra.mxu0 0.0
    %1957 = vmatprep.subr.mxu0 0.0
    %1958 = vmatpush1.xpose.msra.mxu0 0.0
    %1959 = vmatprep.subr.mxu0 0.0
    %1960 = vmatpush1.xpose.msra.mxu0 0.0
    %1961 = vmatprep.subr.mxu0 0.0
    %1962 = vmatpush1.xpose.msra.mxu0 0.0
    %1963 = vmatprep.subr.mxu0 0.0
    %1964 = vmatpush1.xpose.msra.mxu0 0.0
    %1965 = vmatprep.subr.mxu0 0.0
    %1966 = vmatpush1.xpose.msra.mxu0 0.0
    %1967 = vmatprep.subr.mxu0 0.0
    %1968 = vmatpush1.xpose.msra.mxu0 0.0
    %1969 = vmatprep.subr.mxu0 0.0
    %1970 = vmatpush1.xpose.msra.mxu0 0.0
    %1971 = vmatprep.subr.mxu0 0.0
    %1972 = vmatpush1.xpose.msra.mxu0 0.0
    %1973 = vmatprep.subr.mxu0 0.0
    %1974 = vmatpush1.xpose.msra.mxu0 0.0
    %1975 = vmatprep.subr.mxu0 0.0
    %1976 = vmatpush1.xpose.msra.mxu0 0.0
    %1977 = vmatprep.subr.mxu0 0.0
    %1978 = vmatpush1.xpose.msra.mxu0 0.0
    %1979 = vmatprep.subr.mxu0 0.0
    %1980 = vmatpush1.xpose.msra.mxu0 0.0
    %1981 = vmatprep.subr.mxu0 0.0
    %1982 = vmatpush1.xpose.msra.mxu0 0.0
    %1983 = vmatprep.subr.mxu0 0.0
    %1984 = vmatpush1.xpose.msra.mxu0 0.0
    %1985 = vmatprep.subr.mxu0 0.0
    %1986 = vmatpush1.xpose.msra.mxu0 0.0
    %1987 = vmatprep.subr.mxu0 0.0
    %1988 = vmatpush1.xpose.msra.mxu0 0.0
    %1989 = vmatprep.subr.mxu0 0.0
    %1990 = vmatpush1.xpose.msra.mxu0 0.0
    %1991 = vmatprep.subr.mxu0 0.0
    %1992 = vmatpush1.xpose.msra.mxu0 0.0
    %1993 = vmatprep.subr.mxu0 0.0
    %1994 = vmatpush1.xpose.msra.mxu0 0.0
    %1995 = vmatprep.subr.mxu0 0.0
    %1996 = vmatpush1.xpose.msra.mxu0 0.0
    %1997 = vmatprep.mubr.f32.mxu0 0.0
    %1998 = vmatmul.mubr.f32.gmra.mrb[0].mxu0 %v1929
    %v1999 = vpop.f32.mrb[0].mxu0
    %v2000 = vadd.f32 0.0, %v1999
    %v2001 = vpop.f32.mrb[0].mxu0
    %2002 = vdwg.mxu0
    %v2003 = vmul.f32 %v2000, 0.5
    %v2004 = vsel %vm530, %v2003, -inf
    %2005 = vmax.xlane.f32.xlu0 %v2004
    %v2006 = vpop.xlane.xlu0 %2005
    %v2007 = vsub.f32 %v2003, %v2006
    %v2008 = vmul.f32 %v2007, 1.442695
    %v2009 = vpow.pop %v2008
    %v2010 = vsel %vm530, %v2009, 0.0
    %2011 = vadd.xlane.f32.xlu0 %v2010
    %v2012 = vpop.xlane.xlu0 %2011
    %v2013 = vrcp.pop %v2012
    %v2014 = vmul.f32 %v2009, %v2013
    %2015 = vrot.lane.b32.xlu0 %v1756, 92
    %v2016 = vpop.permute.xlu0 %2015
    %v2018 = vsel %vm544, %v2014, 0
    %v2020 = vsel %vm548, %v2016, 0
    %2022 = vmatprep.subr.mxu0 0.0
    %2023 = vmatpush1.msra.mxu0 %v2020
    %2024 = vmatprep.subr.mxu0 0.0
    %2025 = vmatpush1.msra.mxu0 0.0
    %2026 = vmatprep.subr.mxu0 0.0
    %2027 = vmatpush1.msra.mxu0 0.0
    %2028 = vmatprep.subr.mxu0 0.0
    %2029 = vmatpush1.msra.mxu0 0.0
    %2030 = vmatprep.subr.mxu0 0.0
    %2031 = vmatpush1.msra.mxu0 0.0
    %2032 = vmatprep.subr.mxu0 0.0
    %2033 = vmatpush1.msra.mxu0 0.0
    %2034 = vmatprep.subr.mxu0 0.0
    %2035 = vmatpush1.msra.mxu0 0.0
    %2036 = vmatprep.subr.mxu0 0.0
    %2037 = vmatpush1.msra.mxu0 0.0
    %2038 = vmatprep.subr.mxu0 0.0
    %2039 = vmatpush1.msra.mxu0 0.0
    %2040 = vmatprep.subr.mxu0 0.0
    %2041 = vmatpush1.msra.mxu0 0.0
    %2042 = vmatprep.subr.mxu0 0.0
    %2043 = vmatpush1.msra.mxu0 0.0
    %2044 = vmatprep.subr.mxu0 0.0
    %2045 = vmatpush1.msra.mxu0 0.0
    %2046 = vmatprep.subr.mxu0 0.0
    %2047 = vmatpush1.msra.mxu0 0.0
    %2048 = vmatprep.subr.mxu0 0.0
    %2049 = vmatpush1.msra.mxu0 0.0
    %2050 = vmatprep.subr.mxu0 0.0
    %2051 = vmatpush1.msra.mxu0 0.0
    %2052 = vmatprep.subr.mxu0 0.0
    %2053 = vmatpush1.msra.mxu0 0.0
    %2054 = vmatprep.subr.mxu0 0.0
    %2055 = vmatpush1.msra.mxu0 0.0
    %2056 = vmatprep.subr.mxu0 0.0
    %2057 = vmatpush1.msra.mxu0 0.0
    %2058 = vmatprep.subr.mxu0 0.0
    %2059 = vmatpush1.msra.mxu0 0.0
    %2060 = vmatprep.subr.mxu0 0.0
    %2061 = vmatpush1.msra.mxu0 0.0
    %2062 = vmatprep.subr.mxu0 0.0
    %2063 = vmatpush1.msra.mxu0 0.0
    %2064 = vmatprep.subr.mxu0 0.0
    %2065 = vmatpush1.msra.mxu0 0.0
    %2066 = vmatprep.subr.mxu0 0.0
    %2067 = vmatpush1.msra.mxu0 0.0
    %2068 = vmatprep.subr.mxu0 0.0
    %2069 = vmatpush1.msra.mxu0 0.0
    %2070 = vmatprep.subr.mxu0 0.0
    %2071 = vmatpush1.msra.mxu0 0.0
    %2072 = vmatprep.subr.mxu0 0.0
    %2073 = vmatpush1.msra.mxu0 0.0
    %2074 = vmatprep.subr.mxu0 0.0
    %2075 = vmatpush1.msra.mxu0 0.0
    %2076 = vmatprep.subr.mxu0 0.0
    %2077 = vmatpush1.msra.mxu0 0.0
    %2078 = vmatprep.subr.mxu0 0.0
    %2079 = vmatpush1.msra.mxu0 0.0
    %2080 = vmatprep.subr.mxu0 0.0
    %2081 = vmatpush1.msra.mxu0 0.0
    %2082 = vmatprep.subr.mxu0 0.0
    %2083 = vmatpush1.msra.mxu0 0.0
    %2084 = vmatprep.subr.mxu0 0.0
    %2085 = vmatpush1.msra.mxu0 0.0
    %2086 = vmatprep.mubr.f32.mxu0 0.0
    %2087 = vmatmul.mubr.f32.gmra.mrb[0].mxu0 %v2018
    %v2088 = vpop.f32.mrb[0].mxu0
    %v2089 = vadd.f32 0.0, %v2088
    %v2090 = vpop.f32.mrb[0].mxu0
    %2091 = vdwg.mxu0
    %v2093 = vrot.slane %v1676, 4
    %v2095 = vsel %vm454, %v2089, 0
    %v2097 = vsel %vm793, %v2093, 0
    %2099 = vmatprep.subr.mxu0 0.0
    %2100 = vmatpush1.msra.mxu0 %v2097
    %2101 = vmatprep.subr.mxu0 0.0
    %2102 = vmatpush1.msra.mxu0 0.0
    %2103 = vmatprep.subr.mxu0 0.0
    %2104 = vmatpush1.msra.mxu0 0.0
    %2105 = vmatprep.subr.mxu0 0.0
    %2106 = vmatpush1.msra.mxu0 0.0
    %2107 = vmatprep.subr.mxu0 0.0
    %2108 = vmatpush1.msra.mxu0 0.0
    %2109 = vmatprep.subr.mxu0 0.0
    %2110 = vmatpush1.msra.mxu0 0.0
    %2111 = vmatprep.subr.mxu0 0.0
    %2112 = vmatpush1.msra.mxu0 0.0
    %2113 = vmatprep.subr.mxu0 0.0
    %2114 = vmatpush1.msra.mxu0 0.0
    %2115 = vmatprep.subr.mxu0 0.0
    %2116 = vmatpush1.msra.mxu0 0.0
    %2117 = vmatprep.subr.mxu0 0.0
    %2118 = vmatpush1.msra.mxu0 0.0
    %2119 = vmatprep.subr.mxu0 0.0
    %2120 = vmatpush1.msra.mxu0 0.0
    %2121 = vmatprep.subr.mxu0 0.0
    %2122 = vmatpush1.msra.mxu0 0.0
    %2123 = vmatprep.subr.mxu0 0.0
    %2124 = vmatpush1.msra.mxu0 0.0
    %2125 = vmatprep.subr.mxu0 0.0
    %2126 = vmatpush1.msra.mxu0 0.0
    %2127 = vmatprep.subr.mxu0 0.0
    %2128 = vmatpush1.msra.mxu0 0.0
    %2129 = vmatprep.subr.mxu0 0.0
    %2130 = vmatpush1.msra.mxu0 0.0
    %2131 = vmatprep.subr.mxu0 0.0
    %2132 = vmatpush1.msra.mxu0 0.0
    %2133 = vmatprep.subr.mxu0 0.0
    %2134 = vmatpush1.msra.mxu0 0.0
    %2135 = vmatprep.subr.mxu0 0.0
    %2136 = vmatpush1.msra.mxu0 0.0
    %2137 = vmatprep.subr.mxu0 0.0
    %2138 = vmatpush1.msra.mxu0 0.0
    %2139 = vmatprep.subr.mxu0 0.0
    %2140 = vmatpush1.msra.mxu0 0.0
    %2141 = vmatprep.subr.mxu0 0.0
    %2142 = vmatpush1.msra.mxu0 0.0
    %2143 = vmatprep.subr.mxu0 0.0
    %2144 = vmatpush1.msra.mxu0 0.0
    %2145 = vmatprep.subr.mxu0 0.0
    %2146 = vmatpush1.msra.mxu0 0.0
    %2147 = vmatprep.subr.mxu0 0.0
    %2148 = vmatpush1.msra.mxu0 0.0
    %2149 = vmatprep.subr.mxu0 0.0
    %2150 = vmatpush1.msra.mxu0 0.0
    %2151 = vmatprep.subr.mxu0 0.0
    %2152 = vmatpush1.msra.mxu0 0.0
    %2153 = vmatprep.subr.mxu0 0.0
    %2154 = vmatpush1.msra.mxu0 0.0
    %2155 = vmatprep.subr.mxu0 0.0
    %2156 = vmatpush1.msra.mxu0 0.0
    %2157 = vmatprep.subr.mxu0 0.0
    %2158 = vmatpush1.msra.mxu0 0.0
    %2159 = vmatprep.subr.mxu0 0.0
    %2160 = vmatpush1.msra.mxu0 0.0
    %2161 = vmatprep.subr.mxu0 0.0
    %2162 = vmatpush1.msra.mxu0 0.0
    %2163 = vmatprep.mubr.f32.mxu0 0.0
    %2164 = vmatmul.mubr.f32.gmra.mrb[0].mxu0 %v2095
    %v2165 = vpop.f32.mrb[0].mxu0
    %v2166 = vadd.f32 0.0, %v2165
    %v2167 = vpop.f32.mrb[0].mxu0
    %2168 = vdwg.mxu0
    %v2170 = vsel %vm454, %v1922, 0
    %v2172 = vsel %vm793, %v1676, 0
    %2174 = vmatprep.subr.mxu0 0.0
    %2175 = vmatpush1.msra.mxu0 %v2172
    %2176 = vmatprep.subr.mxu0 0.0
    %2177 = vmatpush1.msra.mxu0 0.0
    %2178 = vmatprep.subr.mxu0 0.0
    %2179 = vmatpush1.msra.mxu0 0.0
    %2180 = vmatprep.subr.mxu0 0.0
    %2181 = vmatpush1.msra.mxu0 0.0
    %2182 = vmatprep.subr.mxu0 0.0
    %2183 = vmatpush1.msra.mxu0 0.0
    %2184 = vmatprep.subr.mxu0 0.0
    %2185 = vmatpush1.msra.mxu0 0.0
    %2186 = vmatprep.subr.mxu0 0.0
    %2187 = vmatpush1.msra.mxu0 0.0
    %2188 = vmatprep.subr.mxu0 0.0
    %2189 = vmatpush1.msra.mxu0 0.0
    %2190 = vmatprep.subr.mxu0 0.0
    %2191 = vmatpush1.msra.mxu0 0.0
    %2192 = vmatprep.subr.mxu0 0.0
    %2193 = vmatpush1.msra.mxu0 0.0
    %2194 = vmatprep.subr.mxu0 0.0
    %2195 = vmatpush1.msra.mxu0 0.0
    %2196 = vmatprep.subr.mxu0 0.0
    %2197 = vmatpush1.msra.mxu0 0.0
    %2198 = vmatprep.subr.mxu0 0.0
    %2199 = vmatpush1.msra.mxu0 0.0
    %2200 = vmatprep.subr.mxu0 0.0
    %2201 = vmatpush1.msra.mxu0 0.0
    %2202 = vmatprep.subr.mxu0 0.0
    %2203 = vmatpush1.msra.mxu0 0.0
    %2204 = vmatprep.subr.mxu0 0.0
    %2205 = vmatpush1.msra.mxu0 0.0
    %2206 = vmatprep.subr.mxu0 0.0
    %2207 = vmatpush1.msra.mxu0 0.0
    %2208 = vmatprep.subr.mxu0 0.0
    %2209 = vmatpush1.msra.mxu0 0.0
    %2210 = vmatprep.subr.mxu0 0.0
    %2211 = vmatpush1.msra.mxu0 0.0
    %2212 = vmatprep.subr.mxu0 0.0
    %2213 = vmatpush1.msra.mxu0 0.0
    %2214 = vmatprep.subr.mxu0 0.0
    %2215 = vmatpush1.msra.mxu0 0.0
    %2216 = vmatprep.subr.mxu0 0.0
    %2217 = vmatpush1.msra.mxu0 0.0
    %2218 = vmatprep.subr.mxu0 0.0
    %2219 = vmatpush1.msra.mxu0 0.0
    %2220 = vmatprep.subr.mxu0 0.0
    %2221 = vmatpush1.msra.mxu0 0.0
    %2222 = vmatprep.subr.mxu0 0.0
    %2223 = vmatpush1.msra.mxu0 0.0
    %2224 = vmatprep.subr.mxu0 0.0
    %2225 = vmatpush1.msra.mxu0 0.0
    %2226 = vmatprep.subr.mxu0 0.0
    %2227 = vmatpush1.msra.mxu0 0.0
    %2228 = vmatprep.subr.mxu0 0.0
    %2229 = vmatpush1.msra.mxu0 0.0
    %2230 = vmatprep.subr.mxu0 0.0
    %2231 = vmatpush1.msra.mxu0 0.0
    %2232 = vmatprep.subr.mxu0 0.0
    %2233 = vmatpush1.msra.mxu0 0.0
    %2234 = vmatprep.subr.mxu0 0.0
    %2235 = vmatpush1.msra.mxu0 0.0
    %2236 = vmatprep.subr.mxu0 0.0
    %2237 = vmatpush1.msra.mxu0 0.0
    %2238 = vmatprep.mubr.f32.mxu0 0.0
    %2239 = vmatmul.mubr.f32.gmra.mrb[0].mxu0 %v2170
    %v2240 = vpop.f32.mrb[0].mxu0
    %v2241 = vadd.f32 %v2166, %v2240
    %v2242 = vpop.f32.mrb[0].mxu0
    %2243 = vdwg.mxu0
    %2244 = vrot.lane.b32.xlu0 %v1756, 120
    %v2245 = vpop.permute.xlu0 %2244
    %2246 = vrot.lane.b32.xlu0 %v1756, 104
    %v2247 = vpop.permute.xlu0 %2246
    %v2248 = vsel %vm454, %v2245, 0
    %v2250 = vsel %vm454, %v2247, 0
    %2252 = vmatprep.subr.mxu0 0.0
    %2253 = vmatpush1.xpose.msra.mxu0 %v2250
    %2254 = vmatprep.subr.mxu0 0.0
    %2255 = vmatpush1.xpose.msra.mxu0 0.0
    %2256 = vmatprep.subr.mxu0 0.0
    %2257 = vmatpush1.xpose.msra.mxu0 0.0
    %2258 = vmatprep.subr.mxu0 0.0
    %2259 = vmatpush1.xpose.msra.mxu0 0.0
    %2260 = vmatprep.subr.mxu0 0.0
    %2261 = vmatpush1.xpose.msra.mxu0 0.0
    %2262 = vmatprep.subr.mxu0 0.0
    %2263 = vmatpush1.xpose.msra.mxu0 0.0
    %2264 = vmatprep.subr.mxu0 0.0
    %2265 = vmatpush1.xpose.msra.mxu0 0.0
    %2266 = vmatprep.subr.mxu0 0.0
    %2267 = vmatpush1.xpose.msra.mxu0 0.0
    %2268 = vmatprep.subr.mxu0 0.0
    %2269 = vmatpush1.xpose.msra.mxu0 0.0
    %2270 = vmatprep.subr.mxu0 0.0
    %2271 = vmatpush1.xpose.msra.mxu0 0.0
    %2272 = vmatprep.subr.mxu0 0.0
    %2273 = vmatpush1.xpose.msra.mxu0 0.0
    %2274 = vmatprep.subr.mxu0 0.0
    %2275 = vmatpush1.xpose.msra.mxu0 0.0
    %2276 = vmatprep.subr.mxu0 0.0
    %2277 = vmatpush1.xpose.msra.mxu0 0.0
    %2278 = vmatprep.subr.mxu0 0.0
    %2279 = vmatpush1.xpose.msra.mxu0 0.0
    %2280 = vmatprep.subr.mxu0 0.0
    %2281 = vmatpush1.xpose.msra.mxu0 0.0
    %2282 = vmatprep.subr.mxu0 0.0
    %2283 = vmatpush1.xpose.msra.mxu0 0.0
    %2284 = vmatprep.subr.mxu0 0.0
    %2285 = vmatpush1.xpose.msra.mxu0 0.0
    %2286 = vmatprep.subr.mxu0 0.0
    %2287 = vmatpush1.xpose.msra.mxu0 0.0
    %2288 = vmatprep.subr.mxu0 0.0
    %2289 = vmatpush1.xpose.msra.mxu0 0.0
    %2290 = vmatprep.subr.mxu0 0.0
    %2291 = vmatpush1.xpose.msra.mxu0 0.0
    %2292 = vmatprep.subr.mxu0 0.0
    %2293 = vmatpush1.xpose.msra.mxu0 0.0
    %2294 = vmatprep.subr.mxu0 0.0
    %2295 = vmatpush1.xpose.msra.mxu0 0.0
    %2296 = vmatprep.subr.mxu0 0.0
    %2297 = vmatpush1.xpose.msra.mxu0 0.0
    %2298 = vmatprep.subr.mxu0 0.0
    %2299 = vmatpush1.xpose.msra.mxu0 0.0
    %2300 = vmatprep.subr.mxu0 0.0
    %2301 = vmatpush1.xpose.msra.mxu0 0.0
    %2302 = vmatprep.subr.mxu0 0.0
    %2303 = vmatpush1.xpose.msra.mxu0 0.0
    %2304 = vmatprep.subr.mxu0 0.0
    %2305 = vmatpush1.xpose.msra.mxu0 0.0
    %2306 = vmatprep.subr.mxu0 0.0
    %2307 = vmatpush1.xpose.msra.mxu0 0.0
    %2308 = vmatprep.subr.mxu0 0.0
    %2309 = vmatpush1.xpose.msra.mxu0 0.0
    %2310 = vmatprep.subr.mxu0 0.0
    %2311 = vmatpush1.xpose.msra.mxu0 0.0
    %2312 = vmatprep.subr.mxu0 0.0
    %2313 = vmatpush1.xpose.msra.mxu0 0.0
    %2314 = vmatprep.subr.mxu0 0.0
    %2315 = vmatpush1.xpose.msra.mxu0 0.0
    %2316 = vmatprep.mubr.f32.mxu0 0.0
    %2317 = vmatmul.mubr.f32.gmra.mrb[0].mxu0 %v2248
    %v2318 = vpop.f32.mrb[0].mxu0
    %v2319 = vadd.f32 0.0, %v2318
    %v2320 = vpop.f32.mrb[0].mxu0
    %2321 = vdwg.mxu0
    %v2322 = vmul.f32 %v2319, 0.5
    %v2323 = vsel %vm530, %v2322, -inf
    %2324 = vmax.xlane.f32.xlu0 %v2323
    %v2325 = vpop.xlane.xlu0 %2324
    %v2326 = vsub.f32 %v2322, %v2325
    %v2327 = vmul.f32 %v2326, 1.442695
    %v2328 = vpow.pop %v2327
    %v2329 = vsel %vm530, %v2328, 0.0
    %2330 = vadd.xlane.f32.xlu0 %v2329
    %v2331 = vpop.xlane.xlu0 %2330
    %v2332 = vrcp.pop %v2331
    %v2333 = vmul.f32 %v2328, %v2332
    %2334 = vrot.lane.b32.xlu0 %v1756, 88
    %v2335 = vpop.permute.xlu0 %2334
    %v2337 = vsel %vm544, %v2333, 0
    %v2339 = vsel %vm548, %v2335, 0
    %2341 = vmatprep.subr.mxu0 0.0
    %2342 = vmatpush1.msra.mxu0 %v2339
    %2343 = vmatprep.subr.mxu0 0.0
    %2344 = vmatpush1.msra.mxu0 0.0
    %2345 = vmatprep.subr.mxu0 0.0
    %2346 = vmatpush1.msra.mxu0 0.0
    %2347 = vmatprep.subr.mxu0 0.0
    %2348 = vmatpush1.msra.mxu0 0.0
    %2349 = vmatprep.subr.mxu0 0.0
    %2350 = vmatpush1.msra.mxu0 0.0
    %2351 = vmatprep.subr.mxu0 0.0
    %2352 = vmatpush1.msra.mxu0 0.0
    %2353 = vmatprep.subr.mxu0 0.0
    %2354 = vmatpush1.msra.mxu0 0.0
    %2355 = vmatprep.subr.mxu0 0.0
    %2356 = vmatpush1.msra.mxu0 0.0
    %2357 = vmatprep.subr.mxu0 0.0
    %2358 = vmatpush1.msra.mxu0 0.0
    %2359 = vmatprep.subr.mxu0 0.0
    %2360 = vmatpush1.msra.mxu0 0.0
    %2361 = vmatprep.subr.mxu0 0.0
    %2362 = vmatpush1.msra.mxu0 0.0
    %2363 = vmatprep.subr.mxu0 0.0
    %2364 = vmatpush1.msra.mxu0 0.0
    %2365 = vmatprep.subr.mxu0 0.0
    %2366 = vmatpush1.msra.mxu0 0.0
    %2367 = vmatprep.subr.mxu0 0.0
    %2368 = vmatpush1.msra.mxu0 0.0
    %2369 = vmatprep.subr.mxu0 0.0
    %2370 = vmatpush1.msra.mxu0 0.0
    %2371 = vmatprep.subr.mxu0 0.0
    %2372 = vmatpush1.msra.mxu0 0.0
    %2373 = vmatprep.subr.mxu0 0.0
    %2374 = vmatpush1.msra.mxu0 0.0
    %2375 = vmatprep.subr.mxu0 0.0
    %2376 = vmatpush1.msra.mxu0 0.0
    %2377 = vmatprep.subr.mxu0 0.0
    %2378 = vmatpush1.msra.mxu0 0.0
    %2379 = vmatprep.subr.mxu0 0.0
    %2380 = vmatpush1.msra.mxu0 0.0
    %2381 = vmatprep.subr.mxu0 0.0
    %2382 = vmatpush1.msra.mxu0 0.0
    %2383 = vmatprep.subr.mxu0 0.0
    %2384 = vmatpush1.msra.mxu0 0.0
    %2385 = vmatprep.subr.mxu0 0.0
    %2386 = vmatpush1.msra.mxu0 0.0
    %2387 = vmatprep.subr.mxu0 0.0
    %2388 = vmatpush1.msra.mxu0 0.0
    %2389 = vmatprep.subr.mxu0 0.0
    %2390 = vmatpush1.msra.mxu0 0.0
    %2391 = vmatprep.subr.mxu0 0.0
    %2392 = vmatpush1.msra.mxu0 0.0
    %2393 = vmatprep.subr.mxu0 0.0
    %2394 = vmatpush1.msra.mxu0 0.0
    %2395 = vmatprep.subr.mxu0 0.0
    %2396 = vmatpush1.msra.mxu0 0.0
    %2397 = vmatprep.subr.mxu0 0.0
    %2398 = vmatpush1.msra.mxu0 0.0
    %2399 = vmatprep.subr.mxu0 0.0
    %2400 = vmatpush1.msra.mxu0 0.0
    %2401 = vmatprep.subr.mxu0 0.0
    %2402 = vmatpush1.msra.mxu0 0.0
    %2403 = vmatprep.subr.mxu0 0.0
    %2404 = vmatpush1.msra.mxu0 0.0
    %2405 = vmatprep.mubr.f32.mxu0 0.0
    %2406 = vmatmul.mubr.f32.gmra.mrb[0].mxu0 %v2337
    %v2407 = vpop.f32.mrb[0].mxu0
    %v2408 = vadd.f32 0.0, %v2407
    %v2409 = vpop.f32.mrb[0].mxu0
    %2410 = vdwg.mxu0
    %v2412 = vsel %vm454, %v2408, 0
    %v2415 = vsel %vm793, %v1677, 0
    %2417 = vmatprep.subr.mxu0 0.0
    %2418 = vmatpush1.msra.mxu0 %v2415
    %2419 = vmatprep.subr.mxu0 0.0
    %2420 = vmatpush1.msra.mxu0 0.0
    %2421 = vmatprep.subr.mxu0 0.0
    %2422 = vmatpush1.msra.mxu0 0.0
    %2423 = vmatprep.subr.mxu0 0.0
    %2424 = vmatpush1.msra.mxu0 0.0
    %2425 = vmatprep.subr.mxu0 0.0
    %2426 = vmatpush1.msra.mxu0 0.0
    %2427 = vmatprep.subr.mxu0 0.0
    %2428 = vmatpush1.msra.mxu0 0.0
    %2429 = vmatprep.subr.mxu0 0.0
    %2430 = vmatpush1.msra.mxu0 0.0
    %2431 = vmatprep.subr.mxu0 0.0
    %2432 = vmatpush1.msra.mxu0 0.0
    %2433 = vmatprep.subr.mxu0 0.0
    %2434 = vmatpush1.msra.mxu0 0.0
    %2435 = vmatprep.subr.mxu0 0.0
    %2436 = vmatpush1.msra.mxu0 0.0
    %2437 = vmatprep.subr.mxu0 0.0
    %2438 = vmatpush1.msra.mxu0 0.0
    %2439 = vmatprep.subr.mxu0 0.0
    %2440 = vmatpush1.msra.mxu0 0.0
    %2441 = vmatprep.subr.mxu0 0.0
    %2442 = vmatpush1.msra.mxu0 0.0
    %2443 = vmatprep.subr.mxu0 0.0
    %2444 = vmatpush1.msra.mxu0 0.0
    %2445 = vmatprep.subr.mxu0 0.0
    %2446 = vmatpush1.msra.mxu0 0.0
    %2447 = vmatprep.subr.mxu0 0.0
    %2448 = vmatpush1.msra.mxu0 0.0
    %2449 = vmatprep.subr.mxu0 0.0
    %2450 = vmatpush1.msra.mxu0 0.0
    %2451 = vmatprep.subr.mxu0 0.0
    %2452 = vmatpush1.msra.mxu0 0.0
    %2453 = vmatprep.subr.mxu0 0.0
    %2454 = vmatpush1.msra.mxu0 0.0
    %2455 = vmatprep.subr.mxu0 0.0
    %2456 = vmatpush1.msra.mxu0 0.0
    %2457 = vmatprep.subr.mxu0 0.0
    %2458 = vmatpush1.msra.mxu0 0.0
    %2459 = vmatprep.subr.mxu0 0.0
    %2460 = vmatpush1.msra.mxu0 0.0
    %2461 = vmatprep.subr.mxu0 0.0
    %2462 = vmatpush1.msra.mxu0 0.0
    %2463 = vmatprep.subr.mxu0 0.0
    %2464 = vmatpush1.msra.mxu0 0.0
    %2465 = vmatprep.subr.mxu0 0.0
    %2466 = vmatpush1.msra.mxu0 0.0
    %2467 = vmatprep.subr.mxu0 0.0
    %2468 = vmatpush1.msra.mxu0 0.0
    %2469 = vmatprep.subr.mxu0 0.0
    %2470 = vmatpush1.msra.mxu0 0.0
    %2471 = vmatprep.subr.mxu0 0.0
    %2472 = vmatpush1.msra.mxu0 0.0
    %2473 = vmatprep.subr.mxu0 0.0
    %2474 = vmatpush1.msra.mxu0 0.0
    %2475 = vmatprep.subr.mxu0 0.0
    %2476 = vmatpush1.msra.mxu0 0.0
    %2477 = vmatprep.subr.mxu0 0.0
    %2478 = vmatpush1.msra.mxu0 0.0
    %2479 = vmatprep.subr.mxu0 0.0
    %2480 = vmatpush1.msra.mxu0 0.0
    %2481 = vmatprep.mubr.f32.mxu0 0.0
    %2482 = vmatmul.mubr.f32.gmra.mrb[0].mxu0 %v2412
    %v2483 = vpop.f32.mrb[0].mxu0
    %v2484 = vadd.f32 0.0, %v2483
    %v2485 = vpop.f32.mrb[0].mxu0
    %2486 = vdwg.mxu0
    %v2487 = vadd.f32 %v2241, %v2484
    %2488 = vrot.lane.b32.xlu0 %v1756, 116
    %v2489 = vpop.permute.xlu0 %2488
    %2490 = vrot.lane.b32.xlu0 %v1756, 100
    %v2491 = vpop.permute.xlu0 %2490
    %v2492 = vsel %vm454, %v2489, 0
    %v2494 = vsel %vm454, %v2491, 0
    %2496 = vmatprep.subr.mxu0 0.0
    %2497 = vmatpush1.xpose.msra.mxu0 %v2494
    %2498 = vmatprep.subr.mxu0 0.0
    %2499 = vmatpush1.xpose.msra.mxu0 0.0
    %2500 = vmatprep.subr.mxu0 0.0
    %2501 = vmatpush1.xpose.msra.mxu0 0.0
    %2502 = vmatprep.subr.mxu0 0.0
    %2503 = vmatpush1.xpose.msra.mxu0 0.0
    %2504 = vmatprep.subr.mxu0 0.0
    %2505 = vmatpush1.xpose.msra.mxu0 0.0
    %2506 = vmatprep.subr.mxu0 0.0
    %2507 = vmatpush1.xpose.msra.mxu0 0.0
    %2508 = vmatprep.subr.mxu0 0.0
    %2509 = vmatpush1.xpose.msra.mxu0 0.0
    %2510 = vmatprep.subr.mxu0 0.0
    %2511 = vmatpush1.xpose.msra.mxu0 0.0
    %2512 = vmatprep.subr.mxu0 0.0
    %2513 = vmatpush1.xpose.msra.mxu0 0.0
    %2514 = vmatprep.subr.mxu0 0.0
    %2515 = vmatpush1.xpose.msra.mxu0 0.0
    %2516 = vmatprep.subr.mxu0 0.0
    %2517 = vmatpush1.xpose.msra.mxu0 0.0
    %2518 = vmatprep.subr.mxu0 0.0
    %2519 = vmatpush1.xpose.msra.mxu0 0.0
    %2520 = vmatprep.subr.mxu0 0.0
    %2521 = vmatpush1.xpose.msra.mxu0 0.0
    %2522 = vmatprep.subr.mxu0 0.0
    %2523 = vmatpush1.xpose.msra.mxu0 0.0
    %2524 = vmatprep.subr.mxu0 0.0
    %2525 = vmatpush1.xpose.msra.mxu0 0.0
    %2526 = vmatprep.subr.mxu0 0.0
    %2527 = vmatpush1.xpose.msra.mxu0 0.0
    %2528 = vmatprep.subr.mxu0 0.0
    %2529 = vmatpush1.xpose.msra.mxu0 0.0
    %2530 = vmatprep.subr.mxu0 0.0
    %2531 = vmatpush1.xpose.msra.mxu0 0.0
    %2532 = vmatprep.subr.mxu0 0.0
    %2533 = vmatpush1.xpose.msra.mxu0 0.0
    %2534 = vmatprep.subr.mxu0 0.0
    %2535 = vmatpush1.xpose.msra.mxu0 0.0
    %2536 = vmatprep.subr.mxu0 0.0
    %2537 = vmatpush1.xpose.msra.mxu0 0.0
    %2538 = vmatprep.subr.mxu0 0.0
    %2539 = vmatpush1.xpose.msra.mxu0 0.0
    %2540 = vmatprep.subr.mxu0 0.0
    %2541 = vmatpush1.xpose.msra.mxu0 0.0
    %2542 = vmatprep.subr.mxu0 0.0
    %2543 = vmatpush1.xpose.msra.mxu0 0.0
    %2544 = vmatprep.subr.mxu0 0.0
    %2545 = vmatpush1.xpose.msra.mxu0 0.0
    %2546 = vmatprep.subr.mxu0 0.0
    %2547 = vmatpush1.xpose.msra.mxu0 0.0
    %2548 = vmatprep.subr.mxu0 0.0
    %2549 = vmatpush1.xpose.msra.mxu0 0.0
    %2550 = vmatprep.subr.mxu0 0.0
    %2551 = vmatpush1.xpose.msra.mxu0 0.0
    %2552 = vmatprep.subr.mxu0 0.0
    %2553 = vmatpush1.xpose.msra.mxu0 0.0
    %2554 = vmatprep.subr.mxu0 0.0
    %2555 = vmatpush1.xpose.msra.mxu0 0.0
    %2556 = vmatprep.subr.mxu0 0.0
    %2557 = vmatpush1.xpose.msra.mxu0 0.0
    %2558 = vmatprep.subr.mxu0 0.0
    %2559 = vmatpush1.xpose.msra.mxu0 0.0
    %2560 = vmatprep.mubr.f32.mxu0 0.0
    %2561 = vmatmul.mubr.f32.gmra.mrb[0].mxu0 %v2492
    %v2562 = vpop.f32.mrb[0].mxu0
    %v2563 = vadd.f32 0.0, %v2562
    %v2564 = vpop.f32.mrb[0].mxu0
    %2565 = vdwg.mxu0
    %v2566 = vmul.f32 %v2563, 0.5
    %v2567 = vsel %vm530, %v2566, -inf
    %2568 = vmax.xlane.f32.xlu0 %v2567
    %v2569 = vpop.xlane.xlu0 %2568
    %v2570 = vsub.f32 %v2566, %v2569
    %v2571 = vmul.f32 %v2570, 1.442695
    %v2572 = vpow.pop %v2571
    %v2573 = vsel %vm530, %v2572, 0.0
    %2574 = vadd.xlane.f32.xlu0 %v2573
    %v2575 = vpop.xlane.xlu0 %2574
    %v2576 = vrcp.pop %v2575
    %v2577 = vmul.f32 %v2572, %v2576
    %2578 = vrot.lane.b32.xlu0 %v1756, 84
    %v2579 = vpop.permute.xlu0 %2578
    %v2581 = vsel %vm544, %v2577, 0
    %v2583 = vsel %vm548, %v2579, 0
    %2585 = vmatprep.subr.mxu0 0.0
    %2586 = vmatpush1.msra.mxu0 %v2583
    %2587 = vmatprep.subr.mxu0 0.0
    %2588 = vmatpush1.msra.mxu0 0.0
    %2589 = vmatprep.subr.mxu0 0.0
    %2590 = vmatpush1.msra.mxu0 0.0
    %2591 = vmatprep.subr.mxu0 0.0
    %2592 = vmatpush1.msra.mxu0 0.0
    %2593 = vmatprep.subr.mxu0 0.0
    %2594 = vmatpush1.msra.mxu0 0.0
    %2595 = vmatprep.subr.mxu0 0.0
    %2596 = vmatpush1.msra.mxu0 0.0
    %2597 = vmatprep.subr.mxu0 0.0
    %2598 = vmatpush1.msra.mxu0 0.0
    %2599 = vmatprep.subr.mxu0 0.0
    %2600 = vmatpush1.msra.mxu0 0.0
    %2601 = vmatprep.subr.mxu0 0.0
    %2602 = vmatpush1.msra.mxu0 0.0
    %2603 = vmatprep.subr.mxu0 0.0
    %2604 = vmatpush1.msra.mxu0 0.0
    %2605 = vmatprep.subr.mxu0 0.0
    %2606 = vmatpush1.msra.mxu0 0.0
    %2607 = vmatprep.subr.mxu0 0.0
    %2608 = vmatpush1.msra.mxu0 0.0
    %2609 = vmatprep.subr.mxu0 0.0
    %2610 = vmatpush1.msra.mxu0 0.0
    %2611 = vmatprep.subr.mxu0 0.0
    %2612 = vmatpush1.msra.mxu0 0.0
    %2613 = vmatprep.subr.mxu0 0.0
    %2614 = vmatpush1.msra.mxu0 0.0
    %2615 = vmatprep.subr.mxu0 0.0
    %2616 = vmatpush1.msra.mxu0 0.0
    %2617 = vmatprep.subr.mxu0 0.0
    %2618 = vmatpush1.msra.mxu0 0.0
    %2619 = vmatprep.subr.mxu0 0.0
    %2620 = vmatpush1.msra.mxu0 0.0
    %2621 = vmatprep.subr.mxu0 0.0
    %2622 = vmatpush1.msra.mxu0 0.0
    %2623 = vmatprep.subr.mxu0 0.0
    %2624 = vmatpush1.msra.mxu0 0.0
    %2625 = vmatprep.subr.mxu0 0.0
    %2626 = vmatpush1.msra.mxu0 0.0
    %2627 = vmatprep.subr.mxu0 0.0
    %2628 = vmatpush1.msra.mxu0 0.0
    %2629 = vmatprep.subr.mxu0 0.0
    %2630 = vmatpush1.msra.mxu0 0.0
    %2631 = vmatprep.subr.mxu0 0.0
    %2632 = vmatpush1.msra.mxu0 0.0
    %2633 = vmatprep.subr.mxu0 0.0
    %2634 = vmatpush1.msra.mxu0 0.0
    %2635 = vmatprep.subr.mxu0 0.0
    %2636 = vmatpush1.msra.mxu0 0.0
    %2637 = vmatprep.subr.mxu0 0.0
    %2638 = vmatpush1.msra.mxu0 0.0
    %2639 = vmatprep.subr.mxu0 0.0
    %2640 = vmatpush1.msra.mxu0 0.0
    %2641 = vmatprep.subr.mxu0 0.0
    %2642 = vmatpush1.msra.mxu0 0.0
    %2643 = vmatprep.subr.mxu0 0.0
    %2644 = vmatpush1.msra.mxu0 0.0
    %2645 = vmatprep.subr.mxu0 0.0
    %2646 = vmatpush1.msra.mxu0 0.0
    %2647 = vmatprep.subr.mxu0 0.0
    %2648 = vmatpush1.msra.mxu0 0.0
    %2649 = vmatprep.mubr.f32.mxu0 0.0
    %2650 = vmatmul.mubr.f32.gmra.mrb[0].mxu0 %v2581
    %v2651 = vpop.f32.mrb[0].mxu0
    %v2652 = vadd.f32 0.0, %v2651
    %v2653 = vpop.f32.mrb[0].mxu0
    %2654 = vdwg.mxu0
    %v2655 = vrot.slane %v1677, 4
    %v2657 = vsel %vm454, %v2652, 0
    %v2659 = vsel %vm793, %v2655, 0
    %2661 = vmatprep.subr.mxu0 0.0
    %2662 = vmatpush1.msra.mxu0 %v2659
    %2663 = vmatprep.subr.mxu0 0.0
    %2664 = vmatpush1.msra.mxu0 0.0
    %2665 = vmatprep.subr.mxu0 0.0
    %2666 = vmatpush1.msra.mxu0 0.0
    %2667 = vmatprep.subr.mxu0 0.0
    %2668 = vmatpush1.msra.mxu0 0.0
    %2669 = vmatprep.subr.mxu0 0.0
    %2670 = vmatpush1.msra.mxu0 0.0
    %2671 = vmatprep.subr.mxu0 0.0
    %2672 = vmatpush1.msra.mxu0 0.0
    %2673 = vmatprep.subr.mxu0 0.0
    %2674 = vmatpush1.msra.mxu0 0.0
    %2675 = vmatprep.subr.mxu0 0.0
    %2676 = vmatpush1.msra.mxu0 0.0
    %2677 = vmatprep.subr.mxu0 0.0
    %2678 = vmatpush1.msra.mxu0 0.0
    %2679 = vmatprep.subr.mxu0 0.0
    %2680 = vmatpush1.msra.mxu0 0.0
    %2681 = vmatprep.subr.mxu0 0.0
    %2682 = vmatpush1.msra.mxu0 0.0
    %2683 = vmatprep.subr.mxu0 0.0
    %2684 = vmatpush1.msra.mxu0 0.0
    %2685 = vmatprep.subr.mxu0 0.0
    %2686 = vmatpush1.msra.mxu0 0.0
    %2687 = vmatprep.subr.mxu0 0.0
    %2688 = vmatpush1.msra.mxu0 0.0
    %2689 = vmatprep.subr.mxu0 0.0
    %2690 = vmatpush1.msra.mxu0 0.0
    %2691 = vmatprep.subr.mxu0 0.0
    %2692 = vmatpush1.msra.mxu0 0.0
    %2693 = vmatprep.subr.mxu0 0.0
    %2694 = vmatpush1.msra.mxu0 0.0
    %2695 = vmatprep.subr.mxu0 0.0
    %2696 = vmatpush1.msra.mxu0 0.0
    %2697 = vmatprep.subr.mxu0 0.0
    %2698 = vmatpush1.msra.mxu0 0.0
    %2699 = vmatprep.subr.mxu0 0.0
    %2700 = vmatpush1.msra.mxu0 0.0
    %2701 = vmatprep.subr.mxu0 0.0
    %2702 = vmatpush1.msra.mxu0 0.0
    %2703 = vmatprep.subr.mxu0 0.0
    %2704 = vmatpush1.msra.mxu0 0.0
    %2705 = vmatprep.subr.mxu0 0.0
    %2706 = vmatpush1.msra.mxu0 0.0
    %2707 = vmatprep.subr.mxu0 0.0
    %2708 = vmatpush1.msra.mxu0 0.0
    %2709 = vmatprep.subr.mxu0 0.0
    %2710 = vmatpush1.msra.mxu0 0.0
    %2711 = vmatprep.subr.mxu0 0.0
    %2712 = vmatpush1.msra.mxu0 0.0
    %2713 = vmatprep.subr.mxu0 0.0
    %2714 = vmatpush1.msra.mxu0 0.0
    %2715 = vmatprep.subr.mxu0 0.0
    %2716 = vmatpush1.msra.mxu0 0.0
    %2717 = vmatprep.subr.mxu0 0.0
    %2718 = vmatpush1.msra.mxu0 0.0
    %2719 = vmatprep.subr.mxu0 0.0
    %2720 = vmatpush1.msra.mxu0 0.0
    %2721 = vmatprep.subr.mxu0 0.0
    %2722 = vmatpush1.msra.mxu0 0.0
    %2723 = vmatprep.subr.mxu0 0.0
    %2724 = vmatpush1.msra.mxu0 0.0
    %2725 = vmatprep.mubr.f32.mxu0 0.0
    %2726 = vmatmul.mubr.f32.gmra.mrb[0].mxu0 %v2657
    %v2727 = vpop.f32.mrb[0].mxu0
    %v2728 = vadd.f32 0.0, %v2727
    %v2729 = vpop.f32.mrb[0].mxu0
    %2730 = vdwg.mxu0
    %v2731 = vadd.f32 %v2487, %v2728
    %v2733 = vlaneseq
    %v2734 = vshrl.u32 %v2733, 7
    %v2735 = vsub.s32 0, %v2734
    %v2736 = vrot.slane %v1679, %v2735
    %v2738 = vadd.f32 %v2731, %v2736
    %v2739 = vadd.f32 %v1669, %v2738
    %v2740 = vsel %vm1437, %v2739, 0.0
    %2741 = vadd.xlane.f32.xlu0 %v2740
    %v2742 = vpop.xlane.xlu0 %2741
    %v2743 = vmul.f32 %v2742, %v1441
    %v2744 = vsub.f32 %v2739, %v2743
    %v2745 = vmul.f32 %v2744, %v2744
    %v2746 = vsel %vm1437, %v2745, 0.0
    %2747 = vadd.xlane.f32.xlu0 %v2746
    %v2748 = vpop.xlane.xlu0 %2747
    %v2749 = vmul.f32 %v2748, %v1441
    %v2750 = vadd.f32 %v2749, 1e-05
    %v2751 = vrsqrt.pop %v2750
    %v2752 = vmul.f32 %v2744, %v2751
    %s2753 = scalar_lea.vmem %s9, 1
    %v2754 = vld [vmem:[%s2753] sm:$0x1]
    %v2756 = vlaneseq
    %v2757 = vshrl.u32 %v2756, 7
    %v2758 = vsub.s32 0, %v2757
    %v2759 = vrot.slane %v2754, %v2758
    %v2761 = vmul.f32 %v2752, %v2759
    %s2762 = scalar_lea.vmem %s10, 1
    %v2763 = vld [vmem:[%s2762] sm:$0x1]
    %v2765 = vlaneseq
    %v2766 = vshrl.u32 %v2765, 7
    %v2767 = vsub.s32 0, %v2766
    %v2768 = vrot.slane %v2763, %v2767
    %v2770 = vadd.f32 %v2761, %v2768
    %s2771 = scalar_lea.vmem %s11, 16
    %v2772 = vld [vmem:[%s2771] sm:$0xff]
    %v2773 = vld [vmem:[%s2771 + $0x8] sm:$0xff]
    %s2774 = scalar_lea.vmem %s12, 1
    %v2775 = vld [vmem:[%s2774] sm:$0x1]
    %v2777 = vlaneseq
    %v2778 = vshrl.u32 %v2777, 7
    %v2779 = vsub.s32 0, %v2778
    %v2780 = vrot.slane %v2775, %v2779
    %v2783 = vsel %vm377, %v2770, 0
    %2785 = vmatprep.subr.mxu0 0.0
    %2786 = vmatpush1.msra.mxu0 %v2772
    %2787 = vmatprep.subr.mxu0 0.0
    %2788 = vmatpush1.msra.mxu0 %v2773
    %2789 = vmatprep.subr.mxu0 0.0
    %2790 = vmatpush1.msra.mxu0 0.0
    %2791 = vmatprep.subr.mxu0 0.0
    %2792 = vmatpush1.msra.mxu0 0.0
    %2793 = vmatprep.subr.mxu0 0.0
    %2794 = vmatpush1.msra.mxu0 0.0
    %2795 = vmatprep.subr.mxu0 0.0
    %2796 = vmatpush1.msra.mxu0 0.0
    %2797 = vmatprep.subr.mxu0 0.0
    %2798 = vmatpush1.msra.mxu0 0.0
    %2799 = vmatprep.subr.mxu0 0.0
    %2800 = vmatpush1.msra.mxu0 0.0
    %2801 = vmatprep.subr.mxu0 0.0
    %2802 = vmatpush1.msra.mxu0 0.0
    %2803 = vmatprep.subr.mxu0 0.0
    %2804 = vmatpush1.msra.mxu0 0.0
    %2805 = vmatprep.subr.mxu0 0.0
    %2806 = vmatpush1.msra.mxu0 0.0
    %2807 = vmatprep.subr.mxu0 0.0
    %2808 = vmatpush1.msra.mxu0 0.0
    %2809 = vmatprep.subr.mxu0 0.0
    %2810 = vmatpush1.msra.mxu0 0.0
    %2811 = vmatprep.subr.mxu0 0.0
    %2812 = vmatpush1.msra.mxu0 0.0
    %2813 = vmatprep.subr.mxu0 0.0
    %2814 = vmatpush1.msra.mxu0 0.0
    %2815 = vmatprep.subr.mxu0 0.0
    %2816 = vmatpush1.msra.mxu0 0.0
    %2817 = vmatprep.subr.mxu0 0.0
    %2818 = vmatpush1.msra.mxu0 0.0
    %2819 = vmatprep.subr.mxu0 0.0
    %2820 = vmatpush1.msra.mxu0 0.0
    %2821 = vmatprep.subr.mxu0 0.0
    %2822 = vmatpush1.msra.mxu0 0.0
    %2823 = vmatprep.subr.mxu0 0.0
    %2824 = vmatpush1.msra.mxu0 0.0
    %2825 = vmatprep.subr.mxu0 0.0
    %2826 = vmatpush1.msra.mxu0 0.0
    %2827 = vmatprep.subr.mxu0 0.0
    %2828 = vmatpush1.msra.mxu0 0.0
    %2829 = vmatprep.subr.mxu0 0.0
    %2830 = vmatpush1.msra.mxu0 0.0
    %2831 = vmatprep.subr.mxu0 0.0
    %2832 = vmatpush1.msra.mxu0 0.0
    %2833 = vmatprep.subr.mxu0 0.0
    %2834 = vmatpush1.msra.mxu0 0.0
    %2835 = vmatprep.subr.mxu0 0.0
    %2836 = vmatpush1.msra.mxu0 0.0
    %2837 = vmatprep.subr.mxu0 0.0
    %2838 = vmatpush1.msra.mxu0 0.0
    %2839 = vmatprep.subr.mxu0 0.0
    %2840 = vmatpush1.msra.mxu0 0.0
    %2841 = vmatprep.subr.mxu0 0.0
    %2842 = vmatpush1.msra.mxu0 0.0
    %2843 = vmatprep.subr.mxu0 0.0
    %2844 = vmatpush1.msra.mxu0 0.0
    %2845 = vmatprep.subr.mxu0 0.0
    %2846 = vmatpush1.msra.mxu0 0.0
    %2847 = vmatprep.subr.mxu0 0.0
    %2848 = vmatpush1.msra.mxu0 0.0
    %2849 = vmatprep.mubr.f32.mxu0 0.0
    %2850 = vmatmul.mubr.f32.gmra.mrb[0].mxu0 %v2783
    %v2851 = vpop.f32.mrb[0].mxu0
    %v2852 = vadd.f32 %v2780, %v2851
    %v2853 = vpop.f32.mrb[0].mxu0
    %2854 = vdwg.mxu0
    %v2855 = vmax.f32 %v2852, 0.0
    %s2856 = scalar_lea.vmem %s13, 64
    %v2857 = vld [vmem:[%s2856] sm:$0xff]
    %v2858 = vld [vmem:[%s2856 + $0x8] sm:$0xff]
    %v2859 = vld [vmem:[%s2856 + $0x10] sm:$0xff]
    %v2860 = vld [vmem:[%s2856 + $0x18] sm:$0xff]
    %v2861 = vld [vmem:[%s2856 + $0x20] sm:$0xff]
    %v2862 = vld [vmem:[%s2856 + $0x28] sm:$0xff]
    %v2863 = vld [vmem:[%s2856 + $0x30] sm:$0xff]
    %v2864 = vld [vmem:[%s2856 + $0x38] sm:$0xff]
    %s2865 = scalar_lea.vmem %s14, 1
    %v2866 = vld [vmem:[%s2865] sm:$0x1]
    %v2868 = vlaneseq
    %v2869 = vshrl.u32 %v2868, 7
    %v2870 = vsub.s32 0, %v2869
    %v2871 = vrot.slane %v2866, %v2870
    %v2874 = vsel %vm1566, %v2855, 0
    %2876 = vmatprep.subr.mxu0 0.0
    %2877 = vmatpush1.msra.mxu0 %v2857
    %2878 = vmatprep.subr.mxu0 0.0
    %2879 = vmatpush1.msra.mxu0 %v2858
    %2880 = vmatprep.subr.mxu0 0.0
    %2881 = vmatpush1.msra.mxu0 %v2859
    %2882 = vmatprep.subr.mxu0 0.0
    %2883 = vmatpush1.msra.mxu0 %v2860
    %2884 = vmatprep.subr.mxu0 0.0
    %2885 = vmatpush1.msra.mxu0 %v2861
    %2886 = vmatprep.subr.mxu0 0.0
    %2887 = vmatpush1.msra.mxu0 %v2862
    %2888 = vmatprep.subr.mxu0 0.0
    %2889 = vmatpush1.msra.mxu0 %v2863
    %2890 = vmatprep.subr.mxu0 0.0
    %2891 = vmatpush1.msra.mxu0 %v2864
    %2892 = vmatprep.subr.mxu0 0.0
    %2893 = vmatpush1.msra.mxu0 0.0
    %2894 = vmatprep.subr.mxu0 0.0
    %2895 = vmatpush1.msra.mxu0 0.0
    %2896 = vmatprep.subr.mxu0 0.0
    %2897 = vmatpush1.msra.mxu0 0.0
    %2898 = vmatprep.subr.mxu0 0.0
    %2899 = vmatpush1.msra.mxu0 0.0
    %2900 = vmatprep.subr.mxu0 0.0
    %2901 = vmatpush1.msra.mxu0 0.0
    %2902 = vmatprep.subr.mxu0 0.0
    %2903 = vmatpush1.msra.mxu0 0.0
    %2904 = vmatprep.subr.mxu0 0.0
    %2905 = vmatpush1.msra.mxu0 0.0
    %2906 = vmatprep.subr.mxu0 0.0
    %2907 = vmatpush1.msra.mxu0 0.0
    %2908 = vmatprep.subr.mxu0 0.0
    %2909 = vmatpush1.msra.mxu0 0.0
    %2910 = vmatprep.subr.mxu0 0.0
    %2911 = vmatpush1.msra.mxu0 0.0
    %2912 = vmatprep.subr.mxu0 0.0
    %2913 = vmatpush1.msra.mxu0 0.0
    %2914 = vmatprep.subr.mxu0 0.0
    %2915 = vmatpush1.msra.mxu0 0.0
    %2916 = vmatprep.subr.mxu0 0.0
    %2917 = vmatpush1.msra.mxu0 0.0
    %2918 = vmatprep.subr.mxu0 0.0
    %2919 = vmatpush1.msra.mxu0 0.0
    %2920 = vmatprep.subr.mxu0 0.0
    %2921 = vmatpush1.msra.mxu0 0.0
    %2922 = vmatprep.subr.mxu0 0.0
    %2923 = vmatpush1.msra.mxu0 0.0
    %2924 = vmatprep.subr.mxu0 0.0
    %2925 = vmatpush1.msra.mxu0 0.0
    %2926 = vmatprep.subr.mxu0 0.0
    %2927 = vmatpush1.msra.mxu0 0.0
    %2928 = vmatprep.subr.mxu0 0.0
    %2929 = vmatpush1.msra.mxu0 0.0
    %2930 = vmatprep.subr.mxu0 0.0
    %2931 = vmatpush1.msra.mxu0 0.0
    %2932 = vmatprep.subr.mxu0 0.0
    %2933 = vmatpush1.msra.mxu0 0.0
    %2934 = vmatprep.subr.mxu0 0.0
    %2935 = vmatpush1.msra.mxu0 0.0
    %2936 = vmatprep.subr.mxu0 0.0
    %2937 = vmatpush1.msra.mxu0 0.0
    %2938 = vmatprep.subr.mxu0 0.0
    %2939 = vmatpush1.msra.mxu0 0.0
    %2940 = vmatprep.mubr.f32.mxu0 0.0
    %2941 = vmatmul.mubr.f32.gmra.mrb[0].mxu0 %v2874
    %v2942 = vpop.f32.mrb[0].mxu0
    %v2943 = vadd.f32 %v2871, %v2942
    %v2944 = vpop.f32.mrb[0].mxu0
    %2945 = vdwg.mxu0
    %v2946 = vadd.f32 %v2770, %v2943
    %v2947 = vsel %vm1437, %v2946, 0.0
    %2948 = vadd.xlane.f32.xlu0 %v2947
    %v2949 = vpop.xlane.xlu0 %2948
    %v2950 = vmul.f32 %v2949, %v1441
    %v2951 = vsub.f32 %v2946, %v2950
    %v2952 = vmul.f32 %v2951, %v2951
    %v2953 = vsel %vm1437, %v2952, 0.0
    %2954 = vadd.xlane.f32.xlu0 %v2953
    %v2955 = vpop.xlane.xlu0 %2954
    %v2956 = vmul.f32 %v2955, %v1441
    %v2957 = vadd.f32 %v2956, 1e-05
    %v2958 = vrsqrt.pop %v2957
    %v2959 = vmul.f32 %v2951, %v2958
    %s2960 = scalar_lea.vmem %s15, 1
    %v2961 = vld [vmem:[%s2960] sm:$0x1]
    %v2963 = vlaneseq
    %v2964 = vshrl.u32 %v2963, 7
    %v2965 = vsub.s32 0, %v2964
    %v2966 = vrot.slane %v2961, %v2965
    %v2968 = vmul.f32 %v2959, %v2966
    %s2969 = scalar_lea.vmem %s16, 1
    %v2970 = vld [vmem:[%s2969] sm:$0x1]
    %v2972 = vlaneseq
    %v2973 = vshrl.u32 %v2972, 7
    %v2974 = vsub.s32 0, %v2973
    %v2975 = vrot.slane %v2970, %v2974
    %v2977 = vadd.f32 %v2968, %v2975
    %v2978 = vld [vmem:[%s17] sm:$0xff]
    %v2979 = vld [vmem:[%s17 + $0x8] sm:$0xff]
    %v2980 = vld [vmem:[%s18] sm:$0x1]
    %v2982 = vlaneseq
    %v2983 = vshrl.u32 %v2982, 7
    %v2984 = vsub.s32 0, %v2983
    %v2985 = vrot.slane %v2980, %v2984
    %v2988 = vsel %vm377, %v2977, 0
    %2990 = vmatprep.subr.mxu0 0.0
    %2991 = vmatpush1.msra.mxu0 %v2978
    %2992 = vmatprep.subr.mxu0 0.0
    %2993 = vmatpush1.msra.mxu0 %v2979
    %2994 = vmatprep.subr.mxu0 0.0
    %2995 = vmatpush1.msra.mxu0 0.0
    %2996 = vmatprep.subr.mxu0 0.0
    %2997 = vmatpush1.msra.mxu0 0.0
    %2998 = vmatprep.subr.mxu0 0.0
    %2999 = vmatpush1.msra.mxu0 0.0
    %3000 = vmatprep.subr.mxu0 0.0
    %3001 = vmatpush1.msra.mxu0 0.0
    %3002 = vmatprep.subr.mxu0 0.0
    %3003 = vmatpush1.msra.mxu0 0.0
    %3004 = vmatprep.subr.mxu0 0.0
    %3005 = vmatpush1.msra.mxu0 0.0
    %3006 = vmatprep.subr.mxu0 0.0
    %3007 = vmatpush1.msra.mxu0 0.0
    %3008 = vmatprep.subr.mxu0 0.0
    %3009 = vmatpush1.msra.mxu0 0.0
    %3010 = vmatprep.subr.mxu0 0.0
    %3011 = vmatpush1.msra.mxu0 0.0
    %3012 = vmatprep.subr.mxu0 0.0
    %3013 = vmatpush1.msra.mxu0 0.0
    %3014 = vmatprep.subr.mxu0 0.0
    %3015 = vmatpush1.msra.mxu0 0.0
    %3016 = vmatprep.subr.mxu0 0.0
    %3017 = vmatpush1.msra.mxu0 0.0
    %3018 = vmatprep.subr.mxu0 0.0
    %3019 = vmatpush1.msra.mxu0 0.0
    %3020 = vmatprep.subr.mxu0 0.0
    %3021 = vmatpush1.msra.mxu0 0.0
    %3022 = vmatprep.subr.mxu0 0.0
    %3023 = vmatpush1.msra.mxu0 0.0
    %3024 = vmatprep.subr.mxu0 0.0
    %3025 = vmatpush1.msra.mxu0 0.0
    %3026 = vmatprep.subr.mxu0 0.0
    %3027 = vmatpush1.msra.mxu0 0.0
    %3028 = vmatprep.subr.mxu0 0.0
    %3029 = vmatpush1.msra.mxu0 0.0
    %3030 = vmatprep.subr.mxu0 0.0
    %3031 = vmatpush1.msra.mxu0 0.0
    %3032 = vmatprep.subr.mxu0 0.0
    %3033 = vmatpush1.msra.mxu0 0.0
    %3034 = vmatprep.subr.mxu0 0.0
    %3035 = vmatpush1.msra.mxu0 0.0
    %3036 = vmatprep.subr.mxu0 0.0
    %3037 = vmatpush1.msra.mxu0 0.0
    %3038 = vmatprep.subr.mxu0 0.0
    %3039 = vmatpush1.msra.mxu0 0.0
    %3040 = vmatprep.subr.mxu0 0.0
    %3041 = vmatpush1.msra.mxu0 0.0
    %3042 = vmatprep.subr.mxu0 0.0
    %3043 = vmatpush1.msra.mxu0 0.0
    %3044 = vmatprep.subr.mxu0 0.0
    %3045 = vmatpush1.msra.mxu0 0.0
    %3046 = vmatprep.subr.mxu0 0.0
    %3047 = vmatpush1.msra.mxu0 0.0
    %3048 = vmatprep.subr.mxu0 0.0
    %3049 = vmatpush1.msra.mxu0 0.0
    %3050 = vmatprep.subr.mxu0 0.0
    %3051 = vmatpush1.msra.mxu0 0.0
    %3052 = vmatprep.subr.mxu0 0.0
    %3053 = vmatpush1.msra.mxu0 0.0
    %3054 = vmatprep.mubr.f32.mxu0 0.0
    %3055 = vmatmul.mubr.f32.gmra.mrb[0].mxu0 %v2988
    %v3056 = vpop.f32.mrb[0].mxu0
    %v3057 = vadd.f32 %v2985, %v3056
    %v3058 = vpop.f32.mrb[0].mxu0
    %3059 = vdwg.mxu0
    %vm3060 = vcmask 37888
    %3061 = vst.msk [vmem:[#allocation2] sm:$0x3f] %vm3060, %v3057
    // Predicated region
    $region78: #{self_attention_predictor_forward.5} parent=1 // pred_check
      _
    $region79: #{self_attention_predictor_forward.5} parent=1 // pred_check_branch
      %3063 = sbr.rel (0) target = $region81
    $region80: #{self_attention_predictor_forward.5} parent=1 // pred_region
      %s3065 = ssub.s32 128, 128
      %3066 = vsyncadd [#allocation3], %s3065
      %s3068 = sshll.u32 [#allocation2], 4
      %s3069 = int_to_ptr.vmem [resolvable:$true] %s3068
      %3071 = dma.vmem_to_hbm [thread:$0]  %s3069, 128, %s19, [#allocation3]
    $region81: #{self_attention_predictor_forward.5} parent=1 // pred_fallthru
      _
    // Predicated region
    $region82: #{self_attention_predictor_forward.5} parent=1 // pred_check
      _
    $region83: #{self_attention_predictor_forward.5} parent=1 // pred_check_branch
      %3073 = sbr.rel (0) target = $region85
    $region84: #{self_attention_predictor_forward.5} parent=1 // pred_region
      %3074 = dma.done [#allocation3], 128
    $region85: #{self_attention_predictor_forward.5} parent=1 // pred_fallthru
      _
    %3075 = vsyncpa [#allocation3], 1

</llo_original>
